<compile_context>
chip_gen: v7x
topology: tpu7x:2x2x1
jax: 0.10.0
libtpu: 0.0.40
codegen_flags: <defaults>
</compile_context>

<pallas_src>
import math
import functools

import numpy as np
import jax
import jax.numpy as jnp
from jax.experimental import pallas as pl
from jax.experimental.pallas import tpu as pltpu


# -----------------------------------------------------------------------------
# Deterministic precompute of basis constants (replaces the sympy machinery).
# -----------------------------------------------------------------------------
def _spherical_jn_np(x, order):
    """Spherical Bessel function j_order(x) via upward recurrence (numpy)."""
    x = np.asarray(x, dtype=np.float64)
    j0 = np.sin(x) / x
    if order == 0:
        return j0
    j1 = np.sin(x) / (x * x) - np.cos(x) / x
    if order == 1:
        return j1
    jm1, jc = j0, j1
    for l in range(1, order):
        jm1, jc = jc, (2 * l + 1) / x * jc - jm1
    return jc


def _bisect(f, a, b, iters=80):
    fa = f(a)
    for _ in range(iters):
        m = 0.5 * (a + b)
        fm = f(m)
        if fa * fm <= 0.0:
            b = m
        else:
            a, fa = m, fm
    return 0.5 * (a + b)


def _bessel_zeros(n, k):
    """zeros[i, j] = (j+1)-th positive zero of spherical bessel j_i."""
    zeros = np.zeros((n, k), dtype=np.float64)
    zeros[0] = np.arange(1, k + 1) * np.pi
    points = np.arange(1, k + n) * np.pi          # zeros of j_0 (k+n-1 of them)
    for i in range(1, n):
        new = np.zeros(len(points) - 1, dtype=np.float64)
        for j in range(len(points) - 1):
            new[j] = _bisect(lambda x: float(_spherical_jn_np(x, i)),
                             points[j], points[j + 1])
        points = new
        zeros[i, :] = points[:k]
    return zeros


def _bessel_normalizers(zeros):
    n, k = zeros.shape
    norms = np.zeros_like(zeros)
    for i in range(n):
        for j in range(k):
            norms[i, j] = 1.0 / math.sqrt(
                0.5 * _spherical_jn_np(zeros[i, j], i + 1) ** 2)
    return norms


def _poly_add(a, b):
    la, lb = len(a), len(b)
    if la < lb:
        a = np.concatenate([a, np.zeros(lb - la)])
    elif lb < la:
        b = np.concatenate([b, np.zeros(la - lb)])
    return a + b


def _legendre_poly_parts(l):
    """Polynomial parts (coeffs in z=cos(theta), ascending) of the DimeNet
    associated_legendre_polynomials recurrence (Condon-Shortley included)."""
    P = [[None] * (j + 1) for j in range(l)]
    P[0][0] = np.array([1.0])
    if l > 1:
        P[1][0] = np.array([0.0, 1.0])
        for j in range(2, l):
            P[j][0] = _poly_add((2 * j - 1) * np.concatenate([[0.0], P[j - 1][0]]),
                                -(j - 1) * P[j - 2][0]) / j
        for i in range(1, l):
            P[i][i] = (1 - 2 * i) * P[i - 1][i - 1]
            if i + 1 < l:
                P[i + 1][i] = (2 * i + 1) * np.concatenate([[0.0], P[i][i]])
            for j in range(i + 2, l):
                P[j][i] = _poly_add((2 * j - 1) * np.concatenate([[0.0], P[j - 1][i]]),
                                    -(i + j - 1) * P[j - 2][i]) / (j - i)
    return P


def _sph_prefactors(l):
    pref = []
    for i in range(l):
        row = []
        for m in range(i + 1):
            row.append(math.sqrt((2 * i + 1) * math.factorial(i - m)
                                 / (4.0 * math.pi * math.factorial(i + m))))
        pref.append(row)
    return pref


# -----------------------------------------------------------------------------
# Pallas kernel
# -----------------------------------------------------------------------------
def _make_torsion_kernel(num_spherical, num_radial, cutoff, zeros, norms,
                         plm, pref):
    n, k = num_spherical, num_radial
    sqrt2 = math.sqrt(2.0)
    inv_cutoff = 1.0 / float(cutoff)
    zeros = np.asarray(zeros, dtype=np.float64)
    norms = np.asarray(norms, dtype=np.float64)
    c00 = float(pref[0][0])                        # constant l=0 harmonic
    PI = math.pi

    def _horner(coeffs, v):
        """Evaluate ascending-coefficient polynomial at v (Horner, VALU only).
        Coefficients already carry any scalar prefactor; exact-zero coeffs are
        skipped.  Returns a python float when the polynomial is constant."""
        cs = [float(c) for c in coeffs]
        while len(cs) > 1 and cs[-1] == 0.0:
            cs.pop()
        if len(cs) == 1:
            return cs[0]
        r = v * cs[-1]
        if cs[-2] != 0.0:
            r = r + cs[-2]
        for cc in cs[-3::-1]:
            r = r * v
            if cc != 0.0:
                r = r + cc
        return r

    def kernel(inp_ref, out_ref):
        # inp_ref : (3, R, 128)       rows 0/1/2 = dist / theta / phi
        # out_ref : (n*n*k, R, 128)   lane-dense per-feature slabs
        x = inp_ref[0, :, :] * inv_cutoff           # (R, 128)
        theta = inp_ref[1, :, :]
        phi = inp_ref[2, :, :]

        # 1/x: EUP approximate reciprocal + one Newton refinement (VALU 2 ops),
        # full f32 accuracy without an f32 divide sequence on the VALU slot.
        r0 = pl.reciprocal(x, approx=True)
        inv_x = r0 * (2.0 - x * r0)

        # ---------------- angular (real spherical harmonic) basis -----------
        ct = jnp.cos(theta)
        st = jnp.sin(theta)
        cos_m = [None]
        sin_m = [None]
        st_pow = [None]
        if n > 1:
            cp = jnp.cos(phi)
            sp = jnp.sin(phi)
            cos_m.append(cp)
            sin_m.append(sp)
            st_pow.append(st)
            for _m in range(2, n):
                c_new = cos_m[-1] * cp - sin_m[-1] * sp
                s_new = sin_m[-1] * cp + cos_m[-1] * sp
                cos_m.append(c_new)
                sin_m.append(s_new)
                st_pow.append(st_pow[-1] * st)

        # Flat cbf list in the quirky torch ordering (levels concatenated,
        # reshaped row-major to (n, n) downstream).  Entry 0 (l=0) is a pure
        # constant -> folded into the radial scale instead of materialized.
        cbf = [None]
        for l in range(1, n):
            p0 = _horner([c * float(pref[l][0]) for c in plm[l][0]], ct)
            cbf.append(p0)                          # never constant for l >= 1
            pos, neg = [], []
            for m in range(1, l + 1):
                pm = _horner([c * float(sqrt2 * pref[l][m]) for c in plm[l][m]],
                             ct)
                base = st_pow[m] * pm               # pm may be float or array
                pos.append(base * cos_m[m])
                neg.append(base * sin_m[m])
            # per-level order (matches torch call order): m=0, 1..l, -l..-1
            cbf.extend(pos)
            cbf.extend(neg[::-1])

        # ---------------- radial (bessel) basis, fused with the stores ------
        # out[(a*n+b)*k + j] = cbf[a*n+b] * norm_{b,j} * j_b(z_{b,j} * x)
        # Each (b, j) bessel value is consumed immediately by its n stores so
        # no per-b rbf list stays live across the store loops.
        # TODO(synk): the f32 upward bessel recurrence loses accuracy for very
        # small x (dist/cutoff -> 0); add a small-argument Taylor branch if
        # such inputs are expected.
        for b in range(n):
            if b == 0:
                # zeros of j_0 are exact multiples of pi: angle-addition
                # recurrence instead of k separate sin() evaluations.
                s1 = jnp.sin(PI * x)
                c1 = jnp.cos(PI * x)
                s_j, c_j = s1, c1
                for j in range(k):
                    if j > 0:
                        s_j, c_j = (s_j * c1 + c_j * s1,
                                    c_j * c1 - s_j * s1)
                    z = float(zeros[0, j])          # = (j+1)*pi
                    nrm = float(norms[0, j])
                    scaled = (s_j * inv_x) * float(nrm / z)   # nrm * j_0(z*x)
                    for a in range(n):
                        idx = a * n + b
                        row = idx * k + j
                        if idx == 0:
                            out_ref[row, :, :] = scaled * c00
                        else:
                            out_ref[row, :, :] = cbf[idx] * scaled
            else:
                for j in range(k):
                    z = float(zeros[b, j])
                    nrm = float(norms[b, j])
                    arg = x * z
                    inv = inv_x * float(1.0 / z)    # 1/(z*x), no new divide
                    s = jnp.sin(arg)
                    c = jnp.cos(arg)
                    j_prev = s * inv                # j_0
                    j_cur = (j_prev - c) * inv      # j_1
                    for ll in range(1, b):
                        j_prev, j_cur = j_cur, (2.0 * ll + 1.0) * inv * j_cur - j_prev
                    scaled = j_cur * nrm
                    for a in range(n):
                        idx = a * n + b             # always >= 1 here
                        row = idx * k + j
                        out_ref[row, :, :] = cbf[idx] * scaled

    return kernel


# -----------------------------------------------------------------------------
# Module wrapper (parameter setup + pallas_call glue)
# -----------------------------------------------------------------------------
class TorsionEmbPallas:
    LANE = 128
    # 64 sublane-rows x 128 lanes = 8192 triplets per grid step (sweep 32/64/128
    # if tuning; 64 keeps double-buffered blocks ~3.5 MiB, fine even on v7x).
    MAX_TILE_ROWS = 64

    def __init__(self, num_spherical=3, num_radial=6, cutoff=5.0):
        assert num_radial <= 64
        self.n = num_spherical
        self.k = num_radial
        self.cutoff = float(cutoff)
        self.zeros = _bessel_zeros(self.n, self.k)            # (n, k)
        self.norms = _bessel_normalizers(self.zeros)          # (n, k)
        self.plm = _legendre_poly_parts(self.n)
        self.pref = _sph_prefactors(self.n)
        self._kernel = _make_torsion_kernel(self.n, self.k, self.cutoff,
                                            self.zeros, self.norms,
                                            self.plm, self.pref)

    @functools.partial(jax.jit, static_argnums=0)
    def __call__(self, dist, angle, phi, idx_kj):
        n, k = self.n, self.k
        width = n * n * k
        T = angle.shape[0]
        LANE = self.LANE

        # glue: gather the per-triplet distances (tiny, data-dependent).
        # TODO(synk): the idx_kj gather stays as an XLA jnp.take outside the kernel.
        dist_kj = jnp.take(dist, idx_kj, axis=0).astype(jnp.float32)

        # --- static tiling decisions -------------------------------------
        rows_needed = -(-T // LANE)
        tile_rows = min(self.MAX_TILE_ROWS, ((rows_needed + 7) // 8) * 8)
        # keep >= 2 grid steps when there is enough work (v7x: 2 TensorCores)
        if rows_needed > 8 and -(-rows_needed // tile_rows) < 2:
            half = (rows_needed + 1) // 2
            tile_rows = max(8, ((half + 7) // 8) * 8)
        rows_pad = -(-rows_needed // tile_rows) * tile_rows
        T_pad = rows_pad * LANE
        pad = T_pad - T

        d = jnp.pad(dist_kj, (0, pad), constant_values=1.0)   # avoid 1/0 on pad
        a = jnp.pad(angle.astype(jnp.float32), (0, pad))
        p = jnp.pad(phi.astype(jnp.float32), (0, pad))
        # one fused input: (3, rows_pad, 128), triplets dense on sublanes+lanes
        packed = jnp.stack([d, a, p], axis=0).reshape(3, rows_pad, LANE)

        # VMEM budget: double-buffered in/out blocks + headroom for in-kernel
        # intermediates / spills.  Stays below v7x's 32 MiB scoped default.
        blk_in = 3 * tile_rows * LANE * 4
        blk_out = width * tile_rows * LANE * 4
        vmem_limit = int(min(2 * (blk_in + blk_out) + (8 << 20), 32 << 20))

        out3 = pl.pallas_call(
            self._kernel,
            out_shape=jax.ShapeDtypeStruct((width, rows_pad, LANE), jnp.float32),
            grid=(rows_pad // tile_rows,),
            in_specs=[pl.BlockSpec((3, tile_rows, LANE), lambda i: (0, i, 0))],
            out_specs=pl.BlockSpec((width, tile_rows, LANE), lambda i: (0, i, 0)),
            compiler_params=pltpu.CompilerParams(
                dimension_semantics=("parallel",),
                vmem_limit_bytes=vmem_limit),
        )(packed)

        # TODO(synk): this (width, T) -> (T, width) transpose is pure layout
        # plumbing in XLA (one extra HBM round trip of the output); a consumer
        # that accepts the (width, T) layout should take out3 directly.
        return out3.reshape(width, T_pad).T[:T]


# -----------------------------------------------------------------------------
# Pure-numpy reference (same math, float64) for correctness checking.
# -----------------------------------------------------------------------------
def _reference(mod: TorsionEmbPallas, dist, angle, phi, idx_kj):
    n, k = mod.n, mod.k
    d = np.asarray(dist, np.float64) / mod.cutoff
    E = d.shape[0]
    rbf = np.zeros((E, n * k))
    for i in range(n):
        arg = d[:, None] * mod.zeros[i][None, :]
        rbf[:, i * k:(i + 1) * k] = mod.norms[i][None, :] * _spherical_jn_np(arg, i)
    th = np.asarray(angle, np.float64)
    ph = np.asarray(phi, np.float64)
    T = th.shape[0]
    z, s = np.cos(th), np.sin(th)
    cols = []
    for l in range(n):
        if l == 0:
            cols.append(np.full(T, mod.pref[0][0]))
        else:
            cols.append(mod.pref[l][0] * np.polyval(mod.plm[l][0][::-1], z))
            pos, neg = [], []
            for m in range(1, l + 1):
                base = math.sqrt(2) * mod.pref[l][m] * (s ** m) \
                    * np.polyval(mod.plm[l][m][::-1], z)
                pos.append(base * np.cos(m * ph))
                neg.append(base * np.sin(m * ph))
            cols.extend(pos)
            cols.extend(neg[::-1])
    cbf = np.stack(cols, axis=1)
    r = rbf[np.asarray(idx_kj)]
    return (r.reshape(T, 1, n, k) * cbf.reshape(T, n, n, 1)).reshape(T, n * n * k)


# -----------------------------------------------------------------------------
if __name__ == "__main__":
    key = jax.random.PRNGKey(0)
    k1, k2, k3, k4 = jax.random.split(key, 4)

    num_spherical, num_radial, cutoff = 3, 6, 5.0
    E, T = 32, 37   # edges, triplets

    dist = jax.random.uniform(k1, (E,), jnp.float32, 0.5, 4.5)
    angle = jax.random.uniform(k2, (T,), jnp.float32, 0.0, math.pi)
    phi = jax.random.uniform(k3, (T,), jnp.float32, -math.pi, math.pi)
    idx_kj = jax.random.randint(k4, (T,), 0, E, dtype=jnp.int32)

    mod = TorsionEmbPallas(num_spherical, num_radial, cutoff)
    out = jax.block_until_ready(mod(dist, angle, phi, idx_kj))

    ref = _reference(mod, np.asarray(dist), np.asarray(angle),
                     np.asarray(phi), np.asarray(idx_kj))
    assert out.shape == (T, num_spherical * num_spherical * num_radial)
    np.testing.assert_allclose(np.asarray(out), ref, rtol=5e-4, atol=2e-4)

    print("KERNEL_OK")
</pallas_src>

<mosaic_0001>
module attributes {stable_mosaic.version = 11 : i64} {
  func.func @kernel(%arg0: i32, %arg1: memref<3x8x128xf32, #tpu.memory_space<vmem>>, %arg2: memref<54x8x128xf32, #tpu.memory_space<vmem>>) attributes {dimension_semantics = [#tpu.dimension_semantics<parallel>], iteration_bounds = array<i64: 1>, scalar_prefetch = 0 : i64, scratch_operands = 0 : i64, tpu.core_type = #tpu.core_type<tc>, window_params = [{transform_indices = @transform_0, window_bounds = array<i64: 3, 8, 128>}, {transform_indices = @transform_1, window_bounds = array<i64: 54, 8, 128>}]} {
    %c0 = arith.constant 0 : index
    %c0_0 = arith.constant 0 : index
    %c0_1 = arith.constant 0 : index
    %0 = vector.load %arg1[%c0, %c0_0, %c0_1] : memref<3x8x128xf32, #tpu.memory_space<vmem>>, vector<1x8x128xf32>
    %1 = vector.shape_cast %0 : vector<1x8x128xf32> to vector<8x128xf32>
    %cst = arith.constant 2.000000e-01 : f32
    %2 = vector.broadcast %cst : f32 to vector<8x128xf32>
    %3 = arith.mulf %1, %2 : vector<8x128xf32>
    %c1 = arith.constant 1 : index
    %c0_2 = arith.constant 0 : index
    %c0_3 = arith.constant 0 : index
    %4 = vector.load %arg1[%c1, %c0_2, %c0_3] : memref<3x8x128xf32, #tpu.memory_space<vmem>>, vector<1x8x128xf32>
    %5 = vector.shape_cast %4 : vector<1x8x128xf32> to vector<8x128xf32>
    %c2 = arith.constant 2 : index
    %c0_4 = arith.constant 0 : index
    %c0_5 = arith.constant 0 : index
    %6 = vector.load %arg1[%c2, %c0_4, %c0_5] : memref<3x8x128xf32, #tpu.memory_space<vmem>>, vector<1x8x128xf32>
    %7 = vector.shape_cast %6 : vector<1x8x128xf32> to vector<8x128xf32>
    %8 = tpu.reciprocal %3 {approx = true} : vector<8x128xf32> -> vector<8x128xf32>
    %9 = arith.mulf %3, %8 : vector<8x128xf32>
    %cst_6 = arith.constant 2.000000e+00 : f32
    %10 = vector.broadcast %cst_6 : f32 to vector<8x128xf32>
    %11 = arith.subf %10, %9 : vector<8x128xf32>
    %12 = arith.mulf %8, %11 : vector<8x128xf32>
    %13 = math.cos %5 : vector<8x128xf32>
    %14 = math.sin %5 : vector<8x128xf32>
    %15 = math.cos %7 : vector<8x128xf32>
    %16 = math.sin %7 : vector<8x128xf32>
    %17 = arith.mulf %15, %15 : vector<8x128xf32>
    %18 = arith.mulf %16, %16 : vector<8x128xf32>
    %19 = arith.subf %17, %18 : vector<8x128xf32>
    %20 = arith.mulf %16, %15 : vector<8x128xf32>
    %21 = arith.mulf %15, %16 : vector<8x128xf32>
    %22 = arith.addf %20, %21 : vector<8x128xf32>
    %23 = arith.mulf %14, %14 : vector<8x128xf32>
    %cst_7 = arith.constant 0.488602519 : f32
    %24 = vector.broadcast %cst_7 : f32 to vector<8x128xf32>
    %25 = arith.mulf %13, %24 : vector<8x128xf32>
    %cst_8 = arith.constant -0.488602519 : f32
    %26 = vector.broadcast %cst_8 : f32 to vector<8x128xf32>
    %27 = arith.mulf %14, %26 : vector<8x128xf32>
    %28 = arith.mulf %27, %15 : vector<8x128xf32>
    %29 = arith.mulf %27, %16 : vector<8x128xf32>
    %cst_9 = arith.constant 0.946174681 : f32
    %30 = vector.broadcast %cst_9 : f32 to vector<8x128xf32>
    %31 = arith.mulf %13, %30 : vector<8x128xf32>
    %32 = arith.mulf %31, %13 : vector<8x128xf32>
    %cst_10 = arith.constant -0.31539157 : f32
    %33 = vector.broadcast %cst_10 : f32 to vector<8x128xf32>
    %34 = arith.addf %32, %33 : vector<8x128xf32>
    %cst_11 = arith.constant -1.09254849 : f32
    %35 = vector.broadcast %cst_11 : f32 to vector<8x128xf32>
    %36 = arith.mulf %13, %35 : vector<8x128xf32>
    %37 = arith.mulf %14, %36 : vector<8x128xf32>
    %38 = arith.mulf %37, %15 : vector<8x128xf32>
    %39 = arith.mulf %37, %16 : vector<8x128xf32>
    %cst_12 = arith.constant 0.546274245 : f32
    %40 = vector.broadcast %cst_12 : f32 to vector<8x128xf32>
    %41 = arith.mulf %23, %40 : vector<8x128xf32>
    %42 = arith.mulf %41, %19 : vector<8x128xf32>
    %43 = arith.mulf %41, %22 : vector<8x128xf32>
    %cst_13 = arith.constant 3.14159274 : f32
    %44 = vector.broadcast %cst_13 : f32 to vector<8x128xf32>
    %45 = arith.mulf %44, %3 : vector<8x128xf32>
    %46 = math.sin %45 : vector<8x128xf32>
    %cst_14 = arith.constant 3.14159274 : f32
    %47 = vector.broadcast %cst_14 : f32 to vector<8x128xf32>
    %48 = arith.mulf %47, %3 : vector<8x128xf32>
    %49 = math.cos %48 : vector<8x128xf32>
    %50 = arith.mulf %46, %12 : vector<8x128xf32>
    %cst_15 = arith.constant 1.41421354 : f32
    %51 = vector.broadcast %cst_15 : f32 to vector<8x128xf32>
    %52 = arith.mulf %50, %51 : vector<8x128xf32>
    %cst_16 = arith.constant 0.282094806 : f32
    %53 = vector.broadcast %cst_16 : f32 to vector<8x128xf32>
    %54 = arith.mulf %52, %53 : vector<8x128xf32>
    %c0_17 = arith.constant 0 : index
    %c0_18 = arith.constant 0 : index
    %c0_19 = arith.constant 0 : index
    %55 = vector.load %arg2[%c0_17, %c0_18, %c0_19] : memref<54x8x128xf32, #tpu.memory_space<vmem>>, vector<1x8x128xf32>
    %56 = vector.shape_cast %55 : vector<1x8x128xf32> to vector<8x128xf32>
    %57 = vector.shape_cast %54 : vector<8x128xf32> to vector<1x8x128xf32>
    tpu.vector_store %arg2[%c0_17, %c0_18, %c0_19], %57 {strides = array<i32>} : memref<54x8x128xf32, #tpu.memory_space<vmem>>, vector<1x8x128xf32>,
    %58 = arith.mulf %29, %52 : vector<8x128xf32>
    %c18 = arith.constant 18 : index
    %c0_20 = arith.constant 0 : index
    %c0_21 = arith.constant 0 : index
    %59 = vector.load %arg2[%c18, %c0_20, %c0_21] : memref<54x8x128xf32, #tpu.memory_space<vmem>>, vector<1x8x128xf32>
    %60 = vector.shape_cast %59 : vector<1x8x128xf32> to vector<8x128xf32>
    %61 = vector.shape_cast %58 : vector<8x128xf32> to vector<1x8x128xf32>
    tpu.vector_store %arg2[%c18, %c0_20, %c0_21], %61 {strides = array<i32>} : memref<54x8x128xf32, #tpu.memory_space<vmem>>, vector<1x8x128xf32>,
    %62 = arith.mulf %42, %52 : vector<8x128xf32>
    %c36 = arith.constant 36 : index
    %c0_22 = arith.constant 0 : index
    %c0_23 = arith.constant 0 : index
    %63 = vector.load %arg2[%c36, %c0_22, %c0_23] : memref<54x8x128xf32, #tpu.memory_space<vmem>>, vector<1x8x128xf32>
    %64 = vector.shape_cast %63 : vector<1x8x128xf32> to vector<8x128xf32>
    %65 = vector.shape_cast %62 : vector<8x128xf32> to vector<1x8x128xf32>
    tpu.vector_store %arg2[%c36, %c0_22, %c0_23], %65 {strides = array<i32>} : memref<54x8x128xf32, #tpu.memory_space<vmem>>, vector<1x8x128xf32>,
    %66 = arith.mulf %46, %49 : vector<8x128xf32>
    %67 = arith.mulf %49, %46 : vector<8x128xf32>
    %68 = arith.addf %66, %67 : vector<8x128xf32>
    %69 = arith.mulf %49, %49 : vector<8x128xf32>
    %70 = arith.mulf %46, %46 : vector<8x128xf32>
    %71 = arith.subf %69, %70 : vector<8x128xf32>
    %72 = arith.mulf %68, %12 : vector<8x128xf32>
    %cst_24 = arith.constant 1.41421354 : f32
    %73 = vector.broadcast %cst_24 : f32 to vector<8x128xf32>
    %74 = arith.mulf %72, %73 : vector<8x128xf32>
    %cst_25 = arith.constant 0.282094806 : f32
    %75 = vector.broadcast %cst_25 : f32 to vector<8x128xf32>
    %76 = arith.mulf %74, %75 : vector<8x128xf32>
    %c1_26 = arith.constant 1 : index
    %c0_27 = arith.constant 0 : index
    %c0_28 = arith.constant 0 : index
    %77 = vector.load %arg2[%c1_26, %c0_27, %c0_28] : memref<54x8x128xf32, #tpu.memory_space<vmem>>, vector<1x8x128xf32>
    %78 = vector.shape_cast %77 : vector<1x8x128xf32> to vector<8x128xf32>
    %79 = vector.shape_cast %76 : vector<8x128xf32> to vector<1x8x128xf32>
    tpu.vector_store %arg2[%c1_26, %c0_27, %c0_28], %79 {strides = array<i32>} : memref<54x8x128xf32, #tpu.memory_space<vmem>>, vector<1x8x128xf32>,
    %80 = arith.mulf %29, %74 : vector<8x128xf32>
    %c19 = arith.constant 19 : index
    %c0_29 = arith.constant 0 : index
    %c0_30 = arith.constant 0 : index
    %81 = vector.load %arg2[%c19, %c0_29, %c0_30] : memref<54x8x128xf32, #tpu.memory_space<vmem>>, vector<1x8x128xf32>
    %82 = vector.shape_cast %81 : vector<1x8x128xf32> to vector<8x128xf32>
    %83 = vector.shape_cast %80 : vector<8x128xf32> to vector<1x8x128xf32>
    tpu.vector_store %arg2[%c19, %c0_29, %c0_30], %83 {strides = array<i32>} : memref<54x8x128xf32, #tpu.memory_space<vmem>>, vector<1x8x128xf32>,
    %84 = arith.mulf %42, %74 : vector<8x128xf32>
    %c37 = arith.constant 37 : index
    %c0_31 = arith.constant 0 : index
    %c0_32 = arith.constant 0 : index
    %85 = vector.load %arg2[%c37, %c0_31, %c0_32] : memref<54x8x128xf32, #tpu.memory_space<vmem>>, vector<1x8x128xf32>
    %86 = vector.shape_cast %85 : vector<1x8x128xf32> to vector<8x128xf32>
    %87 = vector.shape_cast %84 : vector<8x128xf32> to vector<1x8x128xf32>
    tpu.vector_store %arg2[%c37, %c0_31, %c0_32], %87 {strides = array<i32>} : memref<54x8x128xf32, #tpu.memory_space<vmem>>, vector<1x8x128xf32>,
    %88 = arith.mulf %68, %49 : vector<8x128xf32>
    %89 = arith.mulf %71, %46 : vector<8x128xf32>
    %90 = arith.addf %88, %89 : vector<8x128xf32>
    %91 = arith.mulf %71, %49 : vector<8x128xf32>
    %92 = arith.mulf %68, %46 : vector<8x128xf32>
    %93 = arith.subf %91, %92 : vector<8x128xf32>
    %94 = arith.mulf %90, %12 : vector<8x128xf32>
    %cst_33 = arith.constant 1.41421354 : f32
    %95 = vector.broadcast %cst_33 : f32 to vector<8x128xf32>
    %96 = arith.mulf %94, %95 : vector<8x128xf32>
    %cst_34 = arith.constant 0.282094806 : f32
    %97 = vector.broadcast %cst_34 : f32 to vector<8x128xf32>
    %98 = arith.mulf %96, %97 : vector<8x128xf32>
    %c2_35 = arith.constant 2 : index
    %c0_36 = arith.constant 0 : index
    %c0_37 = arith.constant 0 : index
    %99 = vector.load %arg2[%c2_35, %c0_36, %c0_37] : memref<54x8x128xf32, #tpu.memory_space<vmem>>, vector<1x8x128xf32>
    %100 = vector.shape_cast %99 : vector<1x8x128xf32> to vector<8x128xf32>
    %101 = vector.shape_cast %98 : vector<8x128xf32> to vector<1x8x128xf32>
    tpu.vector_store %arg2[%c2_35, %c0_36, %c0_37], %101 {strides = array<i32>} : memref<54x8x128xf32, #tpu.memory_space<vmem>>, vector<1x8x128xf32>,
    %102 = arith.mulf %29, %96 : vector<8x128xf32>
    %c20 = arith.constant 20 : index
    %c0_38 = arith.constant 0 : index
    %c0_39 = arith.constant 0 : index
    %103 = vector.load %arg2[%c20, %c0_38, %c0_39] : memref<54x8x128xf32, #tpu.memory_space<vmem>>, vector<1x8x128xf32>
    %104 = vector.shape_cast %103 : vector<1x8x128xf32> to vector<8x128xf32>
    %105 = vector.shape_cast %102 : vector<8x128xf32> to vector<1x8x128xf32>
    tpu.vector_store %arg2[%c20, %c0_38, %c0_39], %105 {strides = array<i32>} : memref<54x8x128xf32, #tpu.memory_space<vmem>>, vector<1x8x128xf32>,
    %106 = arith.mulf %42, %96 : vector<8x128xf32>
    %c38 = arith.constant 38 : index
    %c0_40 = arith.constant 0 : index
    %c0_41 = arith.constant 0 : index
    %107 = vector.load %arg2[%c38, %c0_40, %c0_41] : memref<54x8x128xf32, #tpu.memory_space<vmem>>, vector<1x8x128xf32>
    %108 = vector.shape_cast %107 : vector<1x8x128xf32> to vector<8x128xf32>
    %109 = vector.shape_cast %106 : vector<8x128xf32> to vector<1x8x128xf32>
    tpu.vector_store %arg2[%c38, %c0_40, %c0_41], %109 {strides = array<i32>} : memref<54x8x128xf32, #tpu.memory_space<vmem>>, vector<1x8x128xf32>,
    %110 = arith.mulf %90, %49 : vector<8x128xf32>
    %111 = arith.mulf %93, %46 : vector<8x128xf32>
    %112 = arith.addf %110, %111 : vector<8x128xf32>
    %113 = arith.mulf %93, %49 : vector<8x128xf32>
    %114 = arith.mulf %90, %46 : vector<8x128xf32>
    %115 = arith.subf %113, %114 : vector<8x128xf32>
    %116 = arith.mulf %112, %12 : vector<8x128xf32>
    %cst_42 = arith.constant 1.41421354 : f32
    %117 = vector.broadcast %cst_42 : f32 to vector<8x128xf32>
    %118 = arith.mulf %116, %117 : vector<8x128xf32>
    %cst_43 = arith.constant 0.282094806 : f32
    %119 = vector.broadcast %cst_43 : f32 to vector<8x128xf32>
    %120 = arith.mulf %118, %119 : vector<8x128xf32>
    %c3 = arith.constant 3 : index
    %c0_44 = arith.constant 0 : index
    %c0_45 = arith.constant 0 : index
    %121 = vector.load %arg2[%c3, %c0_44, %c0_45] : memref<54x8x128xf32, #tpu.memory_space<vmem>>, vector<1x8x128xf32>
    %122 = vector.shape_cast %121 : vector<1x8x128xf32> to vector<8x128xf32>
    %123 = vector.shape_cast %120 : vector<8x128xf32> to vector<1x8x128xf32>
    tpu.vector_store %arg2[%c3, %c0_44, %c0_45], %123 {strides = array<i32>} : memref<54x8x128xf32, #tpu.memory_space<vmem>>, vector<1x8x128xf32>,
    %124 = arith.mulf %29, %118 : vector<8x128xf32>
    %c21 = arith.constant 21 : index
    %c0_46 = arith.constant 0 : index
    %c0_47 = arith.constant 0 : index
    %125 = vector.load %arg2[%c21, %c0_46, %c0_47] : memref<54x8x128xf32, #tpu.memory_space<vmem>>, vector<1x8x128xf32>
    %126 = vector.shape_cast %125 : vector<1x8x128xf32> to vector<8x128xf32>
    %127 = vector.shape_cast %124 : vector<8x128xf32> to vector<1x8x128xf32>
    tpu.vector_store %arg2[%c21, %c0_46, %c0_47], %127 {strides = array<i32>} : memref<54x8x128xf32, #tpu.memory_space<vmem>>, vector<1x8x128xf32>,
    %128 = arith.mulf %42, %118 : vector<8x128xf32>
    %c39 = arith.constant 39 : index
    %c0_48 = arith.constant 0 : index
    %c0_49 = arith.constant 0 : index
    %129 = vector.load %arg2[%c39, %c0_48, %c0_49] : memref<54x8x128xf32, #tpu.memory_space<vmem>>, vector<1x8x128xf32>
    %130 = vector.shape_cast %129 : vector<1x8x128xf32> to vector<8x128xf32>
    %131 = vector.shape_cast %128 : vector<8x128xf32> to vector<1x8x128xf32>
    tpu.vector_store %arg2[%c39, %c0_48, %c0_49], %131 {strides = array<i32>} : memref<54x8x128xf32, #tpu.memory_space<vmem>>, vector<1x8x128xf32>,
    %132 = arith.mulf %112, %49 : vector<8x128xf32>
    %133 = arith.mulf %115, %46 : vector<8x128xf32>
    %134 = arith.addf %132, %133 : vector<8x128xf32>
    %135 = arith.mulf %115, %49 : vector<8x128xf32>
    %136 = arith.mulf %112, %46 : vector<8x128xf32>
    %137 = arith.subf %135, %136 : vector<8x128xf32>
    %138 = arith.mulf %134, %12 : vector<8x128xf32>
    %cst_50 = arith.constant 1.41421354 : f32
    %139 = vector.broadcast %cst_50 : f32 to vector<8x128xf32>
    %140 = arith.mulf %138, %139 : vector<8x128xf32>
    %cst_51 = arith.constant 0.282094806 : f32
    %141 = vector.broadcast %cst_51 : f32 to vector<8x128xf32>
    %142 = arith.mulf %140, %141 : vector<8x128xf32>
    %c4 = arith.constant 4 : index
    %c0_52 = arith.constant 0 : index
    %c0_53 = arith.constant 0 : index
    %143 = vector.load %arg2[%c4, %c0_52, %c0_53] : memref<54x8x128xf32, #tpu.memory_space<vmem>>, vector<1x8x128xf32>
    %144 = vector.shape_cast %143 : vector<1x8x128xf32> to vector<8x128xf32>
    %145 = vector.shape_cast %142 : vector<8x128xf32> to vector<1x8x128xf32>
    tpu.vector_store %arg2[%c4, %c0_52, %c0_53], %145 {strides = array<i32>} : memref<54x8x128xf32, #tpu.memory_space<vmem>>, vector<1x8x128xf32>,
    %146 = arith.mulf %29, %140 : vector<8x128xf32>
    %c22 = arith.constant 22 : index
    %c0_54 = arith.constant 0 : index
    %c0_55 = arith.constant 0 : index
    %147 = vector.load %arg2[%c22, %c0_54, %c0_55] : memref<54x8x128xf32, #tpu.memory_space<vmem>>, vector<1x8x128xf32>
    %148 = vector.shape_cast %147 : vector<1x8x128xf32> to vector<8x128xf32>
    %149 = vector.shape_cast %146 : vector<8x128xf32> to vector<1x8x128xf32>
    tpu.vector_store %arg2[%c22, %c0_54, %c0_55], %149 {strides = array<i32>} : memref<54x8x128xf32, #tpu.memory_space<vmem>>, vector<1x8x128xf32>,
    %150 = arith.mulf %42, %140 : vector<8x128xf32>
    %c40 = arith.constant 40 : index
    %c0_56 = arith.constant 0 : index
    %c0_57 = arith.constant 0 : index
    %151 = vector.load %arg2[%c40, %c0_56, %c0_57] : memref<54x8x128xf32, #tpu.memory_space<vmem>>, vector<1x8x128xf32>
    %152 = vector.shape_cast %151 : vector<1x8x128xf32> to vector<8x128xf32>
    %153 = vector.shape_cast %150 : vector<8x128xf32> to vector<1x8x128xf32>
    tpu.vector_store %arg2[%c40, %c0_56, %c0_57], %153 {strides = array<i32>} : memref<54x8x128xf32, #tpu.memory_space<vmem>>, vector<1x8x128xf32>,
    %154 = arith.mulf %134, %49 : vector<8x128xf32>
    %155 = arith.mulf %137, %46 : vector<8x128xf32>
    %156 = arith.addf %154, %155 : vector<8x128xf32>
    %157 = arith.mulf %156, %12 : vector<8x128xf32>
    %cst_58 = arith.constant 1.41421354 : f32
    %158 = vector.broadcast %cst_58 : f32 to vector<8x128xf32>
    %159 = arith.mulf %157, %158 : vector<8x128xf32>
    %cst_59 = arith.constant 0.282094806 : f32
    %160 = vector.broadcast %cst_59 : f32 to vector<8x128xf32>
    %161 = arith.mulf %159, %160 : vector<8x128xf32>
    %c5 = arith.constant 5 : index
    %c0_60 = arith.constant 0 : index
    %c0_61 = arith.constant 0 : index
    %162 = vector.load %arg2[%c5, %c0_60, %c0_61] : memref<54x8x128xf32, #tpu.memory_space<vmem>>, vector<1x8x128xf32>
    %163 = vector.shape_cast %162 : vector<1x8x128xf32> to vector<8x128xf32>
    %164 = vector.shape_cast %161 : vector<8x128xf32> to vector<1x8x128xf32>
    tpu.vector_store %arg2[%c5, %c0_60, %c0_61], %164 {strides = array<i32>} : memref<54x8x128xf32, #tpu.memory_space<vmem>>, vector<1x8x128xf32>,
    %165 = arith.mulf %29, %159 : vector<8x128xf32>
    %c23 = arith.constant 23 : index
    %c0_62 = arith.constant 0 : index
    %c0_63 = arith.constant 0 : index
    %166 = vector.load %arg2[%c23, %c0_62, %c0_63] : memref<54x8x128xf32, #tpu.memory_space<vmem>>, vector<1x8x128xf32>
    %167 = vector.shape_cast %166 : vector<1x8x128xf32> to vector<8x128xf32>
    %168 = vector.shape_cast %165 : vector<8x128xf32> to vector<1x8x128xf32>
    tpu.vector_store %arg2[%c23, %c0_62, %c0_63], %168 {strides = array<i32>} : memref<54x8x128xf32, #tpu.memory_space<vmem>>, vector<1x8x128xf32>,
    %169 = arith.mulf %42, %159 : vector<8x128xf32>
    %c41 = arith.constant 41 : index
    %c0_64 = arith.constant 0 : index
    %c0_65 = arith.constant 0 : index
    %170 = vector.load %arg2[%c41, %c0_64, %c0_65] : memref<54x8x128xf32, #tpu.memory_space<vmem>>, vector<1x8x128xf32>
    %171 = vector.shape_cast %170 : vector<1x8x128xf32> to vector<8x128xf32>
    %172 = vector.shape_cast %169 : vector<8x128xf32> to vector<1x8x128xf32>
    tpu.vector_store %arg2[%c41, %c0_64, %c0_65], %172 {strides = array<i32>} : memref<54x8x128xf32, #tpu.memory_space<vmem>>, vector<1x8x128xf32>,
    %cst_66 = arith.constant 4.49340963 : f32
    %173 = vector.broadcast %cst_66 : f32 to vector<8x128xf32>
    %174 = arith.mulf %3, %173 : vector<8x128xf32>
    %cst_67 = arith.constant 0.222548157 : f32
    %175 = vector.broadcast %cst_67 : f32 to vector<8x128xf32>
    %176 = arith.mulf %12, %175 : vector<8x128xf32>
    %177 = math.sin %174 : vector<8x128xf32>
    %178 = math.cos %174 : vector<8x128xf32>
    %179 = arith.mulf %177, %176 : vector<8x128xf32>
    %180 = arith.subf %179, %178 : vector<8x128xf32>
    %181 = arith.mulf %180, %176 : vector<8x128xf32>
    %cst_68 = arith.constant 6.51010417 : f32
    %182 = vector.broadcast %cst_68 : f32 to vector<8x128xf32>
    %183 = arith.mulf %181, %182 : vector<8x128xf32>
    %184 = arith.mulf %25, %183 : vector<8x128xf32>
    %c6 = arith.constant 6 : index
    %c0_69 = arith.constant 0 : index
    %c0_70 = arith.constant 0 : index
    %185 = vector.load %arg2[%c6, %c0_69, %c0_70] : memref<54x8x128xf32, #tpu.memory_space<vmem>>, vector<1x8x128xf32>
    %186 = vector.shape_cast %185 : vector<1x8x128xf32> to vector<8x128xf32>
    %187 = vector.shape_cast %184 : vector<8x128xf32> to vector<1x8x128xf32>
    tpu.vector_store %arg2[%c6, %c0_69, %c0_70], %187 {strides = array<i32>} : memref<54x8x128xf32, #tpu.memory_space<vmem>>, vector<1x8x128xf32>,
    %188 = arith.mulf %34, %183 : vector<8x128xf32>
    %c24 = arith.constant 24 : index
    %c0_71 = arith.constant 0 : index
    %c0_72 = arith.constant 0 : index
    %189 = vector.load %arg2[%c24, %c0_71, %c0_72] : memref<54x8x128xf32, #tpu.memory_space<vmem>>, vector<1x8x128xf32>
    %190 = vector.shape_cast %189 : vector<1x8x128xf32> to vector<8x128xf32>
    %191 = vector.shape_cast %188 : vector<8x128xf32> to vector<1x8x128xf32>
    tpu.vector_store %arg2[%c24, %c0_71, %c0_72], %191 {strides = array<i32>} : memref<54x8x128xf32, #tpu.memory_space<vmem>>, vector<1x8x128xf32>,
    %192 = arith.mulf %43, %183 : vector<8x128xf32>
    %c42 = arith.constant 42 : index
    %c0_73 = arith.constant 0 : index
    %c0_74 = arith.constant 0 : index
    %193 = vector.load %arg2[%c42, %c0_73, %c0_74] : memref<54x8x128xf32, #tpu.memory_space<vmem>>, vector<1x8x128xf32>
    %194 = vector.shape_cast %193 : vector<1x8x128xf32> to vector<8x128xf32>
    %195 = vector.shape_cast %192 : vector<8x128xf32> to vector<1x8x128xf32>
    tpu.vector_store %arg2[%c42, %c0_73, %c0_74], %195 {strides = array<i32>} : memref<54x8x128xf32, #tpu.memory_space<vmem>>, vector<1x8x128xf32>,
    %cst_75 = arith.constant 7.72525167 : f32
    %196 = vector.broadcast %cst_75 : f32 to vector<8x128xf32>
    %197 = arith.mulf %3, %196 : vector<8x128xf32>
    %cst_76 = arith.constant 0.129445612 : f32
    %198 = vector.broadcast %cst_76 : f32 to vector<8x128xf32>
    %199 = arith.mulf %12, %198 : vector<8x128xf32>
    %200 = math.sin %197 : vector<8x128xf32>
    %201 = math.cos %197 : vector<8x128xf32>
    %202 = arith.mulf %200, %199 : vector<8x128xf32>
    %203 = arith.subf %202, %201 : vector<8x128xf32>
    %204 = arith.mulf %203, %199 : vector<8x128xf32>
    %cst_77 = arith.constant 11.0163078 : f32
    %205 = vector.broadcast %cst_77 : f32 to vector<8x128xf32>
    %206 = arith.mulf %204, %205 : vector<8x128xf32>
    %207 = arith.mulf %25, %206 : vector<8x128xf32>
    %c7 = arith.constant 7 : index
    %c0_78 = arith.constant 0 : index
    %c0_79 = arith.constant 0 : index
    %208 = vector.load %arg2[%c7, %c0_78, %c0_79] : memref<54x8x128xf32, #tpu.memory_space<vmem>>, vector<1x8x128xf32>
    %209 = vector.shape_cast %208 : vector<1x8x128xf32> to vector<8x128xf32>
    %210 = vector.shape_cast %207 : vector<8x128xf32> to vector<1x8x128xf32>
    tpu.vector_store %arg2[%c7, %c0_78, %c0_79], %210 {strides = array<i32>} : memref<54x8x128xf32, #tpu.memory_space<vmem>>, vector<1x8x128xf32>,
    %211 = arith.mulf %34, %206 : vector<8x128xf32>
    %c25 = arith.constant 25 : index
    %c0_80 = arith.constant 0 : index
    %c0_81 = arith.constant 0 : index
    %212 = vector.load %arg2[%c25, %c0_80, %c0_81] : memref<54x8x128xf32, #tpu.memory_space<vmem>>, vector<1x8x128xf32>
    %213 = vector.shape_cast %212 : vector<1x8x128xf32> to vector<8x128xf32>
    %214 = vector.shape_cast %211 : vector<8x128xf32> to vector<1x8x128xf32>
    tpu.vector_store %arg2[%c25, %c0_80, %c0_81], %214 {strides = array<i32>} : memref<54x8x128xf32, #tpu.memory_space<vmem>>, vector<1x8x128xf32>,
    %215 = arith.mulf %43, %206 : vector<8x128xf32>
    %c43 = arith.constant 43 : index
    %c0_82 = arith.constant 0 : index
    %c0_83 = arith.constant 0 : index
    %216 = vector.load %arg2[%c43, %c0_82, %c0_83] : memref<54x8x128xf32, #tpu.memory_space<vmem>>, vector<1x8x128xf32>
    %217 = vector.shape_cast %216 : vector<1x8x128xf32> to vector<8x128xf32>
    %218 = vector.shape_cast %215 : vector<8x128xf32> to vector<1x8x128xf32>
    tpu.vector_store %arg2[%c43, %c0_82, %c0_83], %218 {strides = array<i32>} : memref<54x8x128xf32, #tpu.memory_space<vmem>>, vector<1x8x128xf32>,
    %cst_84 = arith.constant 10.9041214 : f32
    %219 = vector.broadcast %cst_84 : f32 to vector<8x128xf32>
    %220 = arith.mulf %3, %219 : vector<8x128xf32>
    %cst_85 = arith.constant 0.091708444 : f32
    %221 = vector.broadcast %cst_85 : f32 to vector<8x128xf32>
    %222 = arith.mulf %12, %221 : vector<8x128xf32>
    %223 = math.sin %220 : vector<8x128xf32>
    %224 = math.cos %220 : vector<8x128xf32>
    %225 = arith.mulf %223, %222 : vector<8x128xf32>
    %226 = arith.subf %225, %224 : vector<8x128xf32>
    %227 = arith.mulf %226, %222 : vector<8x128xf32>
    %cst_86 = arith.constant 15.4854689 : f32
    %228 = vector.broadcast %cst_86 : f32 to vector<8x128xf32>
    %229 = arith.mulf %227, %228 : vector<8x128xf32>
    %230 = arith.mulf %25, %229 : vector<8x128xf32>
    %c8 = arith.constant 8 : index
    %c0_87 = arith.constant 0 : index
    %c0_88 = arith.constant 0 : index
    %231 = vector.load %arg2[%c8, %c0_87, %c0_88] : memref<54x8x128xf32, #tpu.memory_space<vmem>>, vector<1x8x128xf32>
    %232 = vector.shape_cast %231 : vector<1x8x128xf32> to vector<8x128xf32>
    %233 = vector.shape_cast %230 : vector<8x128xf32> to vector<1x8x128xf32>
    tpu.vector_store %arg2[%c8, %c0_87, %c0_88], %233 {strides = array<i32>} : memref<54x8x128xf32, #tpu.memory_space<vmem>>, vector<1x8x128xf32>,
    %234 = arith.mulf %34, %229 : vector<8x128xf32>
    %c26 = arith.constant 26 : index
    %c0_89 = arith.constant 0 : index
    %c0_90 = arith.constant 0 : index
    %235 = vector.load %arg2[%c26, %c0_89, %c0_90] : memref<54x8x128xf32, #tpu.memory_space<vmem>>, vector<1x8x128xf32>
    %236 = vector.shape_cast %235 : vector<1x8x128xf32> to vector<8x128xf32>
    %237 = vector.shape_cast %234 : vector<8x128xf32> to vector<1x8x128xf32>
    tpu.vector_store %arg2[%c26, %c0_89, %c0_90], %237 {strides = array<i32>} : memref<54x8x128xf32, #tpu.memory_space<vmem>>, vector<1x8x128xf32>,
    %238 = arith.mulf %43, %229 : vector<8x128xf32>
    %c44 = arith.constant 44 : index
    %c0_91 = arith.constant 0 : index
    %c0_92 = arith.constant 0 : index
    %239 = vector.load %arg2[%c44, %c0_91, %c0_92] : memref<54x8x128xf32, #tpu.memory_space<vmem>>, vector<1x8x128xf32>
    %240 = vector.shape_cast %239 : vector<1x8x128xf32> to vector<8x128xf32>
    %241 = vector.shape_cast %238 : vector<8x128xf32> to vector<1x8x128xf32>
    tpu.vector_store %arg2[%c44, %c0_91, %c0_92], %241 {strides = array<i32>} : memref<54x8x128xf32, #tpu.memory_space<vmem>>, vector<1x8x128xf32>,
    %cst_93 = arith.constant 14.0661936 : f32
    %242 = vector.broadcast %cst_93 : f32 to vector<8x128xf32>
    %243 = arith.mulf %3, %242 : vector<8x128xf32>
    %cst_94 = arith.constant 0.0710924342 : f32
    %244 = vector.broadcast %cst_94 : f32 to vector<8x128xf32>
    %245 = arith.mulf %12, %244 : vector<8x128xf32>
    %246 = math.sin %243 : vector<8x128xf32>
    %247 = math.cos %243 : vector<8x128xf32>
    %248 = arith.mulf %246, %245 : vector<8x128xf32>
    %249 = arith.subf %248, %247 : vector<8x128xf32>
    %250 = arith.mulf %249, %245 : vector<8x128xf32>
    %cst_95 = arith.constant 19.9428082 : f32
    %251 = vector.broadcast %cst_95 : f32 to vector<8x128xf32>
    %252 = arith.mulf %250, %251 : vector<8x128xf32>
    %253 = arith.mulf %25, %252 : vector<8x128xf32>
    %c9 = arith.constant 9 : index
    %c0_96 = arith.constant 0 : index
    %c0_97 = arith.constant 0 : index
    %254 = vector.load %arg2[%c9, %c0_96, %c0_97] : memref<54x8x128xf32, #tpu.memory_space<vmem>>, vector<1x8x128xf32>
    %255 = vector.shape_cast %254 : vector<1x8x128xf32> to vector<8x128xf32>
    %256 = vector.shape_cast %253 : vector<8x128xf32> to vector<1x8x128xf32>
    tpu.vector_store %arg2[%c9, %c0_96, %c0_97], %256 {strides = array<i32>} : memref<54x8x128xf32, #tpu.memory_space<vmem>>, vector<1x8x128xf32>,
    %257 = arith.mulf %34, %252 : vector<8x128xf32>
    %c27 = arith.constant 27 : index
    %c0_98 = arith.constant 0 : index
    %c0_99 = arith.constant 0 : index
    %258 = vector.load %arg2[%c27, %c0_98, %c0_99] : memref<54x8x128xf32, #tpu.memory_space<vmem>>, vector<1x8x128xf32>
    %259 = vector.shape_cast %258 : vector<1x8x128xf32> to vector<8x128xf32>
    %260 = vector.shape_cast %257 : vector<8x128xf32> to vector<1x8x128xf32>
    tpu.vector_store %arg2[%c27, %c0_98, %c0_99], %260 {strides = array<i32>} : memref<54x8x128xf32, #tpu.memory_space<vmem>>, vector<1x8x128xf32>,
    %261 = arith.mulf %43, %252 : vector<8x128xf32>
    %c45 = arith.constant 45 : index
    %c0_100 = arith.constant 0 : index
    %c0_101 = arith.constant 0 : index
    %262 = vector.load %arg2[%c45, %c0_100, %c0_101] : memref<54x8x128xf32, #tpu.memory_space<vmem>>, vector<1x8x128xf32>
    %263 = vector.shape_cast %262 : vector<1x8x128xf32> to vector<8x128xf32>
    %264 = vector.shape_cast %261 : vector<8x128xf32> to vector<1x8x128xf32>
    tpu.vector_store %arg2[%c45, %c0_100, %c0_101], %264 {strides = array<i32>} : memref<54x8x128xf32, #tpu.memory_space<vmem>>, vector<1x8x128xf32>,
    %cst_102 = arith.constant 17.2207546 : f32
    %265 = vector.broadcast %cst_102 : f32 to vector<8x128xf32>
    %266 = arith.mulf %3, %265 : vector<8x128xf32>
    %cst_103 = arith.constant 0.0580694638 : f32
    %267 = vector.broadcast %cst_103 : f32 to vector<8x128xf32>
    %268 = arith.mulf %12, %267 : vector<8x128xf32>
    %269 = math.sin %266 : vector<8x128xf32>
    %270 = math.cos %266 : vector<8x128xf32>
    %271 = arith.mulf %269, %268 : vector<8x128xf32>
    %272 = arith.subf %271, %270 : vector<8x128xf32>
    %273 = arith.mulf %272, %268 : vector<8x128xf32>
    %cst_104 = arith.constant 24.3948517 : f32
    %274 = vector.broadcast %cst_104 : f32 to vector<8x128xf32>
    %275 = arith.mulf %273, %274 : vector<8x128xf32>
    %276 = arith.mulf %25, %275 : vector<8x128xf32>
    %c10 = arith.constant 10 : index
    %c0_105 = arith.constant 0 : index
    %c0_106 = arith.constant 0 : index
    %277 = vector.load %arg2[%c10, %c0_105, %c0_106] : memref<54x8x128xf32, #tpu.memory_space<vmem>>, vector<1x8x128xf32>
    %278 = vector.shape_cast %277 : vector<1x8x128xf32> to vector<8x128xf32>
    %279 = vector.shape_cast %276 : vector<8x128xf32> to vector<1x8x128xf32>
    tpu.vector_store %arg2[%c10, %c0_105, %c0_106], %279 {strides = array<i32>} : memref<54x8x128xf32, #tpu.memory_space<vmem>>, vector<1x8x128xf32>,
    %280 = arith.mulf %34, %275 : vector<8x128xf32>
    %c28 = arith.constant 28 : index
    %c0_107 = arith.constant 0 : index
    %c0_108 = arith.constant 0 : index
    %281 = vector.load %arg2[%c28, %c0_107, %c0_108] : memref<54x8x128xf32, #tpu.memory_space<vmem>>, vector<1x8x128xf32>
    %282 = vector.shape_cast %281 : vector<1x8x128xf32> to vector<8x128xf32>
    %283 = vector.shape_cast %280 : vector<8x128xf32> to vector<1x8x128xf32>
    tpu.vector_store %arg2[%c28, %c0_107, %c0_108], %283 {strides = array<i32>} : memref<54x8x128xf32, #tpu.memory_space<vmem>>, vector<1x8x128xf32>,
    %284 = arith.mulf %43, %275 : vector<8x128xf32>
    %c46 = arith.constant 46 : index
    %c0_109 = arith.constant 0 : index
    %c0_110 = arith.constant 0 : index
    %285 = vector.load %arg2[%c46, %c0_109, %c0_110] : memref<54x8x128xf32, #tpu.memory_space<vmem>>, vector<1x8x128xf32>
    %286 = vector.shape_cast %285 : vector<1x8x128xf32> to vector<8x128xf32>
    %287 = vector.shape_cast %284 : vector<8x128xf32> to vector<1x8x128xf32>
    tpu.vector_store %arg2[%c46, %c0_109, %c0_110], %287 {strides = array<i32>} : memref<54x8x128xf32, #tpu.memory_space<vmem>>, vector<1x8x128xf32>,
    %cst_111 = arith.constant 20.3713036 : f32
    %288 = vector.broadcast %cst_111 : f32 to vector<8x128xf32>
    %289 = arith.mulf %3, %288 : vector<8x128xf32>
    %cst_112 = arith.constant 0.0490886606 : f32
    %290 = vector.broadcast %cst_112 : f32 to vector<8x128xf32>
    %291 = arith.mulf %12, %290 : vector<8x128xf32>
    %292 = math.sin %289 : vector<8x128xf32>
    %293 = math.cos %289 : vector<8x128xf32>
    %294 = arith.mulf %292, %291 : vector<8x128xf32>
    %295 = arith.subf %294, %293 : vector<8x128xf32>
    %296 = arith.mulf %295, %291 : vector<8x128xf32>
    %cst_113 = arith.constant 28.8440628 : f32
    %297 = vector.broadcast %cst_113 : f32 to vector<8x128xf32>
    %298 = arith.mulf %296, %297 : vector<8x128xf32>
    %299 = arith.mulf %25, %298 : vector<8x128xf32>
    %c11 = arith.constant 11 : index
    %c0_114 = arith.constant 0 : index
    %c0_115 = arith.constant 0 : index
    %300 = vector.load %arg2[%c11, %c0_114, %c0_115] : memref<54x8x128xf32, #tpu.memory_space<vmem>>, vector<1x8x128xf32>
    %301 = vector.shape_cast %300 : vector<1x8x128xf32> to vector<8x128xf32>
    %302 = vector.shape_cast %299 : vector<8x128xf32> to vector<1x8x128xf32>
    tpu.vector_store %arg2[%c11, %c0_114, %c0_115], %302 {strides = array<i32>} : memref<54x8x128xf32, #tpu.memory_space<vmem>>, vector<1x8x128xf32>,
    %303 = arith.mulf %34, %298 : vector<8x128xf32>
    %c29 = arith.constant 29 : index
    %c0_116 = arith.constant 0 : index
    %c0_117 = arith.constant 0 : index
    %304 = vector.load %arg2[%c29, %c0_116, %c0_117] : memref<54x8x128xf32, #tpu.memory_space<vmem>>, vector<1x8x128xf32>
    %305 = vector.shape_cast %304 : vector<1x8x128xf32> to vector<8x128xf32>
    %306 = vector.shape_cast %303 : vector<8x128xf32> to vector<1x8x128xf32>
    tpu.vector_store %arg2[%c29, %c0_116, %c0_117], %306 {strides = array<i32>} : memref<54x8x128xf32, #tpu.memory_space<vmem>>, vector<1x8x128xf32>,
    %307 = arith.mulf %43, %298 : vector<8x128xf32>
    %c47 = arith.constant 47 : index
    %c0_118 = arith.constant 0 : index
    %c0_119 = arith.constant 0 : index
    %308 = vector.load %arg2[%c47, %c0_118, %c0_119] : memref<54x8x128xf32, #tpu.memory_space<vmem>>, vector<1x8x128xf32>
    %309 = vector.shape_cast %308 : vector<1x8x128xf32> to vector<8x128xf32>
    %310 = vector.shape_cast %307 : vector<8x128xf32> to vector<1x8x128xf32>
    tpu.vector_store %arg2[%c47, %c0_118, %c0_119], %310 {strides = array<i32>} : memref<54x8x128xf32, #tpu.memory_space<vmem>>, vector<1x8x128xf32>,
    %cst_120 = arith.constant 5.76345921 : f32
    %311 = vector.broadcast %cst_120 : f32 to vector<8x128xf32>
    %312 = arith.mulf %3, %311 : vector<8x128xf32>
    %cst_121 = arith.constant 0.173506916 : f32
    %313 = vector.broadcast %cst_121 : f32 to vector<8x128xf32>
    %314 = arith.mulf %12, %313 : vector<8x128xf32>
    %315 = math.sin %312 : vector<8x128xf32>
    %316 = math.cos %312 : vector<8x128xf32>
    %317 = arith.mulf %315, %314 : vector<8x128xf32>
    %318 = arith.subf %317, %316 : vector<8x128xf32>
    %319 = arith.mulf %318, %314 : vector<8x128xf32>
    %cst_122 = arith.constant 3.000000e+00 : f32
    %320 = vector.broadcast %cst_122 : f32 to vector<8x128xf32>
    %321 = arith.mulf %320, %314 : vector<8x128xf32>
    %322 = arith.mulf %321, %319 : vector<8x128xf32>
    %323 = arith.subf %322, %317 : vector<8x128xf32>
    %cst_123 = arith.constant 8.5426464 : f32
    %324 = vector.broadcast %cst_123 : f32 to vector<8x128xf32>
    %325 = arith.mulf %323, %324 : vector<8x128xf32>
    %326 = arith.mulf %28, %325 : vector<8x128xf32>
    %c12 = arith.constant 12 : index
    %c0_124 = arith.constant 0 : index
    %c0_125 = arith.constant 0 : index
    %327 = vector.load %arg2[%c12, %c0_124, %c0_125] : memref<54x8x128xf32, #tpu.memory_space<vmem>>, vector<1x8x128xf32>
    %328 = vector.shape_cast %327 : vector<1x8x128xf32> to vector<8x128xf32>
    %329 = vector.shape_cast %326 : vector<8x128xf32> to vector<1x8x128xf32>
    tpu.vector_store %arg2[%c12, %c0_124, %c0_125], %329 {strides = array<i32>} : memref<54x8x128xf32, #tpu.memory_space<vmem>>, vector<1x8x128xf32>,
    %330 = arith.mulf %38, %325 : vector<8x128xf32>
    %c30 = arith.constant 30 : index
    %c0_126 = arith.constant 0 : index
    %c0_127 = arith.constant 0 : index
    %331 = vector.load %arg2[%c30, %c0_126, %c0_127] : memref<54x8x128xf32, #tpu.memory_space<vmem>>, vector<1x8x128xf32>
    %332 = vector.shape_cast %331 : vector<1x8x128xf32> to vector<8x128xf32>
    %333 = vector.shape_cast %330 : vector<8x128xf32> to vector<1x8x128xf32>
    tpu.vector_store %arg2[%c30, %c0_126, %c0_127], %333 {strides = array<i32>} : memref<54x8x128xf32, #tpu.memory_space<vmem>>, vector<1x8x128xf32>,
    %334 = arith.mulf %39, %325 : vector<8x128xf32>
    %c48 = arith.constant 48 : index
    %c0_128 = arith.constant 0 : index
    %c0_129 = arith.constant 0 : index
    %335 = vector.load %arg2[%c48, %c0_128, %c0_129] : memref<54x8x128xf32, #tpu.memory_space<vmem>>, vector<1x8x128xf32>
    %336 = vector.shape_cast %335 : vector<1x8x128xf32> to vector<8x128xf32>
    %337 = vector.shape_cast %334 : vector<8x128xf32> to vector<1x8x128xf32>
    tpu.vector_store %arg2[%c48, %c0_128, %c0_129], %337 {strides = array<i32>} : memref<54x8x128xf32, #tpu.memory_space<vmem>>, vector<1x8x128xf32>,
    %cst_130 = arith.constant 9.09501171 : f32
    %338 = vector.broadcast %cst_130 : f32 to vector<8x128xf32>
    %339 = arith.mulf %3, %338 : vector<8x128xf32>
    %cst_131 = arith.constant 0.109950386 : f32
    %340 = vector.broadcast %cst_131 : f32 to vector<8x128xf32>
    %341 = arith.mulf %12, %340 : vector<8x128xf32>
    %342 = math.sin %339 : vector<8x128xf32>
    %343 = math.cos %339 : vector<8x128xf32>
    %344 = arith.mulf %342, %341 : vector<8x128xf32>
    %345 = arith.subf %344, %343 : vector<8x128xf32>
    %346 = arith.mulf %345, %341 : vector<8x128xf32>
    %cst_132 = arith.constant 3.000000e+00 : f32
    %347 = vector.broadcast %cst_132 : f32 to vector<8x128xf32>
    %348 = arith.mulf %347, %341 : vector<8x128xf32>
    %349 = arith.mulf %348, %346 : vector<8x128xf32>
    %350 = arith.subf %349, %344 : vector<8x128xf32>
    %cst_133 = arith.constant 13.101758 : f32
    %351 = vector.broadcast %cst_133 : f32 to vector<8x128xf32>
    %352 = arith.mulf %350, %351 : vector<8x128xf32>
    %353 = arith.mulf %28, %352 : vector<8x128xf32>
    %c13 = arith.constant 13 : index
    %c0_134 = arith.constant 0 : index
    %c0_135 = arith.constant 0 : index
    %354 = vector.load %arg2[%c13, %c0_134, %c0_135] : memref<54x8x128xf32, #tpu.memory_space<vmem>>, vector<1x8x128xf32>
    %355 = vector.shape_cast %354 : vector<1x8x128xf32> to vector<8x128xf32>
    %356 = vector.shape_cast %353 : vector<8x128xf32> to vector<1x8x128xf32>
    tpu.vector_store %arg2[%c13, %c0_134, %c0_135], %356 {strides = array<i32>} : memref<54x8x128xf32, #tpu.memory_space<vmem>>, vector<1x8x128xf32>,
    %357 = arith.mulf %38, %352 : vector<8x128xf32>
    %c31 = arith.constant 31 : index
    %c0_136 = arith.constant 0 : index
    %c0_137 = arith.constant 0 : index
    %358 = vector.load %arg2[%c31, %c0_136, %c0_137] : memref<54x8x128xf32, #tpu.memory_space<vmem>>, vector<1x8x128xf32>
    %359 = vector.shape_cast %358 : vector<1x8x128xf32> to vector<8x128xf32>
    %360 = vector.shape_cast %357 : vector<8x128xf32> to vector<1x8x128xf32>
    tpu.vector_store %arg2[%c31, %c0_136, %c0_137], %360 {strides = array<i32>} : memref<54x8x128xf32, #tpu.memory_space<vmem>>, vector<1x8x128xf32>,
    %361 = arith.mulf %39, %352 : vector<8x128xf32>
    %c49 = arith.constant 49 : index
    %c0_138 = arith.constant 0 : index
    %c0_139 = arith.constant 0 : index
    %362 = vector.load %arg2[%c49, %c0_138, %c0_139] : memref<54x8x128xf32, #tpu.memory_space<vmem>>, vector<1x8x128xf32>
    %363 = vector.shape_cast %362 : vector<1x8x128xf32> to vector<8x128xf32>
    %364 = vector.shape_cast %361 : vector<8x128xf32> to vector<1x8x128xf32>
    tpu.vector_store %arg2[%c49, %c0_138, %c0_139], %364 {strides = array<i32>} : memref<54x8x128xf32, #tpu.memory_space<vmem>>, vector<1x8x128xf32>,
    %cst_140 = arith.constant 12.3229408 : f32
    %365 = vector.broadcast %cst_140 : f32 to vector<8x128xf32>
    %366 = arith.mulf %3, %365 : vector<8x128xf32>
    %cst_141 = arith.constant 0.0811494589 : f32
    %367 = vector.broadcast %cst_141 : f32 to vector<8x128xf32>
    %368 = arith.mulf %12, %367 : vector<8x128xf32>
    %369 = math.sin %366 : vector<8x128xf32>
    %370 = math.cos %366 : vector<8x128xf32>
    %371 = arith.mulf %369, %368 : vector<8x128xf32>
    %372 = arith.subf %371, %370 : vector<8x128xf32>
    %373 = arith.mulf %372, %368 : vector<8x128xf32>
    %cst_142 = arith.constant 3.000000e+00 : f32
    %374 = vector.broadcast %cst_142 : f32 to vector<8x128xf32>
    %375 = arith.mulf %374, %368 : vector<8x128xf32>
    %376 = arith.mulf %375, %373 : vector<8x128xf32>
    %377 = arith.subf %376, %371 : vector<8x128xf32>
    %cst_143 = arith.constant 17.6019402 : f32
    %378 = vector.broadcast %cst_143 : f32 to vector<8x128xf32>
    %379 = arith.mulf %377, %378 : vector<8x128xf32>
    %380 = arith.mulf %28, %379 : vector<8x128xf32>
    %c14 = arith.constant 14 : index
    %c0_144 = arith.constant 0 : index
    %c0_145 = arith.constant 0 : index
    %381 = vector.load %arg2[%c14, %c0_144, %c0_145] : memref<54x8x128xf32, #tpu.memory_space<vmem>>, vector<1x8x128xf32>
    %382 = vector.shape_cast %381 : vector<1x8x128xf32> to vector<8x128xf32>
    %383 = vector.shape_cast %380 : vector<8x128xf32> to vector<1x8x128xf32>
    tpu.vector_store %arg2[%c14, %c0_144, %c0_145], %383 {strides = array<i32>} : memref<54x8x128xf32, #tpu.memory_space<vmem>>, vector<1x8x128xf32>,
    %384 = arith.mulf %38, %379 : vector<8x128xf32>
    %c32 = arith.constant 32 : index
    %c0_146 = arith.constant 0 : index
    %c0_147 = arith.constant 0 : index
    %385 = vector.load %arg2[%c32, %c0_146, %c0_147] : memref<54x8x128xf32, #tpu.memory_space<vmem>>, vector<1x8x128xf32>
    %386 = vector.shape_cast %385 : vector<1x8x128xf32> to vector<8x128xf32>
    %387 = vector.shape_cast %384 : vector<8x128xf32> to vector<1x8x128xf32>
    tpu.vector_store %arg2[%c32, %c0_146, %c0_147], %387 {strides = array<i32>} : memref<54x8x128xf32, #tpu.memory_space<vmem>>, vector<1x8x128xf32>,
    %388 = arith.mulf %39, %379 : vector<8x128xf32>
    %c50 = arith.constant 50 : index
    %c0_148 = arith.constant 0 : index
    %c0_149 = arith.constant 0 : index
    %389 = vector.load %arg2[%c50, %c0_148, %c0_149] : memref<54x8x128xf32, #tpu.memory_space<vmem>>, vector<1x8x128xf32>
    %390 = vector.shape_cast %389 : vector<1x8x128xf32> to vector<8x128xf32>
    %391 = vector.shape_cast %388 : vector<8x128xf32> to vector<1x8x128xf32>
    tpu.vector_store %arg2[%c50, %c0_148, %c0_149], %391 {strides = array<i32>} : memref<54x8x128xf32, #tpu.memory_space<vmem>>, vector<1x8x128xf32>,
    %cst_150 = arith.constant 15.5146027 : f32
    %392 = vector.broadcast %cst_150 : f32 to vector<8x128xf32>
    %393 = arith.mulf %3, %392 : vector<8x128xf32>
    %cst_151 = arith.constant 0.0644554049 : f32
    %394 = vector.broadcast %cst_151 : f32 to vector<8x128xf32>
    %395 = arith.mulf %12, %394 : vector<8x128xf32>
    %396 = math.sin %393 : vector<8x128xf32>
    %397 = math.cos %393 : vector<8x128xf32>
    %398 = arith.mulf %396, %395 : vector<8x128xf32>
    %399 = arith.subf %398, %397 : vector<8x128xf32>
    %400 = arith.mulf %399, %395 : vector<8x128xf32>
    %cst_152 = arith.constant 3.000000e+00 : f32
    %401 = vector.broadcast %cst_152 : f32 to vector<8x128xf32>
    %402 = arith.mulf %401, %395 : vector<8x128xf32>
    %403 = arith.mulf %402, %400 : vector<8x128xf32>
    %404 = arith.subf %403, %398 : vector<8x128xf32>
    %cst_153 = arith.constant 22.0789623 : f32
    %405 = vector.broadcast %cst_153 : f32 to vector<8x128xf32>
    %406 = arith.mulf %404, %405 : vector<8x128xf32>
    %407 = arith.mulf %28, %406 : vector<8x128xf32>
    %c15 = arith.constant 15 : index
    %c0_154 = arith.constant 0 : index
    %c0_155 = arith.constant 0 : index
    %408 = vector.load %arg2[%c15, %c0_154, %c0_155] : memref<54x8x128xf32, #tpu.memory_space<vmem>>, vector<1x8x128xf32>
    %409 = vector.shape_cast %408 : vector<1x8x128xf32> to vector<8x128xf32>
    %410 = vector.shape_cast %407 : vector<8x128xf32> to vector<1x8x128xf32>
    tpu.vector_store %arg2[%c15, %c0_154, %c0_155], %410 {strides = array<i32>} : memref<54x8x128xf32, #tpu.memory_space<vmem>>, vector<1x8x128xf32>,
    %411 = arith.mulf %38, %406 : vector<8x128xf32>
    %c33 = arith.constant 33 : index
    %c0_156 = arith.constant 0 : index
    %c0_157 = arith.constant 0 : index
    %412 = vector.load %arg2[%c33, %c0_156, %c0_157] : memref<54x8x128xf32, #tpu.memory_space<vmem>>, vector<1x8x128xf32>
    %413 = vector.shape_cast %412 : vector<1x8x128xf32> to vector<8x128xf32>
    %414 = vector.shape_cast %411 : vector<8x128xf32> to vector<1x8x128xf32>
    tpu.vector_store %arg2[%c33, %c0_156, %c0_157], %414 {strides = array<i32>} : memref<54x8x128xf32, #tpu.memory_space<vmem>>, vector<1x8x128xf32>,
    %415 = arith.mulf %39, %406 : vector<8x128xf32>
    %c51 = arith.constant 51 : index
    %c0_158 = arith.constant 0 : index
    %c0_159 = arith.constant 0 : index
    %416 = vector.load %arg2[%c51, %c0_158, %c0_159] : memref<54x8x128xf32, #tpu.memory_space<vmem>>, vector<1x8x128xf32>
    %417 = vector.shape_cast %416 : vector<1x8x128xf32> to vector<8x128xf32>
    %418 = vector.shape_cast %415 : vector<8x128xf32> to vector<1x8x128xf32>
    tpu.vector_store %arg2[%c51, %c0_158, %c0_159], %418 {strides = array<i32>} : memref<54x8x128xf32, #tpu.memory_space<vmem>>, vector<1x8x128xf32>,
    %cst_160 = arith.constant 18.6890354 : f32
    %419 = vector.broadcast %cst_160 : f32 to vector<8x128xf32>
    %420 = arith.mulf %3, %419 : vector<8x128xf32>
    %cst_161 = arith.constant 0.0535073057 : f32
    %421 = vector.broadcast %cst_161 : f32 to vector<8x128xf32>
    %422 = arith.mulf %12, %421 : vector<8x128xf32>
    %423 = math.sin %420 : vector<8x128xf32>
    %424 = math.cos %420 : vector<8x128xf32>
    %425 = arith.mulf %423, %422 : vector<8x128xf32>
    %426 = arith.subf %425, %424 : vector<8x128xf32>
    %427 = arith.mulf %426, %422 : vector<8x128xf32>
    %cst_162 = arith.constant 3.000000e+00 : f32
    %428 = vector.broadcast %cst_162 : f32 to vector<8x128xf32>
    %429 = arith.mulf %428, %422 : vector<8x128xf32>
    %430 = arith.mulf %429, %427 : vector<8x128xf32>
    %431 = arith.subf %430, %425 : vector<8x128xf32>
    %cst_163 = arith.constant 26.5445232 : f32
    %432 = vector.broadcast %cst_163 : f32 to vector<8x128xf32>
    %433 = arith.mulf %431, %432 : vector<8x128xf32>
    %434 = arith.mulf %28, %433 : vector<8x128xf32>
    %c16 = arith.constant 16 : index
    %c0_164 = arith.constant 0 : index
    %c0_165 = arith.constant 0 : index
    %435 = vector.load %arg2[%c16, %c0_164, %c0_165] : memref<54x8x128xf32, #tpu.memory_space<vmem>>, vector<1x8x128xf32>
    %436 = vector.shape_cast %435 : vector<1x8x128xf32> to vector<8x128xf32>
    %437 = vector.shape_cast %434 : vector<8x128xf32> to vector<1x8x128xf32>
    tpu.vector_store %arg2[%c16, %c0_164, %c0_165], %437 {strides = array<i32>} : memref<54x8x128xf32, #tpu.memory_space<vmem>>, vector<1x8x128xf32>,
    %438 = arith.mulf %38, %433 : vector<8x128xf32>
    %c34 = arith.constant 34 : index
    %c0_166 = arith.constant 0 : index
    %c0_167 = arith.constant 0 : index
    %439 = vector.load %arg2[%c34, %c0_166, %c0_167] : memref<54x8x128xf32, #tpu.memory_space<vmem>>, vector<1x8x128xf32>
    %440 = vector.shape_cast %439 : vector<1x8x128xf32> to vector<8x128xf32>
    %441 = vector.shape_cast %438 : vector<8x128xf32> to vector<1x8x128xf32>
    tpu.vector_store %arg2[%c34, %c0_166, %c0_167], %441 {strides = array<i32>} : memref<54x8x128xf32, #tpu.memory_space<vmem>>, vector<1x8x128xf32>,
    %442 = arith.mulf %39, %433 : vector<8x128xf32>
    %c52 = arith.constant 52 : index
    %c0_168 = arith.constant 0 : index
    %c0_169 = arith.constant 0 : index
    %443 = vector.load %arg2[%c52, %c0_168, %c0_169] : memref<54x8x128xf32, #tpu.memory_space<vmem>>, vector<1x8x128xf32>
    %444 = vector.shape_cast %443 : vector<1x8x128xf32> to vector<8x128xf32>
    %445 = vector.shape_cast %442 : vector<8x128xf32> to vector<1x8x128xf32>
    tpu.vector_store %arg2[%c52, %c0_168, %c0_169], %445 {strides = array<i32>} : memref<54x8x128xf32, #tpu.memory_space<vmem>>, vector<1x8x128xf32>,
    %cst_170 = arith.constant 21.8538742 : f32
    %446 = vector.broadcast %cst_170 : f32 to vector<8x128xf32>
    %447 = arith.mulf %3, %446 : vector<8x128xf32>
    %cst_171 = arith.constant 0.0457584783 : f32
    %448 = vector.broadcast %cst_171 : f32 to vector<8x128xf32>
    %449 = arith.mulf %12, %448 : vector<8x128xf32>
    %450 = math.sin %447 : vector<8x128xf32>
    %451 = math.cos %447 : vector<8x128xf32>
    %452 = arith.mulf %450, %449 : vector<8x128xf32>
    %453 = arith.subf %452, %451 : vector<8x128xf32>
    %454 = arith.mulf %453, %449 : vector<8x128xf32>
    %cst_172 = arith.constant 3.000000e+00 : f32
    %455 = vector.broadcast %cst_172 : f32 to vector<8x128xf32>
    %456 = arith.mulf %455, %449 : vector<8x128xf32>
    %457 = arith.mulf %456, %454 : vector<8x128xf32>
    %458 = arith.subf %457, %452 : vector<8x128xf32>
    %cst_173 = arith.constant 31.0035686 : f32
    %459 = vector.broadcast %cst_173 : f32 to vector<8x128xf32>
    %460 = arith.mulf %458, %459 : vector<8x128xf32>
    %461 = arith.mulf %28, %460 : vector<8x128xf32>
    %c17 = arith.constant 17 : index
    %c0_174 = arith.constant 0 : index
    %c0_175 = arith.constant 0 : index
    %462 = vector.load %arg2[%c17, %c0_174, %c0_175] : memref<54x8x128xf32, #tpu.memory_space<vmem>>, vector<1x8x128xf32>
    %463 = vector.shape_cast %462 : vector<1x8x128xf32> to vector<8x128xf32>
    %464 = vector.shape_cast %461 : vector<8x128xf32> to vector<1x8x128xf32>
    tpu.vector_store %arg2[%c17, %c0_174, %c0_175], %464 {strides = array<i32>} : memref<54x8x128xf32, #tpu.memory_space<vmem>>, vector<1x8x128xf32>,
    %465 = arith.mulf %38, %460 : vector<8x128xf32>
    %c35 = arith.constant 35 : index
    %c0_176 = arith.constant 0 : index
    %c0_177 = arith.constant 0 : index
    %466 = vector.load %arg2[%c35, %c0_176, %c0_177] : memref<54x8x128xf32, #tpu.memory_space<vmem>>, vector<1x8x128xf32>
    %467 = vector.shape_cast %466 : vector<1x8x128xf32> to vector<8x128xf32>
    %468 = vector.shape_cast %465 : vector<8x128xf32> to vector<1x8x128xf32>
    tpu.vector_store %arg2[%c35, %c0_176, %c0_177], %468 {strides = array<i32>} : memref<54x8x128xf32, #tpu.memory_space<vmem>>, vector<1x8x128xf32>,
    %469 = arith.mulf %39, %460 : vector<8x128xf32>
    %c53 = arith.constant 53 : index
    %c0_178 = arith.constant 0 : index
    %c0_179 = arith.constant 0 : index
    %470 = vector.load %arg2[%c53, %c0_178, %c0_179] : memref<54x8x128xf32, #tpu.memory_space<vmem>>, vector<1x8x128xf32>
    %471 = vector.shape_cast %470 : vector<1x8x128xf32> to vector<8x128xf32>
    %472 = vector.shape_cast %469 : vector<8x128xf32> to vector<1x8x128xf32>
    tpu.vector_store %arg2[%c53, %c0_178, %c0_179], %472 {strides = array<i32>} : memref<54x8x128xf32, #tpu.memory_space<vmem>>, vector<1x8x128xf32>,
    return
  }
  func.func @transform_0(%arg0: i32) -> (i32, i32, i32) {
    %c0_i32 = arith.constant 0 : i32
    %c0_i32_0 = arith.constant 0 : i32
    %c0_i32_1 = arith.constant 0 : i32
    return %c0_i32, %arg0, %c0_i32_0 : i32, i32, i32
  }
  func.func @transform_1(%arg0: i32) -> (i32, i32, i32) {
    %c0_i32 = arith.constant 0 : i32
    %c0_i32_0 = arith.constant 0 : i32
    %c0_i32_1 = arith.constant 0 : i32
    return %c0_i32, %arg0, %c0_i32_0 : i32, i32, i32
  }
}

</mosaic_0001>

<llo_original>
// kernel: a_call__.1
$region0: #{a_call__.1}
  #allocation0 [shape = 'u32[]', space=smem, size = 0x4, offset = 0x4, fixed_abs, tag = 'smem constant byte address 0x4 - core index']
  #allocation1 [shape = 'u32[144,128]{1,0:T(1,128)}', space=vmem, size = 0x12000, scoped, tag = 'internal scratch']
  %s0 = inlined_call_operand.vmem [shape: f32[3,8,128], index: 0, kind: input, shape index: {}]
  %s1 = inlined_call_operand.vmem [shape: f32[54,8,128], index: 1, kind: output, shape index: {}]
  %s2 = sld [smem:[#allocation0]]
  $region14: #{a_call__.1} parent=0
    _
  %s4 = ssub.s32 1, %s2
  %s5 = scalar_select 0, %s4, %s2
  // Predicated region
  $region2: #{a_call__.1} parent=0 // pred_check
    _
  $region3: #{a_call__.1} parent=0 // pred_check_branch
    %7 = sbr.rel (0) target = $region5
  $region4: #{a_call__.1} parent=0 // pred_region
    _
  $region5: #{a_call__.1} parent=0 // pred_fallthru
    _
  %v8 = vld [vmem:[%s0] sm:$0xff]
  %v9 = vmul.f32 %v8, 0.2
  %s10 = scalar_lea.vmem %s0, 8
  %v11 = vld [vmem:[%s10] sm:$0xff]
  %s12 = scalar_lea.vmem %s0, 16
  %v13 = vld [vmem:[%s12] sm:$0xff]
  %v14 = vrcp.pop %v9
  %v15 = vmul.f32 %v9, %v14
  %v16 = vsub.f32 2.0, %v15
  %v17 = vmul.f32 %v14, %v16
  %v18 = vand.u32 2147483647, %v11
  %vm19 = vcmp.le.f32.partialorder %v18, 0.7853982
  %vm20 = vcmp.lt.s32.totalorder %v11, 0
  %v21 = vand.u32 %v11, 2139095040
  %v22 = vshrl.u32 %v21, 23
  %v23 = vsub.s32 %v22, 127
  %v24 = vand.u32 2147483647, %v11
  %v25 = vand.u32 %v24, 8388607
  %v26 = vor.u32 %v25, 8388608
  %v27 = vsub.s32 0, %v26
  %v28 = vadd.s32 %v23, 1
  %vm29 = vcmp.gt.s32.totalorder %v28, 0
  %v30 = vsel %vm29, %v28, 0
  %v31 = vshrl.u32 %v30, 5
  %v32 = vand.u32 %v30, 31
  %v33 = vsub.s32 32, %v32
  %v34 = vshrl.u32 683565275, %v33
  %v35 = vshll.u32 683565275, %v32
  %v36 = vshrl.u32 2475754826, %v33
  %v37 = vor.u32 %v35, %v36
  %v38 = vshll.u32 2475754826, %v32
  %v39 = vshrl.u32 2131351028, %v33
  %v40 = vor.u32 %v38, %v39
  %v41 = vshll.u32 2131351028, %v32
  %v42 = vshrl.u32 2102212464, %v33
  %v43 = vor.u32 %v41, %v42
  %v44 = vshll.u32 2102212464, %v32
  %v45 = vshrl.u32 920167782, %v33
  %v46 = vor.u32 %v44, %v45
  %v47 = vshll.u32 920167782, %v32
  %v48 = vshrl.u32 1326507024, %v33
  %v49 = vor.u32 %v47, %v48
  %vm50 = vcmp.lt.s32.totalorder %v31, 1
  %vm51 = vcmp.lt.s32.totalorder %v31, 2
  %vm52 = vcmp.lt.s32.totalorder %v31, 3
  %vm53 = vcmp.lt.s32.totalorder %v31, 4
  %v54 = vsel %vm50, %v34, %v37
  %v55 = vsel %vm53, %v43, 2102212464
  %v56 = vsel %vm52, %v40, %v55
  %v57 = vsel %vm51, %v54, %v56
  %v58 = vsel %vm50, %v37, %v40
  %v59 = vsel %vm53, %v46, 920167782
  %v60 = vsel %vm52, %v43, %v59
  %v61 = vsel %vm51, %v58, %v60
  %v62 = vsel %vm50, %v40, %v43
  %v63 = vsel %vm53, %v49, 1326507024
  %v64 = vsel %vm52, %v46, %v63
  %v65 = vsel %vm51, %v62, %v64
  %v66 = vshll.u32 %v26, 8
  %v67 = vmul.u32.u64.compose %v66, %v65
  %v68 = vextract.low.u32 %v67
  %v69 = vextract.high.u32 %v67
  %v70 = vmul.u32.u64.compose %v66, %v61
  %v71 = vextract.low.u32 %v70
  %v72 = vextract.high.u32 %v70
  %v73 = vmul.u32 %v66, %v57
  %v74 = vadd.s32 %v69, %v71
  %vm75 = vc.u32 %v69, %v71
  %v76 = vadd.s32 %v72, 1
  %v77 = vsel %vm75, %v76, %v72
  %v78 = vadd.s32 %v73, %v77
  %v79 = vadd.s32 %v78, 536870912
  %v80 = vshrl.u32 %v79, 30
  %v81 = vshll.u32 %v80, 30
  %v82 = vsub.s32 %v78, %v81
  %vm83 = vcmp.lt.s32.totalorder %v82, 0
  %v84 = vsub.s32 0, %v82
  %v85 = vsel %vm83, %v84, %v82
  %v86 = vclz %v85
  %v87 = vsub.s32 %v86, 2
  %vm88 = vcmp.gt.s32.totalorder 0, %v87
  %v89 = vsel %vm88, 0, %v87
  %v90 = vsub.s32 32, %v89
  %v91 = vshll.u32 %v82, %v89
  %v92 = vshrl.u32 %v74, %v90
  %v93 = vor.u32 %v91, %v92
  %v94 = vsub.s32 4294967266, %v89
  %v95 = vadd.s32 %v94, 127
  %v96 = vshll.u32 %v95, 23
  %v97 = vor.u32 4788187, %v96
  %v98 = vand.u32 2147483647, %v97
  %v100 = vcvt.s32.f32 %v93
  %v101 = vmul.f32 %v100, %v98
  %v102 = vxor.u32 %v101, 2147483648
  %v103 = vsel %vm20, %v102, %v101
  %v104 = vsub.s32 4, %v80
  %v105 = vsel %vm20, %v104, %v80
  %v106 = vsel %vm19, %v11, %v103
  %v107 = vsel %vm19, 0, %v105
  %v108 = vcosq.f32.pop %v106
  %v109 = vsinq.f32.pop %v106
  %vm110 = vweird.f32 %v11
  %v111 = vand.u32 %v107, 3
  %vm112 = vcmp.lt.s32.totalorder %v111, 2
  %vm113 = vcmp.eq.s32.totalorder %v111, 0
  %v114 = vxor.u32 %v109, 2147483648
  %v115 = vsel %vm113, %v108, %v114
  %vm116 = vcmp.eq.s32.totalorder %v111, 2
  %v117 = vxor.u32 %v108, 2147483648
  %v118 = vsel %vm116, %v117, %v109
  %v119 = vsel %vm112, %v115, %v118
  %v120 = vsel %vm110, nan, %v119
  %v121 = vand.u32 2147483647, %v11
  %vm122 = vcmp.le.f32.partialorder %v121, 0.7853982
  %vm123 = vcmp.lt.s32.totalorder %v11, 0
  %v124 = vand.u32 %v11, 2139095040
  %v125 = vshrl.u32 %v124, 23
  %v126 = vsub.s32 %v125, 127
  %v127 = vand.u32 2147483647, %v11
  %v128 = vand.u32 %v127, 8388607
  %v129 = vor.u32 %v128, 8388608
  %v130 = vsub.s32 0, %v129
  %v131 = vadd.s32 %v126, 1
  %vm132 = vcmp.gt.s32.totalorder %v131, 0
  %v133 = vsel %vm132, %v131, 0
  %v134 = vshrl.u32 %v133, 5
  %v135 = vand.u32 %v133, 31
  %v136 = vsub.s32 32, %v135
  %v137 = vshrl.u32 683565275, %v136
  %v138 = vshll.u32 683565275, %v135
  %v139 = vshrl.u32 2475754826, %v136
  %v140 = vor.u32 %v138, %v139
  %v141 = vshll.u32 2475754826, %v135
  %v142 = vshrl.u32 2131351028, %v136
  %v143 = vor.u32 %v141, %v142
  %v144 = vshll.u32 2131351028, %v135
  %v145 = vshrl.u32 2102212464, %v136
  %v146 = vor.u32 %v144, %v145
  %v147 = vshll.u32 2102212464, %v135
  %v148 = vshrl.u32 920167782, %v136
  %v149 = vor.u32 %v147, %v148
  %v150 = vshll.u32 920167782, %v135
  %v151 = vshrl.u32 1326507024, %v136
  %v152 = vor.u32 %v150, %v151
  %vm153 = vcmp.lt.s32.totalorder %v134, 1
  %vm154 = vcmp.lt.s32.totalorder %v134, 2
  %vm155 = vcmp.lt.s32.totalorder %v134, 3
  %vm156 = vcmp.lt.s32.totalorder %v134, 4
  %v157 = vsel %vm153, %v137, %v140
  %v158 = vsel %vm156, %v146, 2102212464
  %v159 = vsel %vm155, %v143, %v158
  %v160 = vsel %vm154, %v157, %v159
  %v161 = vsel %vm153, %v140, %v143
  %v162 = vsel %vm156, %v149, 920167782
  %v163 = vsel %vm155, %v146, %v162
  %v164 = vsel %vm154, %v161, %v163
  %v165 = vsel %vm153, %v143, %v146
  %v166 = vsel %vm156, %v152, 1326507024
  %v167 = vsel %vm155, %v149, %v166
  %v168 = vsel %vm154, %v165, %v167
  %v169 = vshll.u32 %v129, 8
  %v170 = vmul.u32.u64.compose %v169, %v168
  %v171 = vextract.low.u32 %v170
  %v172 = vextract.high.u32 %v170
  %v173 = vmul.u32.u64.compose %v169, %v164
  %v174 = vextract.low.u32 %v173
  %v175 = vextract.high.u32 %v173
  %v176 = vmul.u32 %v169, %v160
  %v177 = vadd.s32 %v172, %v174
  %vm178 = vc.u32 %v172, %v174
  %v179 = vadd.s32 %v175, 1
  %v180 = vsel %vm178, %v179, %v175
  %v181 = vadd.s32 %v176, %v180
  %v182 = vadd.s32 %v181, 536870912
  %v183 = vshrl.u32 %v182, 30
  %v184 = vshll.u32 %v183, 30
  %v185 = vsub.s32 %v181, %v184
  %vm186 = vcmp.lt.s32.totalorder %v185, 0
  %v187 = vsub.s32 0, %v185
  %v188 = vsel %vm186, %v187, %v185
  %v189 = vclz %v188
  %v190 = vsub.s32 %v189, 2
  %vm191 = vcmp.gt.s32.totalorder 0, %v190
  %v192 = vsel %vm191, 0, %v190
  %v193 = vsub.s32 32, %v192
  %v194 = vshll.u32 %v185, %v192
  %v195 = vshrl.u32 %v177, %v193
  %v196 = vor.u32 %v194, %v195
  %v197 = vsub.s32 4294967266, %v192
  %v198 = vadd.s32 %v197, 127
  %v199 = vshll.u32 %v198, 23
  %v200 = vor.u32 4788187, %v199
  %v201 = vand.u32 2147483647, %v200
  %v203 = vcvt.s32.f32 %v196
  %v204 = vmul.f32 %v203, %v201
  %v205 = vxor.u32 %v204, 2147483648
  %v206 = vsel %vm123, %v205, %v204
  %v207 = vsub.s32 4, %v183
  %v208 = vsel %vm123, %v207, %v183
  %v209 = vsel %vm122, %v11, %v206
  %v210 = vsel %vm122, 0, %v208
  %v211 = vcosq.f32.pop %v209
  %v212 = vsinq.f32.pop %v209
  %vm213 = vweird.f32 %v11
  %v214 = vadd.s32 %v210, 3
  %v215 = vand.u32 %v214, 3
  %vm216 = vcmp.lt.s32.totalorder %v215, 2
  %vm217 = vcmp.eq.s32.totalorder %v215, 0
  %v218 = vxor.u32 %v212, 2147483648
  %v219 = vsel %vm217, %v211, %v218
  %vm220 = vcmp.eq.s32.totalorder %v215, 2
  %v221 = vxor.u32 %v211, 2147483648
  %v222 = vsel %vm220, %v221, %v212
  %v223 = vsel %vm216, %v219, %v222
  %v224 = vsel %vm213, nan, %v223
  %v225 = vand.u32 2147483647, %v13
  %vm226 = vcmp.le.f32.partialorder %v225, 0.7853982
  %vm227 = vcmp.lt.s32.totalorder %v13, 0
  %v228 = vand.u32 %v13, 2139095040
  %v229 = vshrl.u32 %v228, 23
  %v230 = vsub.s32 %v229, 127
  %v231 = vand.u32 2147483647, %v13
  %v232 = vand.u32 %v231, 8388607
  %v233 = vor.u32 %v232, 8388608
  %v234 = vsub.s32 0, %v233
  %v235 = vadd.s32 %v230, 1
  %vm236 = vcmp.gt.s32.totalorder %v235, 0
  %v237 = vsel %vm236, %v235, 0
  %v238 = vshrl.u32 %v237, 5
  %v239 = vand.u32 %v237, 31
  %v240 = vsub.s32 32, %v239
  %v241 = vshrl.u32 683565275, %v240
  %v242 = vshll.u32 683565275, %v239
  %v243 = vshrl.u32 2475754826, %v240
  %v244 = vor.u32 %v242, %v243
  %v245 = vshll.u32 2475754826, %v239
  %v246 = vshrl.u32 2131351028, %v240
  %v247 = vor.u32 %v245, %v246
  %v248 = vshll.u32 2131351028, %v239
  %v249 = vshrl.u32 2102212464, %v240
  %v250 = vor.u32 %v248, %v249
  %v251 = vshll.u32 2102212464, %v239
  %v252 = vshrl.u32 920167782, %v240
  %v253 = vor.u32 %v251, %v252
  %v254 = vshll.u32 920167782, %v239
  %v255 = vshrl.u32 1326507024, %v240
  %v256 = vor.u32 %v254, %v255
  %vm257 = vcmp.lt.s32.totalorder %v238, 1
  %vm258 = vcmp.lt.s32.totalorder %v238, 2
  %vm259 = vcmp.lt.s32.totalorder %v238, 3
  %vm260 = vcmp.lt.s32.totalorder %v238, 4
  %v261 = vsel %vm257, %v241, %v244
  %v262 = vsel %vm260, %v250, 2102212464
  %v263 = vsel %vm259, %v247, %v262
  %v264 = vsel %vm258, %v261, %v263
  %v265 = vsel %vm257, %v244, %v247
  %v266 = vsel %vm260, %v253, 920167782
  %v267 = vsel %vm259, %v250, %v266
  %v268 = vsel %vm258, %v265, %v267
  %v269 = vsel %vm257, %v247, %v250
  %v270 = vsel %vm260, %v256, 1326507024
  %v271 = vsel %vm259, %v253, %v270
  %v272 = vsel %vm258, %v269, %v271
  %v273 = vshll.u32 %v233, 8
  %v274 = vmul.u32.u64.compose %v273, %v272
  %v275 = vextract.low.u32 %v274
  %v276 = vextract.high.u32 %v274
  %v277 = vmul.u32.u64.compose %v273, %v268
  %v278 = vextract.low.u32 %v277
  %v279 = vextract.high.u32 %v277
  %v280 = vmul.u32 %v273, %v264
  %v281 = vadd.s32 %v276, %v278
  %vm282 = vc.u32 %v276, %v278
  %v283 = vadd.s32 %v279, 1
  %v284 = vsel %vm282, %v283, %v279
  %v285 = vadd.s32 %v280, %v284
  %v286 = vadd.s32 %v285, 536870912
  %v287 = vshrl.u32 %v286, 30
  %v288 = vshll.u32 %v287, 30
  %v289 = vsub.s32 %v285, %v288
  %vm290 = vcmp.lt.s32.totalorder %v289, 0
  %v291 = vsub.s32 0, %v289
  %v292 = vsel %vm290, %v291, %v289
  %v293 = vclz %v292
  %v294 = vsub.s32 %v293, 2
  %vm295 = vcmp.gt.s32.totalorder 0, %v294
  %v296 = vsel %vm295, 0, %v294
  %v297 = vsub.s32 32, %v296
  %v298 = vshll.u32 %v289, %v296
  %v299 = vshrl.u32 %v281, %v297
  %v300 = vor.u32 %v298, %v299
  %v301 = vsub.s32 4294967266, %v296
  %v302 = vadd.s32 %v301, 127
  %v303 = vshll.u32 %v302, 23
  %v304 = vor.u32 4788187, %v303
  %v305 = vand.u32 2147483647, %v304
  %v307 = vcvt.s32.f32 %v300
  %v308 = vmul.f32 %v307, %v305
  %v309 = vxor.u32 %v308, 2147483648
  %v310 = vsel %vm227, %v309, %v308
  %v311 = vsub.s32 4, %v287
  %v312 = vsel %vm227, %v311, %v287
  %v313 = vsel %vm226, %v13, %v310
  %v314 = vsel %vm226, 0, %v312
  %v315 = vcosq.f32.pop %v313
  %v316 = vsinq.f32.pop %v313
  %vm317 = vweird.f32 %v13
  %v318 = vand.u32 %v314, 3
  %vm319 = vcmp.lt.s32.totalorder %v318, 2
  %vm320 = vcmp.eq.s32.totalorder %v318, 0
  %v321 = vxor.u32 %v316, 2147483648
  %v322 = vsel %vm320, %v315, %v321
  %vm323 = vcmp.eq.s32.totalorder %v318, 2
  %v324 = vxor.u32 %v315, 2147483648
  %v325 = vsel %vm323, %v324, %v316
  %v326 = vsel %vm319, %v322, %v325
  %v327 = vsel %vm317, nan, %v326
  %v328 = vand.u32 2147483647, %v13
  %vm329 = vcmp.le.f32.partialorder %v328, 0.7853982
  %vm330 = vcmp.lt.s32.totalorder %v13, 0
  %v331 = vand.u32 %v13, 2139095040
  %v332 = vshrl.u32 %v331, 23
  %v333 = vsub.s32 %v332, 127
  %v334 = vand.u32 2147483647, %v13
  %v335 = vand.u32 %v334, 8388607
  %v336 = vor.u32 %v335, 8388608
  %v337 = vsub.s32 0, %v336
  %v338 = vadd.s32 %v333, 1
  %vm339 = vcmp.gt.s32.totalorder %v338, 0
  %v340 = vsel %vm339, %v338, 0
  %v341 = vshrl.u32 %v340, 5
  %v342 = vand.u32 %v340, 31
  %v343 = vsub.s32 32, %v342
  %v344 = vshrl.u32 683565275, %v343
  %v345 = vshll.u32 683565275, %v342
  %v346 = vshrl.u32 2475754826, %v343
  %v347 = vor.u32 %v345, %v346
  %v348 = vshll.u32 2475754826, %v342
  %v349 = vshrl.u32 2131351028, %v343
  %v350 = vor.u32 %v348, %v349
  %v351 = vshll.u32 2131351028, %v342
  %v352 = vshrl.u32 2102212464, %v343
  %v353 = vor.u32 %v351, %v352
  %v354 = vshll.u32 2102212464, %v342
  %v355 = vshrl.u32 920167782, %v343
  %v356 = vor.u32 %v354, %v355
  %v357 = vshll.u32 920167782, %v342
  %v358 = vshrl.u32 1326507024, %v343
  %v359 = vor.u32 %v357, %v358
  %vm360 = vcmp.lt.s32.totalorder %v341, 1
  %vm361 = vcmp.lt.s32.totalorder %v341, 2
  %vm362 = vcmp.lt.s32.totalorder %v341, 3
  %vm363 = vcmp.lt.s32.totalorder %v341, 4
  %v364 = vsel %vm360, %v344, %v347
  %v365 = vsel %vm363, %v353, 2102212464
  %v366 = vsel %vm362, %v350, %v365
  %v367 = vsel %vm361, %v364, %v366
  %v368 = vsel %vm360, %v347, %v350
  %v369 = vsel %vm363, %v356, 920167782
  %v370 = vsel %vm362, %v353, %v369
  %v371 = vsel %vm361, %v368, %v370
  %v372 = vsel %vm360, %v350, %v353
  %v373 = vsel %vm363, %v359, 1326507024
  %v374 = vsel %vm362, %v356, %v373
  %v375 = vsel %vm361, %v372, %v374
  %v376 = vshll.u32 %v336, 8
  %v377 = vmul.u32.u64.compose %v376, %v375
  %v378 = vextract.low.u32 %v377
  %v379 = vextract.high.u32 %v377
  %v380 = vmul.u32.u64.compose %v376, %v371
  %v381 = vextract.low.u32 %v380
  %v382 = vextract.high.u32 %v380
  %v383 = vmul.u32 %v376, %v367
  %v384 = vadd.s32 %v379, %v381
  %vm385 = vc.u32 %v379, %v381
  %v386 = vadd.s32 %v382, 1
  %v387 = vsel %vm385, %v386, %v382
  %v388 = vadd.s32 %v383, %v387
  %v389 = vadd.s32 %v388, 536870912
  %v390 = vshrl.u32 %v389, 30
  %v391 = vshll.u32 %v390, 30
  %v392 = vsub.s32 %v388, %v391
  %vm393 = vcmp.lt.s32.totalorder %v392, 0
  %v394 = vsub.s32 0, %v392
  %v395 = vsel %vm393, %v394, %v392
  %v396 = vclz %v395
  %v397 = vsub.s32 %v396, 2
  %vm398 = vcmp.gt.s32.totalorder 0, %v397
  %v399 = vsel %vm398, 0, %v397
  %v400 = vsub.s32 32, %v399
  %v401 = vshll.u32 %v392, %v399
  %v402 = vshrl.u32 %v384, %v400
  %v403 = vor.u32 %v401, %v402
  %v404 = vsub.s32 4294967266, %v399
  %v405 = vadd.s32 %v404, 127
  %v406 = vshll.u32 %v405, 23
  %v407 = vor.u32 4788187, %v406
  %v408 = vand.u32 2147483647, %v407
  %v410 = vcvt.s32.f32 %v403
  %v411 = vmul.f32 %v410, %v408
  %v412 = vxor.u32 %v411, 2147483648
  %v413 = vsel %vm330, %v412, %v411
  %v414 = vsub.s32 4, %v390
  %v415 = vsel %vm330, %v414, %v390
  %v416 = vsel %vm329, %v13, %v413
  %v417 = vsel %vm329, 0, %v415
  %v418 = vcosq.f32.pop %v416
  %v419 = vsinq.f32.pop %v416
  %vm420 = vweird.f32 %v13
  %v421 = vadd.s32 %v417, 3
  %v422 = vand.u32 %v421, 3
  %vm423 = vcmp.lt.s32.totalorder %v422, 2
  %vm424 = vcmp.eq.s32.totalorder %v422, 0
  %v425 = vxor.u32 %v419, 2147483648
  %v426 = vsel %vm424, %v418, %v425
  %vm427 = vcmp.eq.s32.totalorder %v422, 2
  %v428 = vxor.u32 %v418, 2147483648
  %v429 = vsel %vm427, %v428, %v419
  %v430 = vsel %vm423, %v426, %v429
  %v431 = vsel %vm420, nan, %v430
  %v432 = vmul.f32 %v327, %v327
  %v433 = vmul.f32 %v431, %v431
  %v434 = vsub.f32 %v432, %v433
  %v435 = vmul.f32 %v431, %v327
  %v436 = vadd.f32 %v435, %v435
  %v437 = vmul.f32 %v224, %v224
  %v438 = vmul.f32 %v120, 0.48860252
  %v439 = vmul.f32 %v224, -0.48860252
  %v440 = vmul.f32 %v439, %v327
  %v441 = vmul.f32 %v439, %v431
  %v442 = vmul.f32 %v120, 0.9461747
  %v443 = vmul.f32 %v442, %v120
  %v444 = vadd.f32 %v443, -0.31539157
  %v445 = vmul.f32 %v120, -1.0925485
  %v446 = vmul.f32 %v224, %v445
  %v447 = vmul.f32 %v446, %v327
  %v448 = vmul.f32 %v446, %v431
  %v449 = vmul.f32 %v437, 0.54627424
  %v450 = vmul.f32 %v449, %v434
  %v451 = vmul.f32 %v449, %v436
  %v452 = vmul.f32 %v9, 3.1415927
  %v453 = vand.u32 2147483647, %v452
  %vm454 = vcmp.le.f32.partialorder %v453, 0.7853982
  %vm455 = vcmp.lt.s32.totalorder %v452, 0
  %v456 = vand.u32 %v452, 2139095040
  %v457 = vshrl.u32 %v456, 23
  %v458 = vsub.s32 %v457, 127
  %v459 = vand.u32 2147483647, %v452
  %v460 = vand.u32 %v459, 8388607
  %v461 = vor.u32 %v460, 8388608
  %v462 = vsub.s32 0, %v461
  %v463 = vadd.s32 %v458, 1
  %vm464 = vcmp.gt.s32.totalorder %v463, 0
  %v465 = vsel %vm464, %v463, 0
  %v466 = vshrl.u32 %v465, 5
  %v467 = vand.u32 %v465, 31
  %v468 = vsub.s32 32, %v467
  %v469 = vshrl.u32 683565275, %v468
  %v470 = vshll.u32 683565275, %v467
  %v471 = vshrl.u32 2475754826, %v468
  %v472 = vor.u32 %v470, %v471
  %v473 = vshll.u32 2475754826, %v467
  %v474 = vshrl.u32 2131351028, %v468
  %v475 = vor.u32 %v473, %v474
  %v476 = vshll.u32 2131351028, %v467
  %v477 = vshrl.u32 2102212464, %v468
  %v478 = vor.u32 %v476, %v477
  %v479 = vshll.u32 2102212464, %v467
  %v480 = vshrl.u32 920167782, %v468
  %v481 = vor.u32 %v479, %v480
  %v482 = vshll.u32 920167782, %v467
  %v483 = vshrl.u32 1326507024, %v468
  %v484 = vor.u32 %v482, %v483
  %vm485 = vcmp.lt.s32.totalorder %v466, 1
  %vm486 = vcmp.lt.s32.totalorder %v466, 2
  %vm487 = vcmp.lt.s32.totalorder %v466, 3
  %vm488 = vcmp.lt.s32.totalorder %v466, 4
  %v489 = vsel %vm485, %v469, %v472
  %v490 = vsel %vm488, %v478, 2102212464
  %v491 = vsel %vm487, %v475, %v490
  %v492 = vsel %vm486, %v489, %v491
  %v493 = vsel %vm485, %v472, %v475
  %v494 = vsel %vm488, %v481, 920167782
  %v495 = vsel %vm487, %v478, %v494
  %v496 = vsel %vm486, %v493, %v495
  %v497 = vsel %vm485, %v475, %v478
  %v498 = vsel %vm488, %v484, 1326507024
  %v499 = vsel %vm487, %v481, %v498
  %v500 = vsel %vm486, %v497, %v499
  %v501 = vshll.u32 %v461, 8
  %v502 = vmul.u32.u64.compose %v501, %v500
  %v503 = vextract.low.u32 %v502
  %v504 = vextract.high.u32 %v502
  %v505 = vmul.u32.u64.compose %v501, %v496
  %v506 = vextract.low.u32 %v505
  %v507 = vextract.high.u32 %v505
  %v508 = vmul.u32 %v501, %v492
  %v509 = vadd.s32 %v504, %v506
  %vm510 = vc.u32 %v504, %v506
  %v511 = vadd.s32 %v507, 1
  %v512 = vsel %vm510, %v511, %v507
  %v513 = vadd.s32 %v508, %v512
  %v514 = vadd.s32 %v513, 536870912
  %v515 = vshrl.u32 %v514, 30
  %v516 = vshll.u32 %v515, 30
  %v517 = vsub.s32 %v513, %v516
  %vm518 = vcmp.lt.s32.totalorder %v517, 0
  %v519 = vsub.s32 0, %v517
  %v520 = vsel %vm518, %v519, %v517
  %v521 = vclz %v520
  %v522 = vsub.s32 %v521, 2
  %vm523 = vcmp.gt.s32.totalorder 0, %v522
  %v524 = vsel %vm523, 0, %v522
  %v525 = vsub.s32 32, %v524
  %v526 = vshll.u32 %v517, %v524
  %v527 = vshrl.u32 %v509, %v525
  %v528 = vor.u32 %v526, %v527
  %v529 = vsub.s32 4294967266, %v524
  %v530 = vadd.s32 %v529, 127
  %v531 = vshll.u32 %v530, 23
  %v532 = vor.u32 4788187, %v531
  %v533 = vand.u32 2147483647, %v532
  %v535 = vcvt.s32.f32 %v528
  %v536 = vmul.f32 %v535, %v533
  %v537 = vxor.u32 %v536, 2147483648
  %v538 = vsel %vm455, %v537, %v536
  %v539 = vsub.s32 4, %v515
  %v540 = vsel %vm455, %v539, %v515
  %v541 = vsel %vm454, %v452, %v538
  %v542 = vsel %vm454, 0, %v540
  %v543 = vcosq.f32.pop %v541
  %v544 = vsinq.f32.pop %v541
  %vm545 = vweird.f32 %v452
  %v546 = vadd.s32 %v542, 3
  %v547 = vand.u32 %v546, 3
  %vm548 = vcmp.lt.s32.totalorder %v547, 2
  %vm549 = vcmp.eq.s32.totalorder %v547, 0
  %v550 = vxor.u32 %v544, 2147483648
  %v551 = vsel %vm549, %v543, %v550
  %vm552 = vcmp.eq.s32.totalorder %v547, 2
  %v553 = vxor.u32 %v543, 2147483648
  %v554 = vsel %vm552, %v553, %v544
  %v555 = vsel %vm548, %v551, %v554
  %v556 = vsel %vm545, nan, %v555
  %v557 = vand.u32 2147483647, %v452
  %vm558 = vcmp.le.f32.partialorder %v557, 0.7853982
  %vm559 = vcmp.lt.s32.totalorder %v452, 0
  %v560 = vand.u32 %v452, 2139095040
  %v561 = vshrl.u32 %v560, 23
  %v562 = vsub.s32 %v561, 127
  %v563 = vand.u32 2147483647, %v452
  %v564 = vand.u32 %v563, 8388607
  %v565 = vor.u32 %v564, 8388608
  %v566 = vsub.s32 0, %v565
  %v567 = vadd.s32 %v562, 1
  %vm568 = vcmp.gt.s32.totalorder %v567, 0
  %v569 = vsel %vm568, %v567, 0
  %v570 = vshrl.u32 %v569, 5
  %v571 = vand.u32 %v569, 31
  %v572 = vsub.s32 32, %v571
  %v573 = vshrl.u32 683565275, %v572
  %v574 = vshll.u32 683565275, %v571
  %v575 = vshrl.u32 2475754826, %v572
  %v576 = vor.u32 %v574, %v575
  %v577 = vshll.u32 2475754826, %v571
  %v578 = vshrl.u32 2131351028, %v572
  %v579 = vor.u32 %v577, %v578
  %v580 = vshll.u32 2131351028, %v571
  %v581 = vshrl.u32 2102212464, %v572
  %v582 = vor.u32 %v580, %v581
  %v583 = vshll.u32 2102212464, %v571
  %v584 = vshrl.u32 920167782, %v572
  %v585 = vor.u32 %v583, %v584
  %v586 = vshll.u32 920167782, %v571
  %v587 = vshrl.u32 1326507024, %v572
  %v588 = vor.u32 %v586, %v587
  %vm589 = vcmp.lt.s32.totalorder %v570, 1
  %vm590 = vcmp.lt.s32.totalorder %v570, 2
  %vm591 = vcmp.lt.s32.totalorder %v570, 3
  %vm592 = vcmp.lt.s32.totalorder %v570, 4
  %v593 = vsel %vm589, %v573, %v576
  %v594 = vsel %vm592, %v582, 2102212464
  %v595 = vsel %vm591, %v579, %v594
  %v596 = vsel %vm590, %v593, %v595
  %v597 = vsel %vm589, %v576, %v579
  %v598 = vsel %vm592, %v585, 920167782
  %v599 = vsel %vm591, %v582, %v598
  %v600 = vsel %vm590, %v597, %v599
  %v601 = vsel %vm589, %v579, %v582
  %v602 = vsel %vm592, %v588, 1326507024
  %v603 = vsel %vm591, %v585, %v602
  %v604 = vsel %vm590, %v601, %v603
  %v605 = vshll.u32 %v565, 8
  %v606 = vmul.u32.u64.compose %v605, %v604
  %v607 = vextract.low.u32 %v606
  %v608 = vextract.high.u32 %v606
  %v609 = vmul.u32.u64.compose %v605, %v600
  %v610 = vextract.low.u32 %v609
  %v611 = vextract.high.u32 %v609
  %v612 = vmul.u32 %v605, %v596
  %v613 = vadd.s32 %v608, %v610
  %vm614 = vc.u32 %v608, %v610
  %v615 = vadd.s32 %v611, 1
  %v616 = vsel %vm614, %v615, %v611
  %v617 = vadd.s32 %v612, %v616
  %v618 = vadd.s32 %v617, 536870912
  %v619 = vshrl.u32 %v618, 30
  %v620 = vshll.u32 %v619, 30
  %v621 = vsub.s32 %v617, %v620
  %vm622 = vcmp.lt.s32.totalorder %v621, 0
  %v623 = vsub.s32 0, %v621
  %v624 = vsel %vm622, %v623, %v621
  %v625 = vclz %v624
  %v626 = vsub.s32 %v625, 2
  %vm627 = vcmp.gt.s32.totalorder 0, %v626
  %v628 = vsel %vm627, 0, %v626
  %v629 = vsub.s32 32, %v628
  %v630 = vshll.u32 %v621, %v628
  %v631 = vshrl.u32 %v613, %v629
  %v632 = vor.u32 %v630, %v631
  %v633 = vsub.s32 4294967266, %v628
  %v634 = vadd.s32 %v633, 127
  %v635 = vshll.u32 %v634, 23
  %v636 = vor.u32 4788187, %v635
  %v637 = vand.u32 2147483647, %v636
  %v639 = vcvt.s32.f32 %v632
  %v640 = vmul.f32 %v639, %v637
  %v641 = vxor.u32 %v640, 2147483648
  %v642 = vsel %vm559, %v641, %v640
  %v643 = vsub.s32 4, %v619
  %v644 = vsel %vm559, %v643, %v619
  %v645 = vsel %vm558, %v452, %v642
  %v646 = vsel %vm558, 0, %v644
  %v647 = vcosq.f32.pop %v645
  %v648 = vsinq.f32.pop %v645
  %vm649 = vweird.f32 %v452
  %v650 = vand.u32 %v646, 3
  %vm651 = vcmp.lt.s32.totalorder %v650, 2
  %vm652 = vcmp.eq.s32.totalorder %v650, 0
  %v653 = vxor.u32 %v648, 2147483648
  %v654 = vsel %vm652, %v647, %v653
  %vm655 = vcmp.eq.s32.totalorder %v650, 2
  %v656 = vxor.u32 %v647, 2147483648
  %v657 = vsel %vm655, %v656, %v648
  %v658 = vsel %vm651, %v654, %v657
  %v659 = vsel %vm649, nan, %v658
  %v660 = vmul.f32 %v556, %v17
  %v661 = vmul.f32 %v660, 1.4142135
  %v662 = vmul.f32 %v661, 0.2820948
  %663 = vst [vmem:[%s1] sm:$0xff] %v662
  %v664 = vmul.f32 %v441, %v661
  %s665 = scalar_lea.vmem %s1, 144
  %666 = vst [vmem:[%s665] sm:$0xff] %v664
  %v667 = vmul.f32 %v450, %v661
  %s668 = scalar_lea.vmem %s1, 288
  %669 = vst [vmem:[%s668] sm:$0xff] %v667
  %v670 = vmul.f32 %v556, %v659
  %v671 = vadd.f32 %v670, %v670
  %v672 = vmul.f32 %v659, %v659
  %v673 = vmul.f32 %v556, %v556
  %v674 = vsub.f32 %v672, %v673
  %v675 = vmul.f32 %v671, %v17
  %v676 = vmul.f32 %v675, 1.4142135
  %v677 = vmul.f32 %v676, 0.2820948
  %s678 = scalar_lea.vmem %s1, 8
  %679 = vst [vmem:[%s678] sm:$0xff] %v677
  %v680 = vmul.f32 %v441, %v676
  %s681 = scalar_lea.vmem %s1, 152
  %682 = vst [vmem:[%s681] sm:$0xff] %v680
  %v683 = vmul.f32 %v450, %v676
  %s684 = scalar_lea.vmem %s1, 296
  %685 = vst [vmem:[%s684] sm:$0xff] %v683
  %v686 = vmul.f32 %v671, %v659
  %v687 = vmul.f32 %v674, %v556
  %v688 = vadd.f32 %v686, %v687
  %v689 = vmul.f32 %v674, %v659
  %v690 = vmul.f32 %v671, %v556
  %v691 = vsub.f32 %v689, %v690
  %v692 = vmul.f32 %v688, %v17
  %v693 = vmul.f32 %v692, 1.4142135
  %v694 = vmul.f32 %v693, 0.2820948
  %s695 = scalar_lea.vmem %s1, 16
  %696 = vst [vmem:[%s695] sm:$0xff] %v694
  %v697 = vmul.f32 %v441, %v693
  %s698 = scalar_lea.vmem %s1, 160
  %699 = vst [vmem:[%s698] sm:$0xff] %v697
  %v700 = vmul.f32 %v450, %v693
  %s701 = scalar_lea.vmem %s1, 304
  %702 = vst [vmem:[%s701] sm:$0xff] %v700
  %v703 = vmul.f32 %v688, %v659
  %v704 = vmul.f32 %v691, %v556
  %v705 = vadd.f32 %v703, %v704
  %v706 = vmul.f32 %v691, %v659
  %v707 = vmul.f32 %v688, %v556
  %v708 = vsub.f32 %v706, %v707
  %v709 = vmul.f32 %v705, %v17
  %v710 = vmul.f32 %v709, 1.4142135
  %v711 = vmul.f32 %v710, 0.2820948
  %s712 = scalar_lea.vmem %s1, 24
  %713 = vst [vmem:[%s712] sm:$0xff] %v711
  %v714 = vmul.f32 %v441, %v710
  %s715 = scalar_lea.vmem %s1, 168
  %716 = vst [vmem:[%s715] sm:$0xff] %v714
  %v717 = vmul.f32 %v450, %v710
  %s718 = scalar_lea.vmem %s1, 312
  %719 = vst [vmem:[%s718] sm:$0xff] %v717
  %v720 = vmul.f32 %v705, %v659
  %v721 = vmul.f32 %v708, %v556
  %v722 = vadd.f32 %v720, %v721
  %v723 = vmul.f32 %v708, %v659
  %v724 = vmul.f32 %v705, %v556
  %v725 = vsub.f32 %v723, %v724
  %v726 = vmul.f32 %v722, %v17
  %v727 = vmul.f32 %v726, 1.4142135
  %v728 = vmul.f32 %v727, 0.2820948
  %s729 = scalar_lea.vmem %s1, 32
  %730 = vst [vmem:[%s729] sm:$0xff] %v728
  %v731 = vmul.f32 %v441, %v727
  %s732 = scalar_lea.vmem %s1, 176
  %733 = vst [vmem:[%s732] sm:$0xff] %v731
  %v734 = vmul.f32 %v450, %v727
  %s735 = scalar_lea.vmem %s1, 320
  %736 = vst [vmem:[%s735] sm:$0xff] %v734
  %v737 = vmul.f32 %v722, %v659
  %v738 = vmul.f32 %v725, %v556
  %v739 = vadd.f32 %v737, %v738
  %v740 = vmul.f32 %v739, %v17
  %v741 = vmul.f32 %v740, 1.4142135
  %v742 = vmul.f32 %v741, 0.2820948
  %s743 = scalar_lea.vmem %s1, 40
  %744 = vst [vmem:[%s743] sm:$0xff] %v742
  %v745 = vmul.f32 %v441, %v741
  %s746 = scalar_lea.vmem %s1, 184
  %747 = vst [vmem:[%s746] sm:$0xff] %v745
  %v748 = vmul.f32 %v450, %v741
  %s749 = scalar_lea.vmem %s1, 328
  %750 = vst [vmem:[%s749] sm:$0xff] %v748
  %v751 = vmul.f32 %v9, 4.4934096
  %v752 = vmul.f32 %v17, 0.22254816
  %v753 = vand.u32 2147483647, %v751
  %vm754 = vcmp.le.f32.partialorder %v753, 0.7853982
  %vm755 = vcmp.lt.s32.totalorder %v751, 0
  %v756 = vand.u32 %v751, 2139095040
  %v757 = vshrl.u32 %v756, 23
  %v758 = vsub.s32 %v757, 127
  %v759 = vand.u32 2147483647, %v751
  %v760 = vand.u32 %v759, 8388607
  %v761 = vor.u32 %v760, 8388608
  %v762 = vsub.s32 0, %v761
  %v763 = vadd.s32 %v758, 1
  %vm764 = vcmp.gt.s32.totalorder %v763, 0
  %v765 = vsel %vm764, %v763, 0
  %v766 = vshrl.u32 %v765, 5
  %v767 = vand.u32 %v765, 31
  %v768 = vsub.s32 32, %v767
  %v769 = vshrl.u32 683565275, %v768
  %v770 = vshll.u32 683565275, %v767
  %v771 = vshrl.u32 2475754826, %v768
  %v772 = vor.u32 %v770, %v771
  %v773 = vshll.u32 2475754826, %v767
  %v774 = vshrl.u32 2131351028, %v768
  %v775 = vor.u32 %v773, %v774
  %v776 = vshll.u32 2131351028, %v767
  %v777 = vshrl.u32 2102212464, %v768
  %v778 = vor.u32 %v776, %v777
  %v779 = vshll.u32 2102212464, %v767
  %v780 = vshrl.u32 920167782, %v768
  %v781 = vor.u32 %v779, %v780
  %v782 = vshll.u32 920167782, %v767
  %v783 = vshrl.u32 1326507024, %v768
  %v784 = vor.u32 %v782, %v783
  %vm785 = vcmp.lt.s32.totalorder %v766, 1
  %vm786 = vcmp.lt.s32.totalorder %v766, 2
  %vm787 = vcmp.lt.s32.totalorder %v766, 3
  %vm788 = vcmp.lt.s32.totalorder %v766, 4
  %v789 = vsel %vm785, %v769, %v772
  %v790 = vsel %vm788, %v778, 2102212464
  %v791 = vsel %vm787, %v775, %v790
  %v792 = vsel %vm786, %v789, %v791
  %v793 = vsel %vm785, %v772, %v775
  %v794 = vsel %vm788, %v781, 920167782
  %v795 = vsel %vm787, %v778, %v794
  %v796 = vsel %vm786, %v793, %v795
  %v797 = vsel %vm785, %v775, %v778
  %v798 = vsel %vm788, %v784, 1326507024
  %v799 = vsel %vm787, %v781, %v798
  %v800 = vsel %vm786, %v797, %v799
  %v801 = vshll.u32 %v761, 8
  %v802 = vmul.u32.u64.compose %v801, %v800
  %v803 = vextract.low.u32 %v802
  %v804 = vextract.high.u32 %v802
  %v805 = vmul.u32.u64.compose %v801, %v796
  %v806 = vextract.low.u32 %v805
  %v807 = vextract.high.u32 %v805
  %v808 = vmul.u32 %v801, %v792
  %v809 = vadd.s32 %v804, %v806
  %vm810 = vc.u32 %v804, %v806
  %v811 = vadd.s32 %v807, 1
  %v812 = vsel %vm810, %v811, %v807
  %v813 = vadd.s32 %v808, %v812
  %v814 = vadd.s32 %v813, 536870912
  %v815 = vshrl.u32 %v814, 30
  %v816 = vshll.u32 %v815, 30
  %v817 = vsub.s32 %v813, %v816
  %vm818 = vcmp.lt.s32.totalorder %v817, 0
  %v819 = vsub.s32 0, %v817
  %v820 = vsel %vm818, %v819, %v817
  %v821 = vclz %v820
  %v822 = vsub.s32 %v821, 2
  %vm823 = vcmp.gt.s32.totalorder 0, %v822
  %v824 = vsel %vm823, 0, %v822
  %v825 = vsub.s32 32, %v824
  %v826 = vshll.u32 %v817, %v824
  %v827 = vshrl.u32 %v809, %v825
  %v828 = vor.u32 %v826, %v827
  %v829 = vsub.s32 4294967266, %v824
  %v830 = vadd.s32 %v829, 127
  %v831 = vshll.u32 %v830, 23
  %v832 = vor.u32 4788187, %v831
  %v833 = vand.u32 2147483647, %v832
  %v835 = vcvt.s32.f32 %v828
  %v836 = vmul.f32 %v835, %v833
  %v837 = vxor.u32 %v836, 2147483648
  %v838 = vsel %vm755, %v837, %v836
  %v839 = vsub.s32 4, %v815
  %v840 = vsel %vm755, %v839, %v815
  %v841 = vsel %vm754, %v751, %v838
  %v842 = vsel %vm754, 0, %v840
  %v843 = vcosq.f32.pop %v841
  %v844 = vsinq.f32.pop %v841
  %vm845 = vweird.f32 %v751
  %v846 = vadd.s32 %v842, 3
  %v847 = vand.u32 %v846, 3
  %vm848 = vcmp.lt.s32.totalorder %v847, 2
  %vm849 = vcmp.eq.s32.totalorder %v847, 0
  %v850 = vxor.u32 %v844, 2147483648
  %v851 = vsel %vm849, %v843, %v850
  %vm852 = vcmp.eq.s32.totalorder %v847, 2
  %v853 = vxor.u32 %v843, 2147483648
  %v854 = vsel %vm852, %v853, %v844
  %v855 = vsel %vm848, %v851, %v854
  %v856 = vsel %vm845, nan, %v855
  %v857 = vand.u32 2147483647, %v751
  %vm858 = vcmp.le.f32.partialorder %v857, 0.7853982
  %vm859 = vcmp.lt.s32.totalorder %v751, 0
  %v860 = vand.u32 %v751, 2139095040
  %v861 = vshrl.u32 %v860, 23
  %v862 = vsub.s32 %v861, 127
  %v863 = vand.u32 2147483647, %v751
  %v864 = vand.u32 %v863, 8388607
  %v865 = vor.u32 %v864, 8388608
  %v866 = vsub.s32 0, %v865
  %v867 = vadd.s32 %v862, 1
  %vm868 = vcmp.gt.s32.totalorder %v867, 0
  %v869 = vsel %vm868, %v867, 0
  %v870 = vshrl.u32 %v869, 5
  %v871 = vand.u32 %v869, 31
  %v872 = vsub.s32 32, %v871
  %v873 = vshrl.u32 683565275, %v872
  %v874 = vshll.u32 683565275, %v871
  %v875 = vshrl.u32 2475754826, %v872
  %v876 = vor.u32 %v874, %v875
  %v877 = vshll.u32 2475754826, %v871
  %v878 = vshrl.u32 2131351028, %v872
  %v879 = vor.u32 %v877, %v878
  %v880 = vshll.u32 2131351028, %v871
  %v881 = vshrl.u32 2102212464, %v872
  %v882 = vor.u32 %v880, %v881
  %v883 = vshll.u32 2102212464, %v871
  %v884 = vshrl.u32 920167782, %v872
  %v885 = vor.u32 %v883, %v884
  %v886 = vshll.u32 920167782, %v871
  %v887 = vshrl.u32 1326507024, %v872
  %v888 = vor.u32 %v886, %v887
  %vm889 = vcmp.lt.s32.totalorder %v870, 1
  %vm890 = vcmp.lt.s32.totalorder %v870, 2
  %vm891 = vcmp.lt.s32.totalorder %v870, 3
  %vm892 = vcmp.lt.s32.totalorder %v870, 4
  %v893 = vsel %vm889, %v873, %v876
  %v894 = vsel %vm892, %v882, 2102212464
  %v895 = vsel %vm891, %v879, %v894
  %v896 = vsel %vm890, %v893, %v895
  %v897 = vsel %vm889, %v876, %v879
  %v898 = vsel %vm892, %v885, 920167782
  %v899 = vsel %vm891, %v882, %v898
  %v900 = vsel %vm890, %v897, %v899
  %v901 = vsel %vm889, %v879, %v882
  %v902 = vsel %vm892, %v888, 1326507024
  %v903 = vsel %vm891, %v885, %v902
  %v904 = vsel %vm890, %v901, %v903
  %v905 = vshll.u32 %v865, 8
  %v906 = vmul.u32.u64.compose %v905, %v904
  %v907 = vextract.low.u32 %v906
  %v908 = vextract.high.u32 %v906
  %v909 = vmul.u32.u64.compose %v905, %v900
  %v910 = vextract.low.u32 %v909
  %v911 = vextract.high.u32 %v909
  %v912 = vmul.u32 %v905, %v896
  %v913 = vadd.s32 %v908, %v910
  %vm914 = vc.u32 %v908, %v910
  %v915 = vadd.s32 %v911, 1
  %v916 = vsel %vm914, %v915, %v911
  %v917 = vadd.s32 %v912, %v916
  %v918 = vadd.s32 %v917, 536870912
  %v919 = vshrl.u32 %v918, 30
  %v920 = vshll.u32 %v919, 30
  %v921 = vsub.s32 %v917, %v920
  %vm922 = vcmp.lt.s32.totalorder %v921, 0
  %v923 = vsub.s32 0, %v921
  %v924 = vsel %vm922, %v923, %v921
  %v925 = vclz %v924
  %v926 = vsub.s32 %v925, 2
  %vm927 = vcmp.gt.s32.totalorder 0, %v926
  %v928 = vsel %vm927, 0, %v926
  %v929 = vsub.s32 32, %v928
  %v930 = vshll.u32 %v921, %v928
  %v931 = vshrl.u32 %v913, %v929
  %v932 = vor.u32 %v930, %v931
  %v933 = vsub.s32 4294967266, %v928
  %v934 = vadd.s32 %v933, 127
  %v935 = vshll.u32 %v934, 23
  %v936 = vor.u32 4788187, %v935
  %v937 = vand.u32 2147483647, %v936
  %v939 = vcvt.s32.f32 %v932
  %v940 = vmul.f32 %v939, %v937
  %v941 = vxor.u32 %v940, 2147483648
  %v942 = vsel %vm859, %v941, %v940
  %v943 = vsub.s32 4, %v919
  %v944 = vsel %vm859, %v943, %v919
  %v945 = vsel %vm858, %v751, %v942
  %v946 = vsel %vm858, 0, %v944
  %v947 = vcosq.f32.pop %v945
  %v948 = vsinq.f32.pop %v945
  %vm949 = vweird.f32 %v751
  %v950 = vand.u32 %v946, 3
  %vm951 = vcmp.lt.s32.totalorder %v950, 2
  %vm952 = vcmp.eq.s32.totalorder %v950, 0
  %v953 = vxor.u32 %v948, 2147483648
  %v954 = vsel %vm952, %v947, %v953
  %vm955 = vcmp.eq.s32.totalorder %v950, 2
  %v956 = vxor.u32 %v947, 2147483648
  %v957 = vsel %vm955, %v956, %v948
  %v958 = vsel %vm951, %v954, %v957
  %v959 = vsel %vm949, nan, %v958
  %v960 = vmul.f32 %v856, %v752
  %v961 = vsub.f32 %v960, %v959
  %v962 = vmul.f32 %v961, %v752
  %v963 = vmul.f32 %v962, 6.510104
  %v964 = vmul.f32 %v438, %v963
  %s965 = scalar_lea.vmem %s1, 48
  %966 = vst [vmem:[%s965] sm:$0xff] %v964
  %v967 = vmul.f32 %v444, %v963
  %s968 = scalar_lea.vmem %s1, 192
  %969 = vst [vmem:[%s968] sm:$0xff] %v967
  %v970 = vmul.f32 %v451, %v963
  %s971 = scalar_lea.vmem %s1, 336
  %972 = vst [vmem:[%s971] sm:$0xff] %v970
  %v973 = vmul.f32 %v9, 7.7252517
  %v974 = vmul.f32 %v17, 0.12944561
  %v975 = vand.u32 2147483647, %v973
  %vm976 = vcmp.le.f32.partialorder %v975, 0.7853982
  %vm977 = vcmp.lt.s32.totalorder %v973, 0
  %v978 = vand.u32 %v973, 2139095040
  %v979 = vshrl.u32 %v978, 23
  %v980 = vsub.s32 %v979, 127
  %v981 = vand.u32 2147483647, %v973
  %v982 = vand.u32 %v981, 8388607
  %v983 = vor.u32 %v982, 8388608
  %v984 = vsub.s32 0, %v983
  %v985 = vadd.s32 %v980, 1
  %vm986 = vcmp.gt.s32.totalorder %v985, 0
  %v987 = vsel %vm986, %v985, 0
  %v988 = vshrl.u32 %v987, 5
  %v989 = vand.u32 %v987, 31
  %v990 = vsub.s32 32, %v989
  %v991 = vshrl.u32 683565275, %v990
  %v992 = vshll.u32 683565275, %v989
  %v993 = vshrl.u32 2475754826, %v990
  %v994 = vor.u32 %v992, %v993
  %v995 = vshll.u32 2475754826, %v989
  %v996 = vshrl.u32 2131351028, %v990
  %v997 = vor.u32 %v995, %v996
  %v998 = vshll.u32 2131351028, %v989
  %v999 = vshrl.u32 2102212464, %v990
  %v1000 = vor.u32 %v998, %v999
  %v1001 = vshll.u32 2102212464, %v989
  %v1002 = vshrl.u32 920167782, %v990
  %v1003 = vor.u32 %v1001, %v1002
  %v1004 = vshll.u32 920167782, %v989
  %v1005 = vshrl.u32 1326507024, %v990
  %v1006 = vor.u32 %v1004, %v1005
  %vm1007 = vcmp.lt.s32.totalorder %v988, 1
  %vm1008 = vcmp.lt.s32.totalorder %v988, 2
  %vm1009 = vcmp.lt.s32.totalorder %v988, 3
  %vm1010 = vcmp.lt.s32.totalorder %v988, 4
  %v1011 = vsel %vm1007, %v991, %v994
  %v1012 = vsel %vm1010, %v1000, 2102212464
  %v1013 = vsel %vm1009, %v997, %v1012
  %v1014 = vsel %vm1008, %v1011, %v1013
  %v1015 = vsel %vm1007, %v994, %v997
  %v1016 = vsel %vm1010, %v1003, 920167782
  %v1017 = vsel %vm1009, %v1000, %v1016
  %v1018 = vsel %vm1008, %v1015, %v1017
  %v1019 = vsel %vm1007, %v997, %v1000
  %v1020 = vsel %vm1010, %v1006, 1326507024
  %v1021 = vsel %vm1009, %v1003, %v1020
  %v1022 = vsel %vm1008, %v1019, %v1021
  %v1023 = vshll.u32 %v983, 8
  %v1024 = vmul.u32.u64.compose %v1023, %v1022
  %v1025 = vextract.low.u32 %v1024
  %v1026 = vextract.high.u32 %v1024
  %v1027 = vmul.u32.u64.compose %v1023, %v1018
  %v1028 = vextract.low.u32 %v1027
  %v1029 = vextract.high.u32 %v1027
  %v1030 = vmul.u32 %v1023, %v1014
  %v1031 = vadd.s32 %v1026, %v1028
  %vm1032 = vc.u32 %v1026, %v1028
  %v1033 = vadd.s32 %v1029, 1
  %v1034 = vsel %vm1032, %v1033, %v1029
  %v1035 = vadd.s32 %v1030, %v1034
  %v1036 = vadd.s32 %v1035, 536870912
  %v1037 = vshrl.u32 %v1036, 30
  %v1038 = vshll.u32 %v1037, 30
  %v1039 = vsub.s32 %v1035, %v1038
  %vm1040 = vcmp.lt.s32.totalorder %v1039, 0
  %v1041 = vsub.s32 0, %v1039
  %v1042 = vsel %vm1040, %v1041, %v1039
  %v1043 = vclz %v1042
  %v1044 = vsub.s32 %v1043, 2
  %vm1045 = vcmp.gt.s32.totalorder 0, %v1044
  %v1046 = vsel %vm1045, 0, %v1044
  %v1047 = vsub.s32 32, %v1046
  %v1048 = vshll.u32 %v1039, %v1046
  %v1049 = vshrl.u32 %v1031, %v1047
  %v1050 = vor.u32 %v1048, %v1049
  %v1051 = vsub.s32 4294967266, %v1046
  %v1052 = vadd.s32 %v1051, 127
  %v1053 = vshll.u32 %v1052, 23
  %v1054 = vor.u32 4788187, %v1053
  %v1055 = vand.u32 2147483647, %v1054
  %v1057 = vcvt.s32.f32 %v1050
  %v1058 = vmul.f32 %v1057, %v1055
  %v1059 = vxor.u32 %v1058, 2147483648
  %v1060 = vsel %vm977, %v1059, %v1058
  %v1061 = vsub.s32 4, %v1037
  %v1062 = vsel %vm977, %v1061, %v1037
  %v1063 = vsel %vm976, %v973, %v1060
  %v1064 = vsel %vm976, 0, %v1062
  %v1065 = vcosq.f32.pop %v1063
  %v1066 = vsinq.f32.pop %v1063
  %vm1067 = vweird.f32 %v973
  %v1068 = vadd.s32 %v1064, 3
  %v1069 = vand.u32 %v1068, 3
  %vm1070 = vcmp.lt.s32.totalorder %v1069, 2
  %vm1071 = vcmp.eq.s32.totalorder %v1069, 0
  %v1072 = vxor.u32 %v1066, 2147483648
  %v1073 = vsel %vm1071, %v1065, %v1072
  %vm1074 = vcmp.eq.s32.totalorder %v1069, 2
  %v1075 = vxor.u32 %v1065, 2147483648
  %v1076 = vsel %vm1074, %v1075, %v1066
  %v1077 = vsel %vm1070, %v1073, %v1076
  %v1078 = vsel %vm1067, nan, %v1077
  %v1079 = vand.u32 2147483647, %v973
  %vm1080 = vcmp.le.f32.partialorder %v1079, 0.7853982
  %vm1081 = vcmp.lt.s32.totalorder %v973, 0
  %v1082 = vand.u32 %v973, 2139095040
  %v1083 = vshrl.u32 %v1082, 23
  %v1084 = vsub.s32 %v1083, 127
  %v1085 = vand.u32 2147483647, %v973
  %v1086 = vand.u32 %v1085, 8388607
  %v1087 = vor.u32 %v1086, 8388608
  %v1088 = vsub.s32 0, %v1087
  %v1089 = vadd.s32 %v1084, 1
  %vm1090 = vcmp.gt.s32.totalorder %v1089, 0
  %v1091 = vsel %vm1090, %v1089, 0
  %v1092 = vshrl.u32 %v1091, 5
  %v1093 = vand.u32 %v1091, 31
  %v1094 = vsub.s32 32, %v1093
  %v1095 = vshrl.u32 683565275, %v1094
  %v1096 = vshll.u32 683565275, %v1093
  %v1097 = vshrl.u32 2475754826, %v1094
  %v1098 = vor.u32 %v1096, %v1097
  %v1099 = vshll.u32 2475754826, %v1093
  %v1100 = vshrl.u32 2131351028, %v1094
  %v1101 = vor.u32 %v1099, %v1100
  %v1102 = vshll.u32 2131351028, %v1093
  %v1103 = vshrl.u32 2102212464, %v1094
  %v1104 = vor.u32 %v1102, %v1103
  %v1105 = vshll.u32 2102212464, %v1093
  %v1106 = vshrl.u32 920167782, %v1094
  %v1107 = vor.u32 %v1105, %v1106
  %v1108 = vshll.u32 920167782, %v1093
  %v1109 = vshrl.u32 1326507024, %v1094
  %v1110 = vor.u32 %v1108, %v1109
  %vm1111 = vcmp.lt.s32.totalorder %v1092, 1
  %vm1112 = vcmp.lt.s32.totalorder %v1092, 2
  %vm1113 = vcmp.lt.s32.totalorder %v1092, 3
  %vm1114 = vcmp.lt.s32.totalorder %v1092, 4
  %v1115 = vsel %vm1111, %v1095, %v1098
  %v1116 = vsel %vm1114, %v1104, 2102212464
  %v1117 = vsel %vm1113, %v1101, %v1116
  %v1118 = vsel %vm1112, %v1115, %v1117
  %v1119 = vsel %vm1111, %v1098, %v1101
  %v1120 = vsel %vm1114, %v1107, 920167782
  %v1121 = vsel %vm1113, %v1104, %v1120
  %v1122 = vsel %vm1112, %v1119, %v1121
  %v1123 = vsel %vm1111, %v1101, %v1104
  %v1124 = vsel %vm1114, %v1110, 1326507024
  %v1125 = vsel %vm1113, %v1107, %v1124
  %v1126 = vsel %vm1112, %v1123, %v1125
  %v1127 = vshll.u32 %v1087, 8
  %v1128 = vmul.u32.u64.compose %v1127, %v1126
  %v1129 = vextract.low.u32 %v1128
  %v1130 = vextract.high.u32 %v1128
  %v1131 = vmul.u32.u64.compose %v1127, %v1122
  %v1132 = vextract.low.u32 %v1131
  %v1133 = vextract.high.u32 %v1131
  %v1134 = vmul.u32 %v1127, %v1118
  %v1135 = vadd.s32 %v1130, %v1132
  %vm1136 = vc.u32 %v1130, %v1132
  %v1137 = vadd.s32 %v1133, 1
  %v1138 = vsel %vm1136, %v1137, %v1133
  %v1139 = vadd.s32 %v1134, %v1138
  %v1140 = vadd.s32 %v1139, 536870912
  %v1141 = vshrl.u32 %v1140, 30
  %v1142 = vshll.u32 %v1141, 30
  %v1143 = vsub.s32 %v1139, %v1142
  %vm1144 = vcmp.lt.s32.totalorder %v1143, 0
  %v1145 = vsub.s32 0, %v1143
  %v1146 = vsel %vm1144, %v1145, %v1143
  %v1147 = vclz %v1146
  %v1148 = vsub.s32 %v1147, 2
  %vm1149 = vcmp.gt.s32.totalorder 0, %v1148
  %v1150 = vsel %vm1149, 0, %v1148
  %v1151 = vsub.s32 32, %v1150
  %v1152 = vshll.u32 %v1143, %v1150
  %v1153 = vshrl.u32 %v1135, %v1151
  %v1154 = vor.u32 %v1152, %v1153
  %v1155 = vsub.s32 4294967266, %v1150
  %v1156 = vadd.s32 %v1155, 127
  %v1157 = vshll.u32 %v1156, 23
  %v1158 = vor.u32 4788187, %v1157
  %v1159 = vand.u32 2147483647, %v1158
  %v1161 = vcvt.s32.f32 %v1154
  %v1162 = vmul.f32 %v1161, %v1159
  %v1163 = vxor.u32 %v1162, 2147483648
  %v1164 = vsel %vm1081, %v1163, %v1162
  %v1165 = vsub.s32 4, %v1141
  %v1166 = vsel %vm1081, %v1165, %v1141
  %v1167 = vsel %vm1080, %v973, %v1164
  %v1168 = vsel %vm1080, 0, %v1166
  %v1169 = vcosq.f32.pop %v1167
  %v1170 = vsinq.f32.pop %v1167
  %vm1171 = vweird.f32 %v973
  %v1172 = vand.u32 %v1168, 3
  %vm1173 = vcmp.lt.s32.totalorder %v1172, 2
  %vm1174 = vcmp.eq.s32.totalorder %v1172, 0
  %v1175 = vxor.u32 %v1170, 2147483648
  %v1176 = vsel %vm1174, %v1169, %v1175
  %vm1177 = vcmp.eq.s32.totalorder %v1172, 2
  %v1178 = vxor.u32 %v1169, 2147483648
  %v1179 = vsel %vm1177, %v1178, %v1170
  %v1180 = vsel %vm1173, %v1176, %v1179
  %v1181 = vsel %vm1171, nan, %v1180
  %v1182 = vmul.f32 %v1078, %v974
  %v1183 = vsub.f32 %v1182, %v1181
  %v1184 = vmul.f32 %v1183, %v974
  %v1185 = vmul.f32 %v1184, 11.016308
  %v1186 = vmul.f32 %v438, %v1185
  %s1187 = scalar_lea.vmem %s1, 56
  %1188 = vst [vmem:[%s1187] sm:$0xff] %v1186
  %v1189 = vmul.f32 %v444, %v1185
  %s1190 = scalar_lea.vmem %s1, 200
  %1191 = vst [vmem:[%s1190] sm:$0xff] %v1189
  %v1192 = vmul.f32 %v451, %v1185
  %s1193 = scalar_lea.vmem %s1, 344
  %1194 = vst [vmem:[%s1193] sm:$0xff] %v1192
  %v1195 = vmul.f32 %v9, 10.904121
  %v1196 = vmul.f32 %v17, 0.091708444
  %v1197 = vand.u32 2147483647, %v1195
  %vm1198 = vcmp.le.f32.partialorder %v1197, 0.7853982
  %vm1199 = vcmp.lt.s32.totalorder %v1195, 0
  %v1200 = vand.u32 %v1195, 2139095040
  %v1201 = vshrl.u32 %v1200, 23
  %v1202 = vsub.s32 %v1201, 127
  %v1203 = vand.u32 2147483647, %v1195
  %v1204 = vand.u32 %v1203, 8388607
  %v1205 = vor.u32 %v1204, 8388608
  %v1206 = vsub.s32 0, %v1205
  %v1207 = vadd.s32 %v1202, 1
  %vm1208 = vcmp.gt.s32.totalorder %v1207, 0
  %v1209 = vsel %vm1208, %v1207, 0
  %v1210 = vshrl.u32 %v1209, 5
  %v1211 = vand.u32 %v1209, 31
  %v1212 = vsub.s32 32, %v1211
  %v1213 = vshrl.u32 683565275, %v1212
  %v1214 = vshll.u32 683565275, %v1211
  %v1215 = vshrl.u32 2475754826, %v1212
  %v1216 = vor.u32 %v1214, %v1215
  %v1217 = vshll.u32 2475754826, %v1211
  %v1218 = vshrl.u32 2131351028, %v1212
  %v1219 = vor.u32 %v1217, %v1218
  %v1220 = vshll.u32 2131351028, %v1211
  %v1221 = vshrl.u32 2102212464, %v1212
  %v1222 = vor.u32 %v1220, %v1221
  %v1223 = vshll.u32 2102212464, %v1211
  %v1224 = vshrl.u32 920167782, %v1212
  %v1225 = vor.u32 %v1223, %v1224
  %v1226 = vshll.u32 920167782, %v1211
  %v1227 = vshrl.u32 1326507024, %v1212
  %v1228 = vor.u32 %v1226, %v1227
  %vm1229 = vcmp.lt.s32.totalorder %v1210, 1
  %vm1230 = vcmp.lt.s32.totalorder %v1210, 2
  %vm1231 = vcmp.lt.s32.totalorder %v1210, 3
  %vm1232 = vcmp.lt.s32.totalorder %v1210, 4
  %v1233 = vsel %vm1229, %v1213, %v1216
  %v1234 = vsel %vm1232, %v1222, 2102212464
  %v1235 = vsel %vm1231, %v1219, %v1234
  %v1236 = vsel %vm1230, %v1233, %v1235
  %v1237 = vsel %vm1229, %v1216, %v1219
  %v1238 = vsel %vm1232, %v1225, 920167782
  %v1239 = vsel %vm1231, %v1222, %v1238
  %v1240 = vsel %vm1230, %v1237, %v1239
  %v1241 = vsel %vm1229, %v1219, %v1222
  %v1242 = vsel %vm1232, %v1228, 1326507024
  %v1243 = vsel %vm1231, %v1225, %v1242
  %v1244 = vsel %vm1230, %v1241, %v1243
  %v1245 = vshll.u32 %v1205, 8
  %v1246 = vmul.u32.u64.compose %v1245, %v1244
  %v1247 = vextract.low.u32 %v1246
  %v1248 = vextract.high.u32 %v1246
  %v1249 = vmul.u32.u64.compose %v1245, %v1240
  %v1250 = vextract.low.u32 %v1249
  %v1251 = vextract.high.u32 %v1249
  %v1252 = vmul.u32 %v1245, %v1236
  %v1253 = vadd.s32 %v1248, %v1250
  %vm1254 = vc.u32 %v1248, %v1250
  %v1255 = vadd.s32 %v1251, 1
  %v1256 = vsel %vm1254, %v1255, %v1251
  %v1257 = vadd.s32 %v1252, %v1256
  %v1258 = vadd.s32 %v1257, 536870912
  %v1259 = vshrl.u32 %v1258, 30
  %v1260 = vshll.u32 %v1259, 30
  %v1261 = vsub.s32 %v1257, %v1260
  %vm1262 = vcmp.lt.s32.totalorder %v1261, 0
  %v1263 = vsub.s32 0, %v1261
  %v1264 = vsel %vm1262, %v1263, %v1261
  %v1265 = vclz %v1264
  %v1266 = vsub.s32 %v1265, 2
  %vm1267 = vcmp.gt.s32.totalorder 0, %v1266
  %v1268 = vsel %vm1267, 0, %v1266
  %v1269 = vsub.s32 32, %v1268
  %v1270 = vshll.u32 %v1261, %v1268
  %v1271 = vshrl.u32 %v1253, %v1269
  %v1272 = vor.u32 %v1270, %v1271
  %v1273 = vsub.s32 4294967266, %v1268
  %v1274 = vadd.s32 %v1273, 127
  %v1275 = vshll.u32 %v1274, 23
  %v1276 = vor.u32 4788187, %v1275
  %v1277 = vand.u32 2147483647, %v1276
  %v1279 = vcvt.s32.f32 %v1272
  %v1280 = vmul.f32 %v1279, %v1277
  %v1281 = vxor.u32 %v1280, 2147483648
  %v1282 = vsel %vm1199, %v1281, %v1280
  %v1283 = vsub.s32 4, %v1259
  %v1284 = vsel %vm1199, %v1283, %v1259
  %v1285 = vsel %vm1198, %v1195, %v1282
  %v1286 = vsel %vm1198, 0, %v1284
  %v1287 = vcosq.f32.pop %v1285
  %v1288 = vsinq.f32.pop %v1285
  %vm1289 = vweird.f32 %v1195
  %v1290 = vadd.s32 %v1286, 3
  %v1291 = vand.u32 %v1290, 3
  %vm1292 = vcmp.lt.s32.totalorder %v1291, 2
  %vm1293 = vcmp.eq.s32.totalorder %v1291, 0
  %v1294 = vxor.u32 %v1288, 2147483648
  %v1295 = vsel %vm1293, %v1287, %v1294
  %vm1296 = vcmp.eq.s32.totalorder %v1291, 2
  %v1297 = vxor.u32 %v1287, 2147483648
  %v1298 = vsel %vm1296, %v1297, %v1288
  %v1299 = vsel %vm1292, %v1295, %v1298
  %v1300 = vsel %vm1289, nan, %v1299
  %v1301 = vand.u32 2147483647, %v1195
  %vm1302 = vcmp.le.f32.partialorder %v1301, 0.7853982
  %vm1303 = vcmp.lt.s32.totalorder %v1195, 0
  %v1304 = vand.u32 %v1195, 2139095040
  %v1305 = vshrl.u32 %v1304, 23
  %v1306 = vsub.s32 %v1305, 127
  %v1307 = vand.u32 2147483647, %v1195
  %v1308 = vand.u32 %v1307, 8388607
  %v1309 = vor.u32 %v1308, 8388608
  %v1310 = vsub.s32 0, %v1309
  %v1311 = vadd.s32 %v1306, 1
  %vm1312 = vcmp.gt.s32.totalorder %v1311, 0
  %v1313 = vsel %vm1312, %v1311, 0
  %v1314 = vshrl.u32 %v1313, 5
  %v1315 = vand.u32 %v1313, 31
  %v1316 = vsub.s32 32, %v1315
  %v1317 = vshrl.u32 683565275, %v1316
  %v1318 = vshll.u32 683565275, %v1315
  %v1319 = vshrl.u32 2475754826, %v1316
  %v1320 = vor.u32 %v1318, %v1319
  %v1321 = vshll.u32 2475754826, %v1315
  %v1322 = vshrl.u32 2131351028, %v1316
  %v1323 = vor.u32 %v1321, %v1322
  %v1324 = vshll.u32 2131351028, %v1315
  %v1325 = vshrl.u32 2102212464, %v1316
  %v1326 = vor.u32 %v1324, %v1325
  %v1327 = vshll.u32 2102212464, %v1315
  %v1328 = vshrl.u32 920167782, %v1316
  %v1329 = vor.u32 %v1327, %v1328
  %v1330 = vshll.u32 920167782, %v1315
  %v1331 = vshrl.u32 1326507024, %v1316
  %v1332 = vor.u32 %v1330, %v1331
  %vm1333 = vcmp.lt.s32.totalorder %v1314, 1
  %vm1334 = vcmp.lt.s32.totalorder %v1314, 2
  %vm1335 = vcmp.lt.s32.totalorder %v1314, 3
  %vm1336 = vcmp.lt.s32.totalorder %v1314, 4
  %v1337 = vsel %vm1333, %v1317, %v1320
  %v1338 = vsel %vm1336, %v1326, 2102212464
  %v1339 = vsel %vm1335, %v1323, %v1338
  %v1340 = vsel %vm1334, %v1337, %v1339
  %v1341 = vsel %vm1333, %v1320, %v1323
  %v1342 = vsel %vm1336, %v1329, 920167782
  %v1343 = vsel %vm1335, %v1326, %v1342
  %v1344 = vsel %vm1334, %v1341, %v1343
  %v1345 = vsel %vm1333, %v1323, %v1326
  %v1346 = vsel %vm1336, %v1332, 1326507024
  %v1347 = vsel %vm1335, %v1329, %v1346
  %v1348 = vsel %vm1334, %v1345, %v1347
  %v1349 = vshll.u32 %v1309, 8
  %v1350 = vmul.u32.u64.compose %v1349, %v1348
  %v1351 = vextract.low.u32 %v1350
  %v1352 = vextract.high.u32 %v1350
  %v1353 = vmul.u32.u64.compose %v1349, %v1344
  %v1354 = vextract.low.u32 %v1353
  %v1355 = vextract.high.u32 %v1353
  %v1356 = vmul.u32 %v1349, %v1340
  %v1357 = vadd.s32 %v1352, %v1354
  %vm1358 = vc.u32 %v1352, %v1354
  %v1359 = vadd.s32 %v1355, 1
  %v1360 = vsel %vm1358, %v1359, %v1355
  %v1361 = vadd.s32 %v1356, %v1360
  %v1362 = vadd.s32 %v1361, 536870912
  %v1363 = vshrl.u32 %v1362, 30
  %v1364 = vshll.u32 %v1363, 30
  %v1365 = vsub.s32 %v1361, %v1364
  %vm1366 = vcmp.lt.s32.totalorder %v1365, 0
  %v1367 = vsub.s32 0, %v1365
  %v1368 = vsel %vm1366, %v1367, %v1365
  %v1369 = vclz %v1368
  %v1370 = vsub.s32 %v1369, 2
  %vm1371 = vcmp.gt.s32.totalorder 0, %v1370
  %v1372 = vsel %vm1371, 0, %v1370
  %v1373 = vsub.s32 32, %v1372
  %v1374 = vshll.u32 %v1365, %v1372
  %v1375 = vshrl.u32 %v1357, %v1373
  %v1376 = vor.u32 %v1374, %v1375
  %v1377 = vsub.s32 4294967266, %v1372
  %v1378 = vadd.s32 %v1377, 127
  %v1379 = vshll.u32 %v1378, 23
  %v1380 = vor.u32 4788187, %v1379
  %v1381 = vand.u32 2147483647, %v1380
  %v1383 = vcvt.s32.f32 %v1376
  %v1384 = vmul.f32 %v1383, %v1381
  %v1385 = vxor.u32 %v1384, 2147483648
  %v1386 = vsel %vm1303, %v1385, %v1384
  %v1387 = vsub.s32 4, %v1363
  %v1388 = vsel %vm1303, %v1387, %v1363
  %v1389 = vsel %vm1302, %v1195, %v1386
  %v1390 = vsel %vm1302, 0, %v1388
  %v1391 = vcosq.f32.pop %v1389
  %v1392 = vsinq.f32.pop %v1389
  %vm1393 = vweird.f32 %v1195
  %v1394 = vand.u32 %v1390, 3
  %vm1395 = vcmp.lt.s32.totalorder %v1394, 2
  %vm1396 = vcmp.eq.s32.totalorder %v1394, 0
  %v1397 = vxor.u32 %v1392, 2147483648
  %v1398 = vsel %vm1396, %v1391, %v1397
  %vm1399 = vcmp.eq.s32.totalorder %v1394, 2
  %v1400 = vxor.u32 %v1391, 2147483648
  %v1401 = vsel %vm1399, %v1400, %v1392
  %v1402 = vsel %vm1395, %v1398, %v1401
  %v1403 = vsel %vm1393, nan, %v1402
  %v1404 = vmul.f32 %v1300, %v1196
  %v1405 = vsub.f32 %v1404, %v1403
  %v1406 = vmul.f32 %v1405, %v1196
  %v1407 = vmul.f32 %v1406, 15.485469
  %v1408 = vmul.f32 %v438, %v1407
  %s1409 = scalar_lea.vmem %s1, 64
  %1410 = vst [vmem:[%s1409] sm:$0xff] %v1408
  %v1411 = vmul.f32 %v444, %v1407
  %s1412 = scalar_lea.vmem %s1, 208
  %1413 = vst [vmem:[%s1412] sm:$0xff] %v1411
  %v1414 = vmul.f32 %v451, %v1407
  %s1415 = scalar_lea.vmem %s1, 352
  %1416 = vst [vmem:[%s1415] sm:$0xff] %v1414
  %v1417 = vmul.f32 %v9, 14.066194
  %v1418 = vmul.f32 %v17, 0.071092434
  %v1419 = vand.u32 2147483647, %v1417
  %vm1420 = vcmp.le.f32.partialorder %v1419, 0.7853982
  %vm1421 = vcmp.lt.s32.totalorder %v1417, 0
  %v1422 = vand.u32 %v1417, 2139095040
  %v1423 = vshrl.u32 %v1422, 23
  %v1424 = vsub.s32 %v1423, 127
  %v1425 = vand.u32 2147483647, %v1417
  %v1426 = vand.u32 %v1425, 8388607
  %v1427 = vor.u32 %v1426, 8388608
  %v1428 = vsub.s32 0, %v1427
  %v1429 = vadd.s32 %v1424, 1
  %vm1430 = vcmp.gt.s32.totalorder %v1429, 0
  %v1431 = vsel %vm1430, %v1429, 0
  %v1432 = vshrl.u32 %v1431, 5
  %v1433 = vand.u32 %v1431, 31
  %v1434 = vsub.s32 32, %v1433
  %v1435 = vshrl.u32 683565275, %v1434
  %v1436 = vshll.u32 683565275, %v1433
  %v1437 = vshrl.u32 2475754826, %v1434
  %v1438 = vor.u32 %v1436, %v1437
  %v1439 = vshll.u32 2475754826, %v1433
  %v1440 = vshrl.u32 2131351028, %v1434
  %v1441 = vor.u32 %v1439, %v1440
  %v1442 = vshll.u32 2131351028, %v1433
  %v1443 = vshrl.u32 2102212464, %v1434
  %v1444 = vor.u32 %v1442, %v1443
  %v1445 = vshll.u32 2102212464, %v1433
  %v1446 = vshrl.u32 920167782, %v1434
  %v1447 = vor.u32 %v1445, %v1446
  %v1448 = vshll.u32 920167782, %v1433
  %v1449 = vshrl.u32 1326507024, %v1434
  %v1450 = vor.u32 %v1448, %v1449
  %vm1451 = vcmp.lt.s32.totalorder %v1432, 1
  %vm1452 = vcmp.lt.s32.totalorder %v1432, 2
  %vm1453 = vcmp.lt.s32.totalorder %v1432, 3
  %vm1454 = vcmp.lt.s32.totalorder %v1432, 4
  %v1455 = vsel %vm1451, %v1435, %v1438
  %v1456 = vsel %vm1454, %v1444, 2102212464
  %v1457 = vsel %vm1453, %v1441, %v1456
  %v1458 = vsel %vm1452, %v1455, %v1457
  %v1459 = vsel %vm1451, %v1438, %v1441
  %v1460 = vsel %vm1454, %v1447, 920167782
  %v1461 = vsel %vm1453, %v1444, %v1460
  %v1462 = vsel %vm1452, %v1459, %v1461
  %v1463 = vsel %vm1451, %v1441, %v1444
  %v1464 = vsel %vm1454, %v1450, 1326507024
  %v1465 = vsel %vm1453, %v1447, %v1464
  %v1466 = vsel %vm1452, %v1463, %v1465
  %v1467 = vshll.u32 %v1427, 8
  %v1468 = vmul.u32.u64.compose %v1467, %v1466
  %v1469 = vextract.low.u32 %v1468
  %v1470 = vextract.high.u32 %v1468
  %v1471 = vmul.u32.u64.compose %v1467, %v1462
  %v1472 = vextract.low.u32 %v1471
  %v1473 = vextract.high.u32 %v1471
  %v1474 = vmul.u32 %v1467, %v1458
  %v1475 = vadd.s32 %v1470, %v1472
  %vm1476 = vc.u32 %v1470, %v1472
  %v1477 = vadd.s32 %v1473, 1
  %v1478 = vsel %vm1476, %v1477, %v1473
  %v1479 = vadd.s32 %v1474, %v1478
  %v1480 = vadd.s32 %v1479, 536870912
  %v1481 = vshrl.u32 %v1480, 30
  %v1482 = vshll.u32 %v1481, 30
  %v1483 = vsub.s32 %v1479, %v1482
  %vm1484 = vcmp.lt.s32.totalorder %v1483, 0
  %v1485 = vsub.s32 0, %v1483
  %v1486 = vsel %vm1484, %v1485, %v1483
  %v1487 = vclz %v1486
  %v1488 = vsub.s32 %v1487, 2
  %vm1489 = vcmp.gt.s32.totalorder 0, %v1488
  %v1490 = vsel %vm1489, 0, %v1488
  %v1491 = vsub.s32 32, %v1490
  %v1492 = vshll.u32 %v1483, %v1490
  %v1493 = vshrl.u32 %v1475, %v1491
  %v1494 = vor.u32 %v1492, %v1493
  %v1495 = vsub.s32 4294967266, %v1490
  %v1496 = vadd.s32 %v1495, 127
  %v1497 = vshll.u32 %v1496, 23
  %v1498 = vor.u32 4788187, %v1497
  %v1499 = vand.u32 2147483647, %v1498
  %v1501 = vcvt.s32.f32 %v1494
  %v1502 = vmul.f32 %v1501, %v1499
  %v1503 = vxor.u32 %v1502, 2147483648
  %v1504 = vsel %vm1421, %v1503, %v1502
  %v1505 = vsub.s32 4, %v1481
  %v1506 = vsel %vm1421, %v1505, %v1481
  %v1507 = vsel %vm1420, %v1417, %v1504
  %v1508 = vsel %vm1420, 0, %v1506
  %v1509 = vcosq.f32.pop %v1507
  %v1510 = vsinq.f32.pop %v1507
  %vm1511 = vweird.f32 %v1417
  %v1512 = vadd.s32 %v1508, 3
  %v1513 = vand.u32 %v1512, 3
  %vm1514 = vcmp.lt.s32.totalorder %v1513, 2
  %vm1515 = vcmp.eq.s32.totalorder %v1513, 0
  %v1516 = vxor.u32 %v1510, 2147483648
  %v1517 = vsel %vm1515, %v1509, %v1516
  %vm1518 = vcmp.eq.s32.totalorder %v1513, 2
  %v1519 = vxor.u32 %v1509, 2147483648
  %v1520 = vsel %vm1518, %v1519, %v1510
  %v1521 = vsel %vm1514, %v1517, %v1520
  %v1522 = vsel %vm1511, nan, %v1521
  %v1523 = vand.u32 2147483647, %v1417
  %vm1524 = vcmp.le.f32.partialorder %v1523, 0.7853982
  %vm1525 = vcmp.lt.s32.totalorder %v1417, 0
  %v1526 = vand.u32 %v1417, 2139095040
  %v1527 = vshrl.u32 %v1526, 23
  %v1528 = vsub.s32 %v1527, 127
  %v1529 = vand.u32 2147483647, %v1417
  %v1530 = vand.u32 %v1529, 8388607
  %v1531 = vor.u32 %v1530, 8388608
  %v1532 = vsub.s32 0, %v1531
  %v1533 = vadd.s32 %v1528, 1
  %vm1534 = vcmp.gt.s32.totalorder %v1533, 0
  %v1535 = vsel %vm1534, %v1533, 0
  %v1536 = vshrl.u32 %v1535, 5
  %v1537 = vand.u32 %v1535, 31
  %v1538 = vsub.s32 32, %v1537
  %v1539 = vshrl.u32 683565275, %v1538
  %v1540 = vshll.u32 683565275, %v1537
  %v1541 = vshrl.u32 2475754826, %v1538
  %v1542 = vor.u32 %v1540, %v1541
  %v1543 = vshll.u32 2475754826, %v1537
  %v1544 = vshrl.u32 2131351028, %v1538
  %v1545 = vor.u32 %v1543, %v1544
  %v1546 = vshll.u32 2131351028, %v1537
  %v1547 = vshrl.u32 2102212464, %v1538
  %v1548 = vor.u32 %v1546, %v1547
  %v1549 = vshll.u32 2102212464, %v1537
  %v1550 = vshrl.u32 920167782, %v1538
  %v1551 = vor.u32 %v1549, %v1550
  %v1552 = vshll.u32 920167782, %v1537
  %v1553 = vshrl.u32 1326507024, %v1538
  %v1554 = vor.u32 %v1552, %v1553
  %vm1555 = vcmp.lt.s32.totalorder %v1536, 1
  %vm1556 = vcmp.lt.s32.totalorder %v1536, 2
  %vm1557 = vcmp.lt.s32.totalorder %v1536, 3
  %vm1558 = vcmp.lt.s32.totalorder %v1536, 4
  %v1559 = vsel %vm1555, %v1539, %v1542
  %v1560 = vsel %vm1558, %v1548, 2102212464
  %v1561 = vsel %vm1557, %v1545, %v1560
  %v1562 = vsel %vm1556, %v1559, %v1561
  %v1563 = vsel %vm1555, %v1542, %v1545
  %v1564 = vsel %vm1558, %v1551, 920167782
  %v1565 = vsel %vm1557, %v1548, %v1564
  %v1566 = vsel %vm1556, %v1563, %v1565
  %v1567 = vsel %vm1555, %v1545, %v1548
  %v1568 = vsel %vm1558, %v1554, 1326507024
  %v1569 = vsel %vm1557, %v1551, %v1568
  %v1570 = vsel %vm1556, %v1567, %v1569
  %v1571 = vshll.u32 %v1531, 8
  %v1572 = vmul.u32.u64.compose %v1571, %v1570
  %v1573 = vextract.low.u32 %v1572
  %v1574 = vextract.high.u32 %v1572
  %v1575 = vmul.u32.u64.compose %v1571, %v1566
  %v1576 = vextract.low.u32 %v1575
  %v1577 = vextract.high.u32 %v1575
  %v1578 = vmul.u32 %v1571, %v1562
  %v1579 = vadd.s32 %v1574, %v1576
  %vm1580 = vc.u32 %v1574, %v1576
  %v1581 = vadd.s32 %v1577, 1
  %v1582 = vsel %vm1580, %v1581, %v1577
  %v1583 = vadd.s32 %v1578, %v1582
  %v1584 = vadd.s32 %v1583, 536870912
  %v1585 = vshrl.u32 %v1584, 30
  %v1586 = vshll.u32 %v1585, 30
  %v1587 = vsub.s32 %v1583, %v1586
  %vm1588 = vcmp.lt.s32.totalorder %v1587, 0
  %v1589 = vsub.s32 0, %v1587
  %v1590 = vsel %vm1588, %v1589, %v1587
  %v1591 = vclz %v1590
  %v1592 = vsub.s32 %v1591, 2
  %vm1593 = vcmp.gt.s32.totalorder 0, %v1592
  %v1594 = vsel %vm1593, 0, %v1592
  %v1595 = vsub.s32 32, %v1594
  %v1596 = vshll.u32 %v1587, %v1594
  %v1597 = vshrl.u32 %v1579, %v1595
  %v1598 = vor.u32 %v1596, %v1597
  %v1599 = vsub.s32 4294967266, %v1594
  %v1600 = vadd.s32 %v1599, 127
  %v1601 = vshll.u32 %v1600, 23
  %v1602 = vor.u32 4788187, %v1601
  %v1603 = vand.u32 2147483647, %v1602
  %v1605 = vcvt.s32.f32 %v1598
  %v1606 = vmul.f32 %v1605, %v1603
  %v1607 = vxor.u32 %v1606, 2147483648
  %v1608 = vsel %vm1525, %v1607, %v1606
  %v1609 = vsub.s32 4, %v1585
  %v1610 = vsel %vm1525, %v1609, %v1585
  %v1611 = vsel %vm1524, %v1417, %v1608
  %v1612 = vsel %vm1524, 0, %v1610
  %v1613 = vcosq.f32.pop %v1611
  %v1614 = vsinq.f32.pop %v1611
  %vm1615 = vweird.f32 %v1417
  %v1616 = vand.u32 %v1612, 3
  %vm1617 = vcmp.lt.s32.totalorder %v1616, 2
  %vm1618 = vcmp.eq.s32.totalorder %v1616, 0
  %v1619 = vxor.u32 %v1614, 2147483648
  %v1620 = vsel %vm1618, %v1613, %v1619
  %vm1621 = vcmp.eq.s32.totalorder %v1616, 2
  %v1622 = vxor.u32 %v1613, 2147483648
  %v1623 = vsel %vm1621, %v1622, %v1614
  %v1624 = vsel %vm1617, %v1620, %v1623
  %v1625 = vsel %vm1615, nan, %v1624
  %v1626 = vmul.f32 %v1522, %v1418
  %v1627 = vsub.f32 %v1626, %v1625
  %v1628 = vmul.f32 %v1627, %v1418
  %v1629 = vmul.f32 %v1628, 19.942808
  %v1630 = vmul.f32 %v438, %v1629
  %s1631 = scalar_lea.vmem %s1, 72
  %1632 = vst [vmem:[%s1631] sm:$0xff] %v1630
  %v1633 = vmul.f32 %v444, %v1629
  %s1634 = scalar_lea.vmem %s1, 216
  %1635 = vst [vmem:[%s1634] sm:$0xff] %v1633
  %v1636 = vmul.f32 %v451, %v1629
  %s1637 = scalar_lea.vmem %s1, 360
  %1638 = vst [vmem:[%s1637] sm:$0xff] %v1636
  %v1639 = vmul.f32 %v9, 17.220755
  %v1640 = vmul.f32 %v17, 0.058069464
  %v1641 = vand.u32 2147483647, %v1639
  %vm1642 = vcmp.le.f32.partialorder %v1641, 0.7853982
  %vm1643 = vcmp.lt.s32.totalorder %v1639, 0
  %v1644 = vand.u32 %v1639, 2139095040
  %v1645 = vshrl.u32 %v1644, 23
  %v1646 = vsub.s32 %v1645, 127
  %v1647 = vand.u32 2147483647, %v1639
  %v1648 = vand.u32 %v1647, 8388607
  %v1649 = vor.u32 %v1648, 8388608
  %v1650 = vsub.s32 0, %v1649
  %v1651 = vadd.s32 %v1646, 1
  %vm1652 = vcmp.gt.s32.totalorder %v1651, 0
  %v1653 = vsel %vm1652, %v1651, 0
  %v1654 = vshrl.u32 %v1653, 5
  %v1655 = vand.u32 %v1653, 31
  %v1656 = vsub.s32 32, %v1655
  %v1657 = vshrl.u32 683565275, %v1656
  %v1658 = vshll.u32 683565275, %v1655
  %v1659 = vshrl.u32 2475754826, %v1656
  %v1660 = vor.u32 %v1658, %v1659
  %v1661 = vshll.u32 2475754826, %v1655
  %v1662 = vshrl.u32 2131351028, %v1656
  %v1663 = vor.u32 %v1661, %v1662
  %v1664 = vshll.u32 2131351028, %v1655
  %v1665 = vshrl.u32 2102212464, %v1656
  %v1666 = vor.u32 %v1664, %v1665
  %v1667 = vshll.u32 2102212464, %v1655
  %v1668 = vshrl.u32 920167782, %v1656
  %v1669 = vor.u32 %v1667, %v1668
  %v1670 = vshll.u32 920167782, %v1655
  %v1671 = vshrl.u32 1326507024, %v1656
  %v1672 = vor.u32 %v1670, %v1671
  %vm1673 = vcmp.lt.s32.totalorder %v1654, 1
  %vm1674 = vcmp.lt.s32.totalorder %v1654, 2
  %vm1675 = vcmp.lt.s32.totalorder %v1654, 3
  %vm1676 = vcmp.lt.s32.totalorder %v1654, 4
  %v1677 = vsel %vm1673, %v1657, %v1660
  %v1678 = vsel %vm1676, %v1666, 2102212464
  %v1679 = vsel %vm1675, %v1663, %v1678
  %v1680 = vsel %vm1674, %v1677, %v1679
  %v1681 = vsel %vm1673, %v1660, %v1663
  %v1682 = vsel %vm1676, %v1669, 920167782
  %v1683 = vsel %vm1675, %v1666, %v1682
  %v1684 = vsel %vm1674, %v1681, %v1683
  %v1685 = vsel %vm1673, %v1663, %v1666
  %v1686 = vsel %vm1676, %v1672, 1326507024
  %v1687 = vsel %vm1675, %v1669, %v1686
  %v1688 = vsel %vm1674, %v1685, %v1687
  %v1689 = vshll.u32 %v1649, 8
  %v1690 = vmul.u32.u64.compose %v1689, %v1688
  %v1691 = vextract.low.u32 %v1690
  %v1692 = vextract.high.u32 %v1690
  %v1693 = vmul.u32.u64.compose %v1689, %v1684
  %v1694 = vextract.low.u32 %v1693
  %v1695 = vextract.high.u32 %v1693
  %v1696 = vmul.u32 %v1689, %v1680
  %v1697 = vadd.s32 %v1692, %v1694
  %vm1698 = vc.u32 %v1692, %v1694
  %v1699 = vadd.s32 %v1695, 1
  %v1700 = vsel %vm1698, %v1699, %v1695
  %v1701 = vadd.s32 %v1696, %v1700
  %v1702 = vadd.s32 %v1701, 536870912
  %v1703 = vshrl.u32 %v1702, 30
  %v1704 = vshll.u32 %v1703, 30
  %v1705 = vsub.s32 %v1701, %v1704
  %vm1706 = vcmp.lt.s32.totalorder %v1705, 0
  %v1707 = vsub.s32 0, %v1705
  %v1708 = vsel %vm1706, %v1707, %v1705
  %v1709 = vclz %v1708
  %v1710 = vsub.s32 %v1709, 2
  %vm1711 = vcmp.gt.s32.totalorder 0, %v1710
  %v1712 = vsel %vm1711, 0, %v1710
  %v1713 = vsub.s32 32, %v1712
  %v1714 = vshll.u32 %v1705, %v1712
  %v1715 = vshrl.u32 %v1697, %v1713
  %v1716 = vor.u32 %v1714, %v1715
  %v1717 = vsub.s32 4294967266, %v1712
  %v1718 = vadd.s32 %v1717, 127
  %v1719 = vshll.u32 %v1718, 23
  %v1720 = vor.u32 4788187, %v1719
  %v1721 = vand.u32 2147483647, %v1720
  %v1723 = vcvt.s32.f32 %v1716
  %v1724 = vmul.f32 %v1723, %v1721
  %v1725 = vxor.u32 %v1724, 2147483648
  %v1726 = vsel %vm1643, %v1725, %v1724
  %v1727 = vsub.s32 4, %v1703
  %v1728 = vsel %vm1643, %v1727, %v1703
  %v1729 = vsel %vm1642, %v1639, %v1726
  %v1730 = vsel %vm1642, 0, %v1728
  %v1731 = vcosq.f32.pop %v1729
  %v1732 = vsinq.f32.pop %v1729
  %vm1733 = vweird.f32 %v1639
  %v1734 = vadd.s32 %v1730, 3
  %v1735 = vand.u32 %v1734, 3
  %vm1736 = vcmp.lt.s32.totalorder %v1735, 2
  %vm1737 = vcmp.eq.s32.totalorder %v1735, 0
  %v1738 = vxor.u32 %v1732, 2147483648
  %v1739 = vsel %vm1737, %v1731, %v1738
  %vm1740 = vcmp.eq.s32.totalorder %v1735, 2
  %v1741 = vxor.u32 %v1731, 2147483648
  %v1742 = vsel %vm1740, %v1741, %v1732
  %v1743 = vsel %vm1736, %v1739, %v1742
  %v1744 = vsel %vm1733, nan, %v1743
  %v1745 = vand.u32 2147483647, %v1639
  %vm1746 = vcmp.le.f32.partialorder %v1745, 0.7853982
  %vm1747 = vcmp.lt.s32.totalorder %v1639, 0
  %v1748 = vand.u32 %v1639, 2139095040
  %v1749 = vshrl.u32 %v1748, 23
  %v1750 = vsub.s32 %v1749, 127
  %v1751 = vand.u32 2147483647, %v1639
  %v1752 = vand.u32 %v1751, 8388607
  %v1753 = vor.u32 %v1752, 8388608
  %v1754 = vsub.s32 0, %v1753
  %v1755 = vadd.s32 %v1750, 1
  %vm1756 = vcmp.gt.s32.totalorder %v1755, 0
  %v1757 = vsel %vm1756, %v1755, 0
  %v1758 = vshrl.u32 %v1757, 5
  %v1759 = vand.u32 %v1757, 31
  %v1760 = vsub.s32 32, %v1759
  %v1761 = vshrl.u32 683565275, %v1760
  %v1762 = vshll.u32 683565275, %v1759
  %v1763 = vshrl.u32 2475754826, %v1760
  %v1764 = vor.u32 %v1762, %v1763
  %v1765 = vshll.u32 2475754826, %v1759
  %v1766 = vshrl.u32 2131351028, %v1760
  %v1767 = vor.u32 %v1765, %v1766
  %v1768 = vshll.u32 2131351028, %v1759
  %v1769 = vshrl.u32 2102212464, %v1760
  %v1770 = vor.u32 %v1768, %v1769
  %v1771 = vshll.u32 2102212464, %v1759
  %v1772 = vshrl.u32 920167782, %v1760
  %v1773 = vor.u32 %v1771, %v1772
  %v1774 = vshll.u32 920167782, %v1759
  %v1775 = vshrl.u32 1326507024, %v1760
  %v1776 = vor.u32 %v1774, %v1775
  %vm1777 = vcmp.lt.s32.totalorder %v1758, 1
  %vm1778 = vcmp.lt.s32.totalorder %v1758, 2
  %vm1779 = vcmp.lt.s32.totalorder %v1758, 3
  %vm1780 = vcmp.lt.s32.totalorder %v1758, 4
  %v1781 = vsel %vm1777, %v1761, %v1764
  %v1782 = vsel %vm1780, %v1770, 2102212464
  %v1783 = vsel %vm1779, %v1767, %v1782
  %v1784 = vsel %vm1778, %v1781, %v1783
  %v1785 = vsel %vm1777, %v1764, %v1767
  %v1786 = vsel %vm1780, %v1773, 920167782
  %v1787 = vsel %vm1779, %v1770, %v1786
  %v1788 = vsel %vm1778, %v1785, %v1787
  %v1789 = vsel %vm1777, %v1767, %v1770
  %v1790 = vsel %vm1780, %v1776, 1326507024
  %v1791 = vsel %vm1779, %v1773, %v1790
  %v1792 = vsel %vm1778, %v1789, %v1791
  %v1793 = vshll.u32 %v1753, 8
  %v1794 = vmul.u32.u64.compose %v1793, %v1792
  %v1795 = vextract.low.u32 %v1794
  %v1796 = vextract.high.u32 %v1794
  %v1797 = vmul.u32.u64.compose %v1793, %v1788
  %v1798 = vextract.low.u32 %v1797
  %v1799 = vextract.high.u32 %v1797
  %v1800 = vmul.u32 %v1793, %v1784
  %v1801 = vadd.s32 %v1796, %v1798
  %vm1802 = vc.u32 %v1796, %v1798
  %v1803 = vadd.s32 %v1799, 1
  %v1804 = vsel %vm1802, %v1803, %v1799
  %v1805 = vadd.s32 %v1800, %v1804
  %v1806 = vadd.s32 %v1805, 536870912
  %v1807 = vshrl.u32 %v1806, 30
  %v1808 = vshll.u32 %v1807, 30
  %v1809 = vsub.s32 %v1805, %v1808
  %vm1810 = vcmp.lt.s32.totalorder %v1809, 0
  %v1811 = vsub.s32 0, %v1809
  %v1812 = vsel %vm1810, %v1811, %v1809
  %v1813 = vclz %v1812
  %v1814 = vsub.s32 %v1813, 2
  %vm1815 = vcmp.gt.s32.totalorder 0, %v1814
  %v1816 = vsel %vm1815, 0, %v1814
  %v1817 = vsub.s32 32, %v1816
  %v1818 = vshll.u32 %v1809, %v1816
  %v1819 = vshrl.u32 %v1801, %v1817
  %v1820 = vor.u32 %v1818, %v1819
  %v1821 = vsub.s32 4294967266, %v1816
  %v1822 = vadd.s32 %v1821, 127
  %v1823 = vshll.u32 %v1822, 23
  %v1824 = vor.u32 4788187, %v1823
  %v1825 = vand.u32 2147483647, %v1824
  %v1827 = vcvt.s32.f32 %v1820
  %v1828 = vmul.f32 %v1827, %v1825
  %v1829 = vxor.u32 %v1828, 2147483648
  %v1830 = vsel %vm1747, %v1829, %v1828
  %v1831 = vsub.s32 4, %v1807
  %v1832 = vsel %vm1747, %v1831, %v1807
  %v1833 = vsel %vm1746, %v1639, %v1830
  %v1834 = vsel %vm1746, 0, %v1832
  %v1835 = vcosq.f32.pop %v1833
  %v1836 = vsinq.f32.pop %v1833
  %vm1837 = vweird.f32 %v1639
  %v1838 = vand.u32 %v1834, 3
  %vm1839 = vcmp.lt.s32.totalorder %v1838, 2
  %vm1840 = vcmp.eq.s32.totalorder %v1838, 0
  %v1841 = vxor.u32 %v1836, 2147483648
  %v1842 = vsel %vm1840, %v1835, %v1841
  %vm1843 = vcmp.eq.s32.totalorder %v1838, 2
  %v1844 = vxor.u32 %v1835, 2147483648
  %v1845 = vsel %vm1843, %v1844, %v1836
  %v1846 = vsel %vm1839, %v1842, %v1845
  %v1847 = vsel %vm1837, nan, %v1846
  %v1848 = vmul.f32 %v1744, %v1640
  %v1849 = vsub.f32 %v1848, %v1847
  %v1850 = vmul.f32 %v1849, %v1640
  %v1851 = vmul.f32 %v1850, 24.394852
  %v1852 = vmul.f32 %v438, %v1851
  %s1853 = scalar_lea.vmem %s1, 80
  %1854 = vst [vmem:[%s1853] sm:$0xff] %v1852
  %v1855 = vmul.f32 %v444, %v1851
  %s1856 = scalar_lea.vmem %s1, 224
  %1857 = vst [vmem:[%s1856] sm:$0xff] %v1855
  %v1858 = vmul.f32 %v451, %v1851
  %s1859 = scalar_lea.vmem %s1, 368
  %1860 = vst [vmem:[%s1859] sm:$0xff] %v1858
  %v1861 = vmul.f32 %v9, 20.371304
  %v1862 = vmul.f32 %v17, 0.04908866
  %v1863 = vand.u32 2147483647, %v1861
  %vm1864 = vcmp.le.f32.partialorder %v1863, 0.7853982
  %vm1865 = vcmp.lt.s32.totalorder %v1861, 0
  %v1866 = vand.u32 %v1861, 2139095040
  %v1867 = vshrl.u32 %v1866, 23
  %v1868 = vsub.s32 %v1867, 127
  %v1869 = vand.u32 2147483647, %v1861
  %v1870 = vand.u32 %v1869, 8388607
  %v1871 = vor.u32 %v1870, 8388608
  %v1872 = vsub.s32 0, %v1871
  %v1873 = vadd.s32 %v1868, 1
  %vm1874 = vcmp.gt.s32.totalorder %v1873, 0
  %v1875 = vsel %vm1874, %v1873, 0
  %v1876 = vshrl.u32 %v1875, 5
  %v1877 = vand.u32 %v1875, 31
  %v1878 = vsub.s32 32, %v1877
  %v1879 = vshrl.u32 683565275, %v1878
  %v1880 = vshll.u32 683565275, %v1877
  %v1881 = vshrl.u32 2475754826, %v1878
  %v1882 = vor.u32 %v1880, %v1881
  %v1883 = vshll.u32 2475754826, %v1877
  %v1884 = vshrl.u32 2131351028, %v1878
  %v1885 = vor.u32 %v1883, %v1884
  %v1886 = vshll.u32 2131351028, %v1877
  %v1887 = vshrl.u32 2102212464, %v1878
  %v1888 = vor.u32 %v1886, %v1887
  %v1889 = vshll.u32 2102212464, %v1877
  %v1890 = vshrl.u32 920167782, %v1878
  %v1891 = vor.u32 %v1889, %v1890
  %v1892 = vshll.u32 920167782, %v1877
  %v1893 = vshrl.u32 1326507024, %v1878
  %v1894 = vor.u32 %v1892, %v1893
  %vm1895 = vcmp.lt.s32.totalorder %v1876, 1
  %vm1896 = vcmp.lt.s32.totalorder %v1876, 2
  %vm1897 = vcmp.lt.s32.totalorder %v1876, 3
  %vm1898 = vcmp.lt.s32.totalorder %v1876, 4
  %v1899 = vsel %vm1895, %v1879, %v1882
  %v1900 = vsel %vm1898, %v1888, 2102212464
  %v1901 = vsel %vm1897, %v1885, %v1900
  %v1902 = vsel %vm1896, %v1899, %v1901
  %v1903 = vsel %vm1895, %v1882, %v1885
  %v1904 = vsel %vm1898, %v1891, 920167782
  %v1905 = vsel %vm1897, %v1888, %v1904
  %v1906 = vsel %vm1896, %v1903, %v1905
  %v1907 = vsel %vm1895, %v1885, %v1888
  %v1908 = vsel %vm1898, %v1894, 1326507024
  %v1909 = vsel %vm1897, %v1891, %v1908
  %v1910 = vsel %vm1896, %v1907, %v1909
  %v1911 = vshll.u32 %v1871, 8
  %v1912 = vmul.u32.u64.compose %v1911, %v1910
  %v1913 = vextract.low.u32 %v1912
  %v1914 = vextract.high.u32 %v1912
  %v1915 = vmul.u32.u64.compose %v1911, %v1906
  %v1916 = vextract.low.u32 %v1915
  %v1917 = vextract.high.u32 %v1915
  %v1918 = vmul.u32 %v1911, %v1902
  %v1919 = vadd.s32 %v1914, %v1916
  %vm1920 = vc.u32 %v1914, %v1916
  %v1921 = vadd.s32 %v1917, 1
  %v1922 = vsel %vm1920, %v1921, %v1917
  %v1923 = vadd.s32 %v1918, %v1922
  %v1924 = vadd.s32 %v1923, 536870912
  %v1925 = vshrl.u32 %v1924, 30
  %v1926 = vshll.u32 %v1925, 30
  %v1927 = vsub.s32 %v1923, %v1926
  %vm1928 = vcmp.lt.s32.totalorder %v1927, 0
  %v1929 = vsub.s32 0, %v1927
  %v1930 = vsel %vm1928, %v1929, %v1927
  %v1931 = vclz %v1930
  %v1932 = vsub.s32 %v1931, 2
  %vm1933 = vcmp.gt.s32.totalorder 0, %v1932
  %v1934 = vsel %vm1933, 0, %v1932
  %v1935 = vsub.s32 32, %v1934
  %v1936 = vshll.u32 %v1927, %v1934
  %v1937 = vshrl.u32 %v1919, %v1935
  %v1938 = vor.u32 %v1936, %v1937
  %v1939 = vsub.s32 4294967266, %v1934
  %v1940 = vadd.s32 %v1939, 127
  %v1941 = vshll.u32 %v1940, 23
  %v1942 = vor.u32 4788187, %v1941
  %v1943 = vand.u32 2147483647, %v1942
  %v1945 = vcvt.s32.f32 %v1938
  %v1946 = vmul.f32 %v1945, %v1943
  %v1947 = vxor.u32 %v1946, 2147483648
  %v1948 = vsel %vm1865, %v1947, %v1946
  %v1949 = vsub.s32 4, %v1925
  %v1950 = vsel %vm1865, %v1949, %v1925
  %v1951 = vsel %vm1864, %v1861, %v1948
  %v1952 = vsel %vm1864, 0, %v1950
  %v1953 = vcosq.f32.pop %v1951
  %v1954 = vsinq.f32.pop %v1951
  %vm1955 = vweird.f32 %v1861
  %v1956 = vadd.s32 %v1952, 3
  %v1957 = vand.u32 %v1956, 3
  %vm1958 = vcmp.lt.s32.totalorder %v1957, 2
  %vm1959 = vcmp.eq.s32.totalorder %v1957, 0
  %v1960 = vxor.u32 %v1954, 2147483648
  %v1961 = vsel %vm1959, %v1953, %v1960
  %vm1962 = vcmp.eq.s32.totalorder %v1957, 2
  %v1963 = vxor.u32 %v1953, 2147483648
  %v1964 = vsel %vm1962, %v1963, %v1954
  %v1965 = vsel %vm1958, %v1961, %v1964
  %v1966 = vsel %vm1955, nan, %v1965
  %v1967 = vand.u32 2147483647, %v1861
  %vm1968 = vcmp.le.f32.partialorder %v1967, 0.7853982
  %vm1969 = vcmp.lt.s32.totalorder %v1861, 0
  %v1970 = vand.u32 %v1861, 2139095040
  %v1971 = vshrl.u32 %v1970, 23
  %v1972 = vsub.s32 %v1971, 127
  %v1973 = vand.u32 2147483647, %v1861
  %v1974 = vand.u32 %v1973, 8388607
  %v1975 = vor.u32 %v1974, 8388608
  %v1976 = vsub.s32 0, %v1975
  %v1977 = vadd.s32 %v1972, 1
  %vm1978 = vcmp.gt.s32.totalorder %v1977, 0
  %v1979 = vsel %vm1978, %v1977, 0
  %v1980 = vshrl.u32 %v1979, 5
  %v1981 = vand.u32 %v1979, 31
  %v1982 = vsub.s32 32, %v1981
  %v1983 = vshrl.u32 683565275, %v1982
  %v1984 = vshll.u32 683565275, %v1981
  %v1985 = vshrl.u32 2475754826, %v1982
  %v1986 = vor.u32 %v1984, %v1985
  %v1987 = vshll.u32 2475754826, %v1981
  %v1988 = vshrl.u32 2131351028, %v1982
  %v1989 = vor.u32 %v1987, %v1988
  %v1990 = vshll.u32 2131351028, %v1981
  %v1991 = vshrl.u32 2102212464, %v1982
  %v1992 = vor.u32 %v1990, %v1991
  %v1993 = vshll.u32 2102212464, %v1981
  %v1994 = vshrl.u32 920167782, %v1982
  %v1995 = vor.u32 %v1993, %v1994
  %v1996 = vshll.u32 920167782, %v1981
  %v1997 = vshrl.u32 1326507024, %v1982
  %v1998 = vor.u32 %v1996, %v1997
  %vm1999 = vcmp.lt.s32.totalorder %v1980, 1
  %vm2000 = vcmp.lt.s32.totalorder %v1980, 2
  %vm2001 = vcmp.lt.s32.totalorder %v1980, 3
  %vm2002 = vcmp.lt.s32.totalorder %v1980, 4
  %v2003 = vsel %vm1999, %v1983, %v1986
  %v2004 = vsel %vm2002, %v1992, 2102212464
  %v2005 = vsel %vm2001, %v1989, %v2004
  %v2006 = vsel %vm2000, %v2003, %v2005
  %v2007 = vsel %vm1999, %v1986, %v1989
  %v2008 = vsel %vm2002, %v1995, 920167782
  %v2009 = vsel %vm2001, %v1992, %v2008
  %v2010 = vsel %vm2000, %v2007, %v2009
  %v2011 = vsel %vm1999, %v1989, %v1992
  %v2012 = vsel %vm2002, %v1998, 1326507024
  %v2013 = vsel %vm2001, %v1995, %v2012
  %v2014 = vsel %vm2000, %v2011, %v2013
  %v2015 = vshll.u32 %v1975, 8
  %v2016 = vmul.u32.u64.compose %v2015, %v2014
  %v2017 = vextract.low.u32 %v2016
  %v2018 = vextract.high.u32 %v2016
  %v2019 = vmul.u32.u64.compose %v2015, %v2010
  %v2020 = vextract.low.u32 %v2019
  %v2021 = vextract.high.u32 %v2019
  %v2022 = vmul.u32 %v2015, %v2006
  %v2023 = vadd.s32 %v2018, %v2020
  %vm2024 = vc.u32 %v2018, %v2020
  %v2025 = vadd.s32 %v2021, 1
  %v2026 = vsel %vm2024, %v2025, %v2021
  %v2027 = vadd.s32 %v2022, %v2026
  %v2028 = vadd.s32 %v2027, 536870912
  %v2029 = vshrl.u32 %v2028, 30
  %v2030 = vshll.u32 %v2029, 30
  %v2031 = vsub.s32 %v2027, %v2030
  %vm2032 = vcmp.lt.s32.totalorder %v2031, 0
  %v2033 = vsub.s32 0, %v2031
  %v2034 = vsel %vm2032, %v2033, %v2031
  %v2035 = vclz %v2034
  %v2036 = vsub.s32 %v2035, 2
  %vm2037 = vcmp.gt.s32.totalorder 0, %v2036
  %v2038 = vsel %vm2037, 0, %v2036
  %v2039 = vsub.s32 32, %v2038
  %v2040 = vshll.u32 %v2031, %v2038
  %v2041 = vshrl.u32 %v2023, %v2039
  %v2042 = vor.u32 %v2040, %v2041
  %v2043 = vsub.s32 4294967266, %v2038
  %v2044 = vadd.s32 %v2043, 127
  %v2045 = vshll.u32 %v2044, 23
  %v2046 = vor.u32 4788187, %v2045
  %v2047 = vand.u32 2147483647, %v2046
  %v2049 = vcvt.s32.f32 %v2042
  %v2050 = vmul.f32 %v2049, %v2047
  %v2051 = vxor.u32 %v2050, 2147483648
  %v2052 = vsel %vm1969, %v2051, %v2050
  %v2053 = vsub.s32 4, %v2029
  %v2054 = vsel %vm1969, %v2053, %v2029
  %v2055 = vsel %vm1968, %v1861, %v2052
  %v2056 = vsel %vm1968, 0, %v2054
  %v2057 = vcosq.f32.pop %v2055
  %v2058 = vsinq.f32.pop %v2055
  %vm2059 = vweird.f32 %v1861
  %v2060 = vand.u32 %v2056, 3
  %vm2061 = vcmp.lt.s32.totalorder %v2060, 2
  %vm2062 = vcmp.eq.s32.totalorder %v2060, 0
  %v2063 = vxor.u32 %v2058, 2147483648
  %v2064 = vsel %vm2062, %v2057, %v2063
  %vm2065 = vcmp.eq.s32.totalorder %v2060, 2
  %v2066 = vxor.u32 %v2057, 2147483648
  %v2067 = vsel %vm2065, %v2066, %v2058
  %v2068 = vsel %vm2061, %v2064, %v2067
  %v2069 = vsel %vm2059, nan, %v2068
  %v2070 = vmul.f32 %v1966, %v1862
  %v2071 = vsub.f32 %v2070, %v2069
  %v2072 = vmul.f32 %v2071, %v1862
  %v2073 = vmul.f32 %v2072, 28.844063
  %v2074 = vmul.f32 %v438, %v2073
  %s2075 = scalar_lea.vmem %s1, 88
  %2076 = vst [vmem:[%s2075] sm:$0xff] %v2074
  %v2077 = vmul.f32 %v444, %v2073
  %s2078 = scalar_lea.vmem %s1, 232
  %2079 = vst [vmem:[%s2078] sm:$0xff] %v2077
  %v2080 = vmul.f32 %v451, %v2073
  %s2081 = scalar_lea.vmem %s1, 376
  %2082 = vst [vmem:[%s2081] sm:$0xff] %v2080
  %v2083 = vmul.f32 %v9, 5.763459
  %v2084 = vmul.f32 %v17, 0.17350692
  %v2085 = vand.u32 2147483647, %v2083
  %vm2086 = vcmp.le.f32.partialorder %v2085, 0.7853982
  %vm2087 = vcmp.lt.s32.totalorder %v2083, 0
  %v2088 = vand.u32 %v2083, 2139095040
  %v2089 = vshrl.u32 %v2088, 23
  %v2090 = vsub.s32 %v2089, 127
  %v2091 = vand.u32 2147483647, %v2083
  %v2092 = vand.u32 %v2091, 8388607
  %v2093 = vor.u32 %v2092, 8388608
  %v2094 = vsub.s32 0, %v2093
  %v2095 = vadd.s32 %v2090, 1
  %vm2096 = vcmp.gt.s32.totalorder %v2095, 0
  %v2097 = vsel %vm2096, %v2095, 0
  %v2098 = vshrl.u32 %v2097, 5
  %v2099 = vand.u32 %v2097, 31
  %v2100 = vsub.s32 32, %v2099
  %v2101 = vshrl.u32 683565275, %v2100
  %v2102 = vshll.u32 683565275, %v2099
  %v2103 = vshrl.u32 2475754826, %v2100
  %v2104 = vor.u32 %v2102, %v2103
  %v2105 = vshll.u32 2475754826, %v2099
  %v2106 = vshrl.u32 2131351028, %v2100
  %v2107 = vor.u32 %v2105, %v2106
  %v2108 = vshll.u32 2131351028, %v2099
  %v2109 = vshrl.u32 2102212464, %v2100
  %v2110 = vor.u32 %v2108, %v2109
  %v2111 = vshll.u32 2102212464, %v2099
  %v2112 = vshrl.u32 920167782, %v2100
  %v2113 = vor.u32 %v2111, %v2112
  %v2114 = vshll.u32 920167782, %v2099
  %v2115 = vshrl.u32 1326507024, %v2100
  %v2116 = vor.u32 %v2114, %v2115
  %vm2117 = vcmp.lt.s32.totalorder %v2098, 1
  %vm2118 = vcmp.lt.s32.totalorder %v2098, 2
  %vm2119 = vcmp.lt.s32.totalorder %v2098, 3
  %vm2120 = vcmp.lt.s32.totalorder %v2098, 4
  %v2121 = vsel %vm2117, %v2101, %v2104
  %v2122 = vsel %vm2120, %v2110, 2102212464
  %v2123 = vsel %vm2119, %v2107, %v2122
  %v2124 = vsel %vm2118, %v2121, %v2123
  %v2125 = vsel %vm2117, %v2104, %v2107
  %v2126 = vsel %vm2120, %v2113, 920167782
  %v2127 = vsel %vm2119, %v2110, %v2126
  %v2128 = vsel %vm2118, %v2125, %v2127
  %v2129 = vsel %vm2117, %v2107, %v2110
  %v2130 = vsel %vm2120, %v2116, 1326507024
  %v2131 = vsel %vm2119, %v2113, %v2130
  %v2132 = vsel %vm2118, %v2129, %v2131
  %v2133 = vshll.u32 %v2093, 8
  %v2134 = vmul.u32.u64.compose %v2133, %v2132
  %v2135 = vextract.low.u32 %v2134
  %v2136 = vextract.high.u32 %v2134
  %v2137 = vmul.u32.u64.compose %v2133, %v2128
  %v2138 = vextract.low.u32 %v2137
  %v2139 = vextract.high.u32 %v2137
  %v2140 = vmul.u32 %v2133, %v2124
  %v2141 = vadd.s32 %v2136, %v2138
  %vm2142 = vc.u32 %v2136, %v2138
  %v2143 = vadd.s32 %v2139, 1
  %v2144 = vsel %vm2142, %v2143, %v2139
  %v2145 = vadd.s32 %v2140, %v2144
  %v2146 = vadd.s32 %v2145, 536870912
  %v2147 = vshrl.u32 %v2146, 30
  %v2148 = vshll.u32 %v2147, 30
  %v2149 = vsub.s32 %v2145, %v2148
  %vm2150 = vcmp.lt.s32.totalorder %v2149, 0
  %v2151 = vsub.s32 0, %v2149
  %v2152 = vsel %vm2150, %v2151, %v2149
  %v2153 = vclz %v2152
  %v2154 = vsub.s32 %v2153, 2
  %vm2155 = vcmp.gt.s32.totalorder 0, %v2154
  %v2156 = vsel %vm2155, 0, %v2154
  %v2157 = vsub.s32 32, %v2156
  %v2158 = vshll.u32 %v2149, %v2156
  %v2159 = vshrl.u32 %v2141, %v2157
  %v2160 = vor.u32 %v2158, %v2159
  %v2161 = vsub.s32 4294967266, %v2156
  %v2162 = vadd.s32 %v2161, 127
  %v2163 = vshll.u32 %v2162, 23
  %v2164 = vor.u32 4788187, %v2163
  %v2165 = vand.u32 2147483647, %v2164
  %v2167 = vcvt.s32.f32 %v2160
  %v2168 = vmul.f32 %v2167, %v2165
  %v2169 = vxor.u32 %v2168, 2147483648
  %v2170 = vsel %vm2087, %v2169, %v2168
  %v2171 = vsub.s32 4, %v2147
  %v2172 = vsel %vm2087, %v2171, %v2147
  %v2173 = vsel %vm2086, %v2083, %v2170
  %v2174 = vsel %vm2086, 0, %v2172
  %v2175 = vcosq.f32.pop %v2173
  %v2176 = vsinq.f32.pop %v2173
  %vm2177 = vweird.f32 %v2083
  %v2178 = vadd.s32 %v2174, 3
  %v2179 = vand.u32 %v2178, 3
  %vm2180 = vcmp.lt.s32.totalorder %v2179, 2
  %vm2181 = vcmp.eq.s32.totalorder %v2179, 0
  %v2182 = vxor.u32 %v2176, 2147483648
  %v2183 = vsel %vm2181, %v2175, %v2182
  %vm2184 = vcmp.eq.s32.totalorder %v2179, 2
  %v2185 = vxor.u32 %v2175, 2147483648
  %v2186 = vsel %vm2184, %v2185, %v2176
  %v2187 = vsel %vm2180, %v2183, %v2186
  %v2188 = vsel %vm2177, nan, %v2187
  %v2189 = vand.u32 2147483647, %v2083
  %vm2190 = vcmp.le.f32.partialorder %v2189, 0.7853982
  %vm2191 = vcmp.lt.s32.totalorder %v2083, 0
  %v2192 = vand.u32 %v2083, 2139095040
  %v2193 = vshrl.u32 %v2192, 23
  %v2194 = vsub.s32 %v2193, 127
  %v2195 = vand.u32 2147483647, %v2083
  %v2196 = vand.u32 %v2195, 8388607
  %v2197 = vor.u32 %v2196, 8388608
  %v2198 = vsub.s32 0, %v2197
  %v2199 = vadd.s32 %v2194, 1
  %vm2200 = vcmp.gt.s32.totalorder %v2199, 0
  %v2201 = vsel %vm2200, %v2199, 0
  %v2202 = vshrl.u32 %v2201, 5
  %v2203 = vand.u32 %v2201, 31
  %v2204 = vsub.s32 32, %v2203
  %v2205 = vshrl.u32 683565275, %v2204
  %v2206 = vshll.u32 683565275, %v2203
  %v2207 = vshrl.u32 2475754826, %v2204
  %v2208 = vor.u32 %v2206, %v2207
  %v2209 = vshll.u32 2475754826, %v2203
  %v2210 = vshrl.u32 2131351028, %v2204
  %v2211 = vor.u32 %v2209, %v2210
  %v2212 = vshll.u32 2131351028, %v2203
  %v2213 = vshrl.u32 2102212464, %v2204
  %v2214 = vor.u32 %v2212, %v2213
  %v2215 = vshll.u32 2102212464, %v2203
  %v2216 = vshrl.u32 920167782, %v2204
  %v2217 = vor.u32 %v2215, %v2216
  %v2218 = vshll.u32 920167782, %v2203
  %v2219 = vshrl.u32 1326507024, %v2204
  %v2220 = vor.u32 %v2218, %v2219
  %vm2221 = vcmp.lt.s32.totalorder %v2202, 1
  %vm2222 = vcmp.lt.s32.totalorder %v2202, 2
  %vm2223 = vcmp.lt.s32.totalorder %v2202, 3
  %vm2224 = vcmp.lt.s32.totalorder %v2202, 4
  %v2225 = vsel %vm2221, %v2205, %v2208
  %v2226 = vsel %vm2224, %v2214, 2102212464
  %v2227 = vsel %vm2223, %v2211, %v2226
  %v2228 = vsel %vm2222, %v2225, %v2227
  %v2229 = vsel %vm2221, %v2208, %v2211
  %v2230 = vsel %vm2224, %v2217, 920167782
  %v2231 = vsel %vm2223, %v2214, %v2230
  %v2232 = vsel %vm2222, %v2229, %v2231
  %v2233 = vsel %vm2221, %v2211, %v2214
  %v2234 = vsel %vm2224, %v2220, 1326507024
  %v2235 = vsel %vm2223, %v2217, %v2234
  %v2236 = vsel %vm2222, %v2233, %v2235
  %v2237 = vshll.u32 %v2197, 8
  %v2238 = vmul.u32.u64.compose %v2237, %v2236
  %v2239 = vextract.low.u32 %v2238
  %v2240 = vextract.high.u32 %v2238
  %v2241 = vmul.u32.u64.compose %v2237, %v2232
  %v2242 = vextract.low.u32 %v2241
  %v2243 = vextract.high.u32 %v2241
  %v2244 = vmul.u32 %v2237, %v2228
  %v2245 = vadd.s32 %v2240, %v2242
  %vm2246 = vc.u32 %v2240, %v2242
  %v2247 = vadd.s32 %v2243, 1
  %v2248 = vsel %vm2246, %v2247, %v2243
  %v2249 = vadd.s32 %v2244, %v2248
  %v2250 = vadd.s32 %v2249, 536870912
  %v2251 = vshrl.u32 %v2250, 30
  %v2252 = vshll.u32 %v2251, 30
  %v2253 = vsub.s32 %v2249, %v2252
  %vm2254 = vcmp.lt.s32.totalorder %v2253, 0
  %v2255 = vsub.s32 0, %v2253
  %v2256 = vsel %vm2254, %v2255, %v2253
  %v2257 = vclz %v2256
  %v2258 = vsub.s32 %v2257, 2
  %vm2259 = vcmp.gt.s32.totalorder 0, %v2258
  %v2260 = vsel %vm2259, 0, %v2258
  %v2261 = vsub.s32 32, %v2260
  %v2262 = vshll.u32 %v2253, %v2260
  %v2263 = vshrl.u32 %v2245, %v2261
  %v2264 = vor.u32 %v2262, %v2263
  %v2265 = vsub.s32 4294967266, %v2260
  %v2266 = vadd.s32 %v2265, 127
  %v2267 = vshll.u32 %v2266, 23
  %v2268 = vor.u32 4788187, %v2267
  %v2269 = vand.u32 2147483647, %v2268
  %v2271 = vcvt.s32.f32 %v2264
  %v2272 = vmul.f32 %v2271, %v2269
  %v2273 = vxor.u32 %v2272, 2147483648
  %v2274 = vsel %vm2191, %v2273, %v2272
  %v2275 = vsub.s32 4, %v2251
  %v2276 = vsel %vm2191, %v2275, %v2251
  %v2277 = vsel %vm2190, %v2083, %v2274
  %v2278 = vsel %vm2190, 0, %v2276
  %v2279 = vcosq.f32.pop %v2277
  %v2280 = vsinq.f32.pop %v2277
  %vm2281 = vweird.f32 %v2083
  %v2282 = vand.u32 %v2278, 3
  %vm2283 = vcmp.lt.s32.totalorder %v2282, 2
  %vm2284 = vcmp.eq.s32.totalorder %v2282, 0
  %v2285 = vxor.u32 %v2280, 2147483648
  %v2286 = vsel %vm2284, %v2279, %v2285
  %vm2287 = vcmp.eq.s32.totalorder %v2282, 2
  %v2288 = vxor.u32 %v2279, 2147483648
  %v2289 = vsel %vm2287, %v2288, %v2280
  %v2290 = vsel %vm2283, %v2286, %v2289
  %v2291 = vsel %vm2281, nan, %v2290
  %v2292 = vmul.f32 %v2188, %v2084
  %v2293 = vsub.f32 %v2292, %v2291
  %v2294 = vmul.f32 %v2293, %v2084
  %v2295 = vmul.f32 %v2084, 3.0
  %v2296 = vmul.f32 %v2295, %v2294
  %v2297 = vsub.f32 %v2296, %v2292
  %v2298 = vmul.f32 %v2297, 8.542646
  %v2299 = vmul.f32 %v440, %v2298
  %s2300 = scalar_lea.vmem %s1, 96
  %2301 = vst [vmem:[%s2300] sm:$0xff] %v2299
  %v2302 = vmul.f32 %v447, %v2298
  %s2303 = scalar_lea.vmem %s1, 240
  %2304 = vst [vmem:[%s2303] sm:$0xff] %v2302
  %v2305 = vmul.f32 %v448, %v2298
  %s2306 = scalar_lea.vmem %s1, 384
  %2307 = vst [vmem:[%s2306] sm:$0xff] %v2305
  %v2308 = vmul.f32 %v9, 9.095012
  %v2309 = vmul.f32 %v17, 0.109950386
  %v2310 = vand.u32 2147483647, %v2308
  %vm2311 = vcmp.le.f32.partialorder %v2310, 0.7853982
  %vm2312 = vcmp.lt.s32.totalorder %v2308, 0
  %v2313 = vand.u32 %v2308, 2139095040
  %v2314 = vshrl.u32 %v2313, 23
  %v2315 = vsub.s32 %v2314, 127
  %v2316 = vand.u32 2147483647, %v2308
  %v2317 = vand.u32 %v2316, 8388607
  %v2318 = vor.u32 %v2317, 8388608
  %v2319 = vsub.s32 0, %v2318
  %v2320 = vadd.s32 %v2315, 1
  %vm2321 = vcmp.gt.s32.totalorder %v2320, 0
  %v2322 = vsel %vm2321, %v2320, 0
  %v2323 = vshrl.u32 %v2322, 5
  %v2324 = vand.u32 %v2322, 31
  %v2325 = vsub.s32 32, %v2324
  %v2326 = vshrl.u32 683565275, %v2325
  %v2327 = vshll.u32 683565275, %v2324
  %v2328 = vshrl.u32 2475754826, %v2325
  %v2329 = vor.u32 %v2327, %v2328
  %v2330 = vshll.u32 2475754826, %v2324
  %v2331 = vshrl.u32 2131351028, %v2325
  %v2332 = vor.u32 %v2330, %v2331
  %v2333 = vshll.u32 2131351028, %v2324
  %v2334 = vshrl.u32 2102212464, %v2325
  %v2335 = vor.u32 %v2333, %v2334
  %v2336 = vshll.u32 2102212464, %v2324
  %v2337 = vshrl.u32 920167782, %v2325
  %v2338 = vor.u32 %v2336, %v2337
  %v2339 = vshll.u32 920167782, %v2324
  %v2340 = vshrl.u32 1326507024, %v2325
  %v2341 = vor.u32 %v2339, %v2340
  %vm2342 = vcmp.lt.s32.totalorder %v2323, 1
  %vm2343 = vcmp.lt.s32.totalorder %v2323, 2
  %vm2344 = vcmp.lt.s32.totalorder %v2323, 3
  %vm2345 = vcmp.lt.s32.totalorder %v2323, 4
  %v2346 = vsel %vm2342, %v2326, %v2329
  %v2347 = vsel %vm2345, %v2335, 2102212464
  %v2348 = vsel %vm2344, %v2332, %v2347
  %v2349 = vsel %vm2343, %v2346, %v2348
  %v2350 = vsel %vm2342, %v2329, %v2332
  %v2351 = vsel %vm2345, %v2338, 920167782
  %v2352 = vsel %vm2344, %v2335, %v2351
  %v2353 = vsel %vm2343, %v2350, %v2352
  %v2354 = vsel %vm2342, %v2332, %v2335
  %v2355 = vsel %vm2345, %v2341, 1326507024
  %v2356 = vsel %vm2344, %v2338, %v2355
  %v2357 = vsel %vm2343, %v2354, %v2356
  %v2358 = vshll.u32 %v2318, 8
  %v2359 = vmul.u32.u64.compose %v2358, %v2357
  %v2360 = vextract.low.u32 %v2359
  %v2361 = vextract.high.u32 %v2359
  %v2362 = vmul.u32.u64.compose %v2358, %v2353
  %v2363 = vextract.low.u32 %v2362
  %v2364 = vextract.high.u32 %v2362
  %v2365 = vmul.u32 %v2358, %v2349
  %v2366 = vadd.s32 %v2361, %v2363
  %vm2367 = vc.u32 %v2361, %v2363
  %v2368 = vadd.s32 %v2364, 1
  %v2369 = vsel %vm2367, %v2368, %v2364
  %v2370 = vadd.s32 %v2365, %v2369
  %v2371 = vadd.s32 %v2370, 536870912
  %v2372 = vshrl.u32 %v2371, 30
  %v2373 = vshll.u32 %v2372, 30
  %v2374 = vsub.s32 %v2370, %v2373
  %vm2375 = vcmp.lt.s32.totalorder %v2374, 0
  %v2376 = vsub.s32 0, %v2374
  %v2377 = vsel %vm2375, %v2376, %v2374
  %v2378 = vclz %v2377
  %v2379 = vsub.s32 %v2378, 2
  %vm2380 = vcmp.gt.s32.totalorder 0, %v2379
  %v2381 = vsel %vm2380, 0, %v2379
  %v2382 = vsub.s32 32, %v2381
  %v2383 = vshll.u32 %v2374, %v2381
  %v2384 = vshrl.u32 %v2366, %v2382
  %v2385 = vor.u32 %v2383, %v2384
  %v2386 = vsub.s32 4294967266, %v2381
  %v2387 = vadd.s32 %v2386, 127
  %v2388 = vshll.u32 %v2387, 23
  %v2389 = vor.u32 4788187, %v2388
  %v2390 = vand.u32 2147483647, %v2389
  %v2392 = vcvt.s32.f32 %v2385
  %v2393 = vmul.f32 %v2392, %v2390
  %v2394 = vxor.u32 %v2393, 2147483648
  %v2395 = vsel %vm2312, %v2394, %v2393
  %v2396 = vsub.s32 4, %v2372
  %v2397 = vsel %vm2312, %v2396, %v2372
  %v2398 = vsel %vm2311, %v2308, %v2395
  %v2399 = vsel %vm2311, 0, %v2397
  %v2400 = vcosq.f32.pop %v2398
  %v2401 = vsinq.f32.pop %v2398
  %vm2402 = vweird.f32 %v2308
  %v2403 = vadd.s32 %v2399, 3
  %v2404 = vand.u32 %v2403, 3
  %vm2405 = vcmp.lt.s32.totalorder %v2404, 2
  %vm2406 = vcmp.eq.s32.totalorder %v2404, 0
  %v2407 = vxor.u32 %v2401, 2147483648
  %v2408 = vsel %vm2406, %v2400, %v2407
  %vm2409 = vcmp.eq.s32.totalorder %v2404, 2
  %v2410 = vxor.u32 %v2400, 2147483648
  %v2411 = vsel %vm2409, %v2410, %v2401
  %v2412 = vsel %vm2405, %v2408, %v2411
  %v2413 = vsel %vm2402, nan, %v2412
  %v2414 = vand.u32 2147483647, %v2308
  %vm2415 = vcmp.le.f32.partialorder %v2414, 0.7853982
  %vm2416 = vcmp.lt.s32.totalorder %v2308, 0
  %v2417 = vand.u32 %v2308, 2139095040
  %v2418 = vshrl.u32 %v2417, 23
  %v2419 = vsub.s32 %v2418, 127
  %v2420 = vand.u32 2147483647, %v2308
  %v2421 = vand.u32 %v2420, 8388607
  %v2422 = vor.u32 %v2421, 8388608
  %v2423 = vsub.s32 0, %v2422
  %v2424 = vadd.s32 %v2419, 1
  %vm2425 = vcmp.gt.s32.totalorder %v2424, 0
  %v2426 = vsel %vm2425, %v2424, 0
  %v2427 = vshrl.u32 %v2426, 5
  %v2428 = vand.u32 %v2426, 31
  %v2429 = vsub.s32 32, %v2428
  %v2430 = vshrl.u32 683565275, %v2429
  %v2431 = vshll.u32 683565275, %v2428
  %v2432 = vshrl.u32 2475754826, %v2429
  %v2433 = vor.u32 %v2431, %v2432
  %v2434 = vshll.u32 2475754826, %v2428
  %v2435 = vshrl.u32 2131351028, %v2429
  %v2436 = vor.u32 %v2434, %v2435
  %v2437 = vshll.u32 2131351028, %v2428
  %v2438 = vshrl.u32 2102212464, %v2429
  %v2439 = vor.u32 %v2437, %v2438
  %v2440 = vshll.u32 2102212464, %v2428
  %v2441 = vshrl.u32 920167782, %v2429
  %v2442 = vor.u32 %v2440, %v2441
  %v2443 = vshll.u32 920167782, %v2428
  %v2444 = vshrl.u32 1326507024, %v2429
  %v2445 = vor.u32 %v2443, %v2444
  %vm2446 = vcmp.lt.s32.totalorder %v2427, 1
  %vm2447 = vcmp.lt.s32.totalorder %v2427, 2
  %vm2448 = vcmp.lt.s32.totalorder %v2427, 3
  %vm2449 = vcmp.lt.s32.totalorder %v2427, 4
  %v2450 = vsel %vm2446, %v2430, %v2433
  %v2451 = vsel %vm2449, %v2439, 2102212464
  %v2452 = vsel %vm2448, %v2436, %v2451
  %v2453 = vsel %vm2447, %v2450, %v2452
  %v2454 = vsel %vm2446, %v2433, %v2436
  %v2455 = vsel %vm2449, %v2442, 920167782
  %v2456 = vsel %vm2448, %v2439, %v2455
  %v2457 = vsel %vm2447, %v2454, %v2456
  %v2458 = vsel %vm2446, %v2436, %v2439
  %v2459 = vsel %vm2449, %v2445, 1326507024
  %v2460 = vsel %vm2448, %v2442, %v2459
  %v2461 = vsel %vm2447, %v2458, %v2460
  %v2462 = vshll.u32 %v2422, 8
  %v2463 = vmul.u32.u64.compose %v2462, %v2461
  %v2464 = vextract.low.u32 %v2463
  %v2465 = vextract.high.u32 %v2463
  %v2466 = vmul.u32.u64.compose %v2462, %v2457
  %v2467 = vextract.low.u32 %v2466
  %v2468 = vextract.high.u32 %v2466
  %v2469 = vmul.u32 %v2462, %v2453
  %v2470 = vadd.s32 %v2465, %v2467
  %vm2471 = vc.u32 %v2465, %v2467
  %v2472 = vadd.s32 %v2468, 1
  %v2473 = vsel %vm2471, %v2472, %v2468
  %v2474 = vadd.s32 %v2469, %v2473
  %v2475 = vadd.s32 %v2474, 536870912
  %v2476 = vshrl.u32 %v2475, 30
  %v2477 = vshll.u32 %v2476, 30
  %v2478 = vsub.s32 %v2474, %v2477
  %vm2479 = vcmp.lt.s32.totalorder %v2478, 0
  %v2480 = vsub.s32 0, %v2478
  %v2481 = vsel %vm2479, %v2480, %v2478
  %v2482 = vclz %v2481
  %v2483 = vsub.s32 %v2482, 2
  %vm2484 = vcmp.gt.s32.totalorder 0, %v2483
  %v2485 = vsel %vm2484, 0, %v2483
  %v2486 = vsub.s32 32, %v2485
  %v2487 = vshll.u32 %v2478, %v2485
  %v2488 = vshrl.u32 %v2470, %v2486
  %v2489 = vor.u32 %v2487, %v2488
  %v2490 = vsub.s32 4294967266, %v2485
  %v2491 = vadd.s32 %v2490, 127
  %v2492 = vshll.u32 %v2491, 23
  %v2493 = vor.u32 4788187, %v2492
  %v2494 = vand.u32 2147483647, %v2493
  %v2496 = vcvt.s32.f32 %v2489
  %v2497 = vmul.f32 %v2496, %v2494
  %v2498 = vxor.u32 %v2497, 2147483648
  %v2499 = vsel %vm2416, %v2498, %v2497
  %v2500 = vsub.s32 4, %v2476
  %v2501 = vsel %vm2416, %v2500, %v2476
  %v2502 = vsel %vm2415, %v2308, %v2499
  %v2503 = vsel %vm2415, 0, %v2501
  %v2504 = vcosq.f32.pop %v2502
  %v2505 = vsinq.f32.pop %v2502
  %vm2506 = vweird.f32 %v2308
  %v2507 = vand.u32 %v2503, 3
  %vm2508 = vcmp.lt.s32.totalorder %v2507, 2
  %vm2509 = vcmp.eq.s32.totalorder %v2507, 0
  %v2510 = vxor.u32 %v2505, 2147483648
  %v2511 = vsel %vm2509, %v2504, %v2510
  %vm2512 = vcmp.eq.s32.totalorder %v2507, 2
  %v2513 = vxor.u32 %v2504, 2147483648
  %v2514 = vsel %vm2512, %v2513, %v2505
  %v2515 = vsel %vm2508, %v2511, %v2514
  %v2516 = vsel %vm2506, nan, %v2515
  %v2517 = vmul.f32 %v2413, %v2309
  %v2518 = vsub.f32 %v2517, %v2516
  %v2519 = vmul.f32 %v2518, %v2309
  %v2520 = vmul.f32 %v2309, 3.0
  %v2521 = vmul.f32 %v2520, %v2519
  %v2522 = vsub.f32 %v2521, %v2517
  %v2523 = vmul.f32 %v2522, 13.101758
  %v2524 = vmul.f32 %v440, %v2523
  %s2525 = scalar_lea.vmem %s1, 104
  %2526 = vst [vmem:[%s2525] sm:$0xff] %v2524
  %v2527 = vmul.f32 %v447, %v2523
  %s2528 = scalar_lea.vmem %s1, 248
  %2529 = vst [vmem:[%s2528] sm:$0xff] %v2527
  %v2530 = vmul.f32 %v448, %v2523
  %s2531 = scalar_lea.vmem %s1, 392
  %2532 = vst [vmem:[%s2531] sm:$0xff] %v2530
  %v2533 = vmul.f32 %v9, 12.322941
  %v2534 = vmul.f32 %v17, 0.08114946
  %v2535 = vand.u32 2147483647, %v2533
  %vm2536 = vcmp.le.f32.partialorder %v2535, 0.7853982
  %vm2537 = vcmp.lt.s32.totalorder %v2533, 0
  %v2538 = vand.u32 %v2533, 2139095040
  %v2539 = vshrl.u32 %v2538, 23
  %v2540 = vsub.s32 %v2539, 127
  %v2541 = vand.u32 2147483647, %v2533
  %v2542 = vand.u32 %v2541, 8388607
  %v2543 = vor.u32 %v2542, 8388608
  %v2544 = vsub.s32 0, %v2543
  %v2545 = vadd.s32 %v2540, 1
  %vm2546 = vcmp.gt.s32.totalorder %v2545, 0
  %v2547 = vsel %vm2546, %v2545, 0
  %v2548 = vshrl.u32 %v2547, 5
  %v2549 = vand.u32 %v2547, 31
  %v2550 = vsub.s32 32, %v2549
  %v2551 = vshrl.u32 683565275, %v2550
  %v2552 = vshll.u32 683565275, %v2549
  %v2553 = vshrl.u32 2475754826, %v2550
  %v2554 = vor.u32 %v2552, %v2553
  %v2555 = vshll.u32 2475754826, %v2549
  %v2556 = vshrl.u32 2131351028, %v2550
  %v2557 = vor.u32 %v2555, %v2556
  %v2558 = vshll.u32 2131351028, %v2549
  %v2559 = vshrl.u32 2102212464, %v2550
  %v2560 = vor.u32 %v2558, %v2559
  %v2561 = vshll.u32 2102212464, %v2549
  %v2562 = vshrl.u32 920167782, %v2550
  %v2563 = vor.u32 %v2561, %v2562
  %v2564 = vshll.u32 920167782, %v2549
  %v2565 = vshrl.u32 1326507024, %v2550
  %v2566 = vor.u32 %v2564, %v2565
  %vm2567 = vcmp.lt.s32.totalorder %v2548, 1
  %vm2568 = vcmp.lt.s32.totalorder %v2548, 2
  %vm2569 = vcmp.lt.s32.totalorder %v2548, 3
  %vm2570 = vcmp.lt.s32.totalorder %v2548, 4
  %v2571 = vsel %vm2567, %v2551, %v2554
  %v2572 = vsel %vm2570, %v2560, 2102212464
  %v2573 = vsel %vm2569, %v2557, %v2572
  %v2574 = vsel %vm2568, %v2571, %v2573
  %v2575 = vsel %vm2567, %v2554, %v2557
  %v2576 = vsel %vm2570, %v2563, 920167782
  %v2577 = vsel %vm2569, %v2560, %v2576
  %v2578 = vsel %vm2568, %v2575, %v2577
  %v2579 = vsel %vm2567, %v2557, %v2560
  %v2580 = vsel %vm2570, %v2566, 1326507024
  %v2581 = vsel %vm2569, %v2563, %v2580
  %v2582 = vsel %vm2568, %v2579, %v2581
  %v2583 = vshll.u32 %v2543, 8
  %v2584 = vmul.u32.u64.compose %v2583, %v2582
  %v2585 = vextract.low.u32 %v2584
  %v2586 = vextract.high.u32 %v2584
  %v2587 = vmul.u32.u64.compose %v2583, %v2578
  %v2588 = vextract.low.u32 %v2587
  %v2589 = vextract.high.u32 %v2587
  %v2590 = vmul.u32 %v2583, %v2574
  %v2591 = vadd.s32 %v2586, %v2588
  %vm2592 = vc.u32 %v2586, %v2588
  %v2593 = vadd.s32 %v2589, 1
  %v2594 = vsel %vm2592, %v2593, %v2589
  %v2595 = vadd.s32 %v2590, %v2594
  %v2596 = vadd.s32 %v2595, 536870912
  %v2597 = vshrl.u32 %v2596, 30
  %v2598 = vshll.u32 %v2597, 30
  %v2599 = vsub.s32 %v2595, %v2598
  %vm2600 = vcmp.lt.s32.totalorder %v2599, 0
  %v2601 = vsub.s32 0, %v2599
  %v2602 = vsel %vm2600, %v2601, %v2599
  %v2603 = vclz %v2602
  %v2604 = vsub.s32 %v2603, 2
  %vm2605 = vcmp.gt.s32.totalorder 0, %v2604
  %v2606 = vsel %vm2605, 0, %v2604
  %v2607 = vsub.s32 32, %v2606
  %v2608 = vshll.u32 %v2599, %v2606
  %v2609 = vshrl.u32 %v2591, %v2607
  %v2610 = vor.u32 %v2608, %v2609
  %v2611 = vsub.s32 4294967266, %v2606
  %v2612 = vadd.s32 %v2611, 127
  %v2613 = vshll.u32 %v2612, 23
  %v2614 = vor.u32 4788187, %v2613
  %v2615 = vand.u32 2147483647, %v2614
  %v2617 = vcvt.s32.f32 %v2610
  %v2618 = vmul.f32 %v2617, %v2615
  %v2619 = vxor.u32 %v2618, 2147483648
  %v2620 = vsel %vm2537, %v2619, %v2618
  %v2621 = vsub.s32 4, %v2597
  %v2622 = vsel %vm2537, %v2621, %v2597
  %v2623 = vsel %vm2536, %v2533, %v2620
  %v2624 = vsel %vm2536, 0, %v2622
  %v2625 = vcosq.f32.pop %v2623
  %v2626 = vsinq.f32.pop %v2623
  %vm2627 = vweird.f32 %v2533
  %v2628 = vadd.s32 %v2624, 3
  %v2629 = vand.u32 %v2628, 3
  %vm2630 = vcmp.lt.s32.totalorder %v2629, 2
  %vm2631 = vcmp.eq.s32.totalorder %v2629, 0
  %v2632 = vxor.u32 %v2626, 2147483648
  %v2633 = vsel %vm2631, %v2625, %v2632
  %vm2634 = vcmp.eq.s32.totalorder %v2629, 2
  %v2635 = vxor.u32 %v2625, 2147483648
  %v2636 = vsel %vm2634, %v2635, %v2626
  %v2637 = vsel %vm2630, %v2633, %v2636
  %v2638 = vsel %vm2627, nan, %v2637
  %v2639 = vand.u32 2147483647, %v2533
  %vm2640 = vcmp.le.f32.partialorder %v2639, 0.7853982
  %vm2641 = vcmp.lt.s32.totalorder %v2533, 0
  %v2642 = vand.u32 %v2533, 2139095040
  %v2643 = vshrl.u32 %v2642, 23
  %v2644 = vsub.s32 %v2643, 127
  %v2645 = vand.u32 2147483647, %v2533
  %v2646 = vand.u32 %v2645, 8388607
  %v2647 = vor.u32 %v2646, 8388608
  %v2648 = vsub.s32 0, %v2647
  %v2649 = vadd.s32 %v2644, 1
  %vm2650 = vcmp.gt.s32.totalorder %v2649, 0
  %v2651 = vsel %vm2650, %v2649, 0
  %v2652 = vshrl.u32 %v2651, 5
  %v2653 = vand.u32 %v2651, 31
  %v2654 = vsub.s32 32, %v2653
  %v2655 = vshrl.u32 683565275, %v2654
  %v2656 = vshll.u32 683565275, %v2653
  %v2657 = vshrl.u32 2475754826, %v2654
  %v2658 = vor.u32 %v2656, %v2657
  %v2659 = vshll.u32 2475754826, %v2653
  %v2660 = vshrl.u32 2131351028, %v2654
  %v2661 = vor.u32 %v2659, %v2660
  %v2662 = vshll.u32 2131351028, %v2653
  %v2663 = vshrl.u32 2102212464, %v2654
  %v2664 = vor.u32 %v2662, %v2663
  %v2665 = vshll.u32 2102212464, %v2653
  %v2666 = vshrl.u32 920167782, %v2654
  %v2667 = vor.u32 %v2665, %v2666
  %v2668 = vshll.u32 920167782, %v2653
  %v2669 = vshrl.u32 1326507024, %v2654
  %v2670 = vor.u32 %v2668, %v2669
  %vm2671 = vcmp.lt.s32.totalorder %v2652, 1
  %vm2672 = vcmp.lt.s32.totalorder %v2652, 2
  %vm2673 = vcmp.lt.s32.totalorder %v2652, 3
  %vm2674 = vcmp.lt.s32.totalorder %v2652, 4
  %v2675 = vsel %vm2671, %v2655, %v2658
  %v2676 = vsel %vm2674, %v2664, 2102212464
  %v2677 = vsel %vm2673, %v2661, %v2676
  %v2678 = vsel %vm2672, %v2675, %v2677
  %v2679 = vsel %vm2671, %v2658, %v2661
  %v2680 = vsel %vm2674, %v2667, 920167782
  %v2681 = vsel %vm2673, %v2664, %v2680
  %v2682 = vsel %vm2672, %v2679, %v2681
  %v2683 = vsel %vm2671, %v2661, %v2664
  %v2684 = vsel %vm2674, %v2670, 1326507024
  %v2685 = vsel %vm2673, %v2667, %v2684
  %v2686 = vsel %vm2672, %v2683, %v2685
  %v2687 = vshll.u32 %v2647, 8
  %v2688 = vmul.u32.u64.compose %v2687, %v2686
  %v2689 = vextract.low.u32 %v2688
  %v2690 = vextract.high.u32 %v2688
  %v2691 = vmul.u32.u64.compose %v2687, %v2682
  %v2692 = vextract.low.u32 %v2691
  %v2693 = vextract.high.u32 %v2691
  %v2694 = vmul.u32 %v2687, %v2678
  %v2695 = vadd.s32 %v2690, %v2692
  %vm2696 = vc.u32 %v2690, %v2692
  %v2697 = vadd.s32 %v2693, 1
  %v2698 = vsel %vm2696, %v2697, %v2693
  %v2699 = vadd.s32 %v2694, %v2698
  %v2700 = vadd.s32 %v2699, 536870912
  %v2701 = vshrl.u32 %v2700, 30
  %v2702 = vshll.u32 %v2701, 30
  %v2703 = vsub.s32 %v2699, %v2702
  %vm2704 = vcmp.lt.s32.totalorder %v2703, 0
  %v2705 = vsub.s32 0, %v2703
  %v2706 = vsel %vm2704, %v2705, %v2703
  %v2707 = vclz %v2706
  %v2708 = vsub.s32 %v2707, 2
  %vm2709 = vcmp.gt.s32.totalorder 0, %v2708
  %v2710 = vsel %vm2709, 0, %v2708
  %v2711 = vsub.s32 32, %v2710
  %v2712 = vshll.u32 %v2703, %v2710
  %v2713 = vshrl.u32 %v2695, %v2711
  %v2714 = vor.u32 %v2712, %v2713
  %v2715 = vsub.s32 4294967266, %v2710
  %v2716 = vadd.s32 %v2715, 127
  %v2717 = vshll.u32 %v2716, 23
  %v2718 = vor.u32 4788187, %v2717
  %v2719 = vand.u32 2147483647, %v2718
  %v2721 = vcvt.s32.f32 %v2714
  %v2722 = vmul.f32 %v2721, %v2719
  %v2723 = vxor.u32 %v2722, 2147483648
  %v2724 = vsel %vm2641, %v2723, %v2722
  %v2725 = vsub.s32 4, %v2701
  %v2726 = vsel %vm2641, %v2725, %v2701
  %v2727 = vsel %vm2640, %v2533, %v2724
  %v2728 = vsel %vm2640, 0, %v2726
  %v2729 = vcosq.f32.pop %v2727
  %v2730 = vsinq.f32.pop %v2727
  %vm2731 = vweird.f32 %v2533
  %v2732 = vand.u32 %v2728, 3
  %vm2733 = vcmp.lt.s32.totalorder %v2732, 2
  %vm2734 = vcmp.eq.s32.totalorder %v2732, 0
  %v2735 = vxor.u32 %v2730, 2147483648
  %v2736 = vsel %vm2734, %v2729, %v2735
  %vm2737 = vcmp.eq.s32.totalorder %v2732, 2
  %v2738 = vxor.u32 %v2729, 2147483648
  %v2739 = vsel %vm2737, %v2738, %v2730
  %v2740 = vsel %vm2733, %v2736, %v2739
  %v2741 = vsel %vm2731, nan, %v2740
  %v2742 = vmul.f32 %v2638, %v2534
  %v2743 = vsub.f32 %v2742, %v2741
  %v2744 = vmul.f32 %v2743, %v2534
  %v2745 = vmul.f32 %v2534, 3.0
  %v2746 = vmul.f32 %v2745, %v2744
  %v2747 = vsub.f32 %v2746, %v2742
  %v2748 = vmul.f32 %v2747, 17.60194
  %v2749 = vmul.f32 %v440, %v2748
  %s2750 = scalar_lea.vmem %s1, 112
  %2751 = vst [vmem:[%s2750] sm:$0xff] %v2749
  %v2752 = vmul.f32 %v447, %v2748
  %s2753 = scalar_lea.vmem %s1, 256
  %2754 = vst [vmem:[%s2753] sm:$0xff] %v2752
  %v2755 = vmul.f32 %v448, %v2748
  %s2756 = scalar_lea.vmem %s1, 400
  %2757 = vst [vmem:[%s2756] sm:$0xff] %v2755
  %v2758 = vmul.f32 %v9, 15.514603
  %v2759 = vmul.f32 %v17, 0.064455405
  %v2760 = vand.u32 2147483647, %v2758
  %vm2761 = vcmp.le.f32.partialorder %v2760, 0.7853982
  %vm2762 = vcmp.lt.s32.totalorder %v2758, 0
  %v2763 = vand.u32 %v2758, 2139095040
  %v2764 = vshrl.u32 %v2763, 23
  %v2765 = vsub.s32 %v2764, 127
  %v2766 = vand.u32 2147483647, %v2758
  %v2767 = vand.u32 %v2766, 8388607
  %v2768 = vor.u32 %v2767, 8388608
  %v2769 = vsub.s32 0, %v2768
  %v2770 = vadd.s32 %v2765, 1
  %vm2771 = vcmp.gt.s32.totalorder %v2770, 0
  %v2772 = vsel %vm2771, %v2770, 0
  %v2773 = vshrl.u32 %v2772, 5
  %v2774 = vand.u32 %v2772, 31
  %v2775 = vsub.s32 32, %v2774
  %v2776 = vshrl.u32 683565275, %v2775
  %v2777 = vshll.u32 683565275, %v2774
  %v2778 = vshrl.u32 2475754826, %v2775
  %v2779 = vor.u32 %v2777, %v2778
  %v2780 = vshll.u32 2475754826, %v2774
  %v2781 = vshrl.u32 2131351028, %v2775
  %v2782 = vor.u32 %v2780, %v2781
  %v2783 = vshll.u32 2131351028, %v2774
  %v2784 = vshrl.u32 2102212464, %v2775
  %v2785 = vor.u32 %v2783, %v2784
  %v2786 = vshll.u32 2102212464, %v2774
  %v2787 = vshrl.u32 920167782, %v2775
  %v2788 = vor.u32 %v2786, %v2787
  %v2789 = vshll.u32 920167782, %v2774
  %v2790 = vshrl.u32 1326507024, %v2775
  %v2791 = vor.u32 %v2789, %v2790
  %vm2792 = vcmp.lt.s32.totalorder %v2773, 1
  %vm2793 = vcmp.lt.s32.totalorder %v2773, 2
  %vm2794 = vcmp.lt.s32.totalorder %v2773, 3
  %vm2795 = vcmp.lt.s32.totalorder %v2773, 4
  %v2796 = vsel %vm2792, %v2776, %v2779
  %v2797 = vsel %vm2795, %v2785, 2102212464
  %v2798 = vsel %vm2794, %v2782, %v2797
  %v2799 = vsel %vm2793, %v2796, %v2798
  %v2800 = vsel %vm2792, %v2779, %v2782
  %v2801 = vsel %vm2795, %v2788, 920167782
  %v2802 = vsel %vm2794, %v2785, %v2801
  %v2803 = vsel %vm2793, %v2800, %v2802
  %v2804 = vsel %vm2792, %v2782, %v2785
  %v2805 = vsel %vm2795, %v2791, 1326507024
  %v2806 = vsel %vm2794, %v2788, %v2805
  %v2807 = vsel %vm2793, %v2804, %v2806
  %v2808 = vshll.u32 %v2768, 8
  %v2809 = vmul.u32.u64.compose %v2808, %v2807
  %v2810 = vextract.low.u32 %v2809
  %v2811 = vextract.high.u32 %v2809
  %v2812 = vmul.u32.u64.compose %v2808, %v2803
  %v2813 = vextract.low.u32 %v2812
  %v2814 = vextract.high.u32 %v2812
  %v2815 = vmul.u32 %v2808, %v2799
  %v2816 = vadd.s32 %v2811, %v2813
  %vm2817 = vc.u32 %v2811, %v2813
  %v2818 = vadd.s32 %v2814, 1
  %v2819 = vsel %vm2817, %v2818, %v2814
  %v2820 = vadd.s32 %v2815, %v2819
  %v2821 = vadd.s32 %v2820, 536870912
  %v2822 = vshrl.u32 %v2821, 30
  %v2823 = vshll.u32 %v2822, 30
  %v2824 = vsub.s32 %v2820, %v2823
  %vm2825 = vcmp.lt.s32.totalorder %v2824, 0
  %v2826 = vsub.s32 0, %v2824
  %v2827 = vsel %vm2825, %v2826, %v2824
  %v2828 = vclz %v2827
  %v2829 = vsub.s32 %v2828, 2
  %vm2830 = vcmp.gt.s32.totalorder 0, %v2829
  %v2831 = vsel %vm2830, 0, %v2829
  %v2832 = vsub.s32 32, %v2831
  %v2833 = vshll.u32 %v2824, %v2831
  %v2834 = vshrl.u32 %v2816, %v2832
  %v2835 = vor.u32 %v2833, %v2834
  %v2836 = vsub.s32 4294967266, %v2831
  %v2837 = vadd.s32 %v2836, 127
  %v2838 = vshll.u32 %v2837, 23
  %v2839 = vor.u32 4788187, %v2838
  %v2840 = vand.u32 2147483647, %v2839
  %v2842 = vcvt.s32.f32 %v2835
  %v2843 = vmul.f32 %v2842, %v2840
  %v2844 = vxor.u32 %v2843, 2147483648
  %v2845 = vsel %vm2762, %v2844, %v2843
  %v2846 = vsub.s32 4, %v2822
  %v2847 = vsel %vm2762, %v2846, %v2822
  %v2848 = vsel %vm2761, %v2758, %v2845
  %v2849 = vsel %vm2761, 0, %v2847
  %v2850 = vcosq.f32.pop %v2848
  %v2851 = vsinq.f32.pop %v2848
  %vm2852 = vweird.f32 %v2758
  %v2853 = vadd.s32 %v2849, 3
  %v2854 = vand.u32 %v2853, 3
  %vm2855 = vcmp.lt.s32.totalorder %v2854, 2
  %vm2856 = vcmp.eq.s32.totalorder %v2854, 0
  %v2857 = vxor.u32 %v2851, 2147483648
  %v2858 = vsel %vm2856, %v2850, %v2857
  %vm2859 = vcmp.eq.s32.totalorder %v2854, 2
  %v2860 = vxor.u32 %v2850, 2147483648
  %v2861 = vsel %vm2859, %v2860, %v2851
  %v2862 = vsel %vm2855, %v2858, %v2861
  %v2863 = vsel %vm2852, nan, %v2862
  %v2864 = vand.u32 2147483647, %v2758
  %vm2865 = vcmp.le.f32.partialorder %v2864, 0.7853982
  %vm2866 = vcmp.lt.s32.totalorder %v2758, 0
  %v2867 = vand.u32 %v2758, 2139095040
  %v2868 = vshrl.u32 %v2867, 23
  %v2869 = vsub.s32 %v2868, 127
  %v2870 = vand.u32 2147483647, %v2758
  %v2871 = vand.u32 %v2870, 8388607
  %v2872 = vor.u32 %v2871, 8388608
  %v2873 = vsub.s32 0, %v2872
  %v2874 = vadd.s32 %v2869, 1
  %vm2875 = vcmp.gt.s32.totalorder %v2874, 0
  %v2876 = vsel %vm2875, %v2874, 0
  %v2877 = vshrl.u32 %v2876, 5
  %v2878 = vand.u32 %v2876, 31
  %v2879 = vsub.s32 32, %v2878
  %v2880 = vshrl.u32 683565275, %v2879
  %v2881 = vshll.u32 683565275, %v2878
  %v2882 = vshrl.u32 2475754826, %v2879
  %v2883 = vor.u32 %v2881, %v2882
  %v2884 = vshll.u32 2475754826, %v2878
  %v2885 = vshrl.u32 2131351028, %v2879
  %v2886 = vor.u32 %v2884, %v2885
  %v2887 = vshll.u32 2131351028, %v2878
  %v2888 = vshrl.u32 2102212464, %v2879
  %v2889 = vor.u32 %v2887, %v2888
  %v2890 = vshll.u32 2102212464, %v2878
  %v2891 = vshrl.u32 920167782, %v2879
  %v2892 = vor.u32 %v2890, %v2891
  %v2893 = vshll.u32 920167782, %v2878
  %v2894 = vshrl.u32 1326507024, %v2879
  %v2895 = vor.u32 %v2893, %v2894
  %vm2896 = vcmp.lt.s32.totalorder %v2877, 1
  %vm2897 = vcmp.lt.s32.totalorder %v2877, 2
  %vm2898 = vcmp.lt.s32.totalorder %v2877, 3
  %vm2899 = vcmp.lt.s32.totalorder %v2877, 4
  %v2900 = vsel %vm2896, %v2880, %v2883
  %v2901 = vsel %vm2899, %v2889, 2102212464
  %v2902 = vsel %vm2898, %v2886, %v2901
  %v2903 = vsel %vm2897, %v2900, %v2902
  %v2904 = vsel %vm2896, %v2883, %v2886
  %v2905 = vsel %vm2899, %v2892, 920167782
  %v2906 = vsel %vm2898, %v2889, %v2905
  %v2907 = vsel %vm2897, %v2904, %v2906
  %v2908 = vsel %vm2896, %v2886, %v2889
  %v2909 = vsel %vm2899, %v2895, 1326507024
  %v2910 = vsel %vm2898, %v2892, %v2909
  %v2911 = vsel %vm2897, %v2908, %v2910
  %v2912 = vshll.u32 %v2872, 8
  %v2913 = vmul.u32.u64.compose %v2912, %v2911
  %v2914 = vextract.low.u32 %v2913
  %v2915 = vextract.high.u32 %v2913
  %v2916 = vmul.u32.u64.compose %v2912, %v2907
  %v2917 = vextract.low.u32 %v2916
  %v2918 = vextract.high.u32 %v2916
  %v2919 = vmul.u32 %v2912, %v2903
  %v2920 = vadd.s32 %v2915, %v2917
  %vm2921 = vc.u32 %v2915, %v2917
  %v2922 = vadd.s32 %v2918, 1
  %v2923 = vsel %vm2921, %v2922, %v2918
  %v2924 = vadd.s32 %v2919, %v2923
  %v2925 = vadd.s32 %v2924, 536870912
  %v2926 = vshrl.u32 %v2925, 30
  %v2927 = vshll.u32 %v2926, 30
  %v2928 = vsub.s32 %v2924, %v2927
  %vm2929 = vcmp.lt.s32.totalorder %v2928, 0
  %v2930 = vsub.s32 0, %v2928
  %v2931 = vsel %vm2929, %v2930, %v2928
  %v2932 = vclz %v2931
  %v2933 = vsub.s32 %v2932, 2
  %vm2934 = vcmp.gt.s32.totalorder 0, %v2933
  %v2935 = vsel %vm2934, 0, %v2933
  %v2936 = vsub.s32 32, %v2935
  %v2937 = vshll.u32 %v2928, %v2935
  %v2938 = vshrl.u32 %v2920, %v2936
  %v2939 = vor.u32 %v2937, %v2938
  %v2940 = vsub.s32 4294967266, %v2935
  %v2941 = vadd.s32 %v2940, 127
  %v2942 = vshll.u32 %v2941, 23
  %v2943 = vor.u32 4788187, %v2942
  %v2944 = vand.u32 2147483647, %v2943
  %v2946 = vcvt.s32.f32 %v2939
  %v2947 = vmul.f32 %v2946, %v2944
  %v2948 = vxor.u32 %v2947, 2147483648
  %v2949 = vsel %vm2866, %v2948, %v2947
  %v2950 = vsub.s32 4, %v2926
  %v2951 = vsel %vm2866, %v2950, %v2926
  %v2952 = vsel %vm2865, %v2758, %v2949
  %v2953 = vsel %vm2865, 0, %v2951
  %v2954 = vcosq.f32.pop %v2952
  %v2955 = vsinq.f32.pop %v2952
  %vm2956 = vweird.f32 %v2758
  %v2957 = vand.u32 %v2953, 3
  %vm2958 = vcmp.lt.s32.totalorder %v2957, 2
  %vm2959 = vcmp.eq.s32.totalorder %v2957, 0
  %v2960 = vxor.u32 %v2955, 2147483648
  %v2961 = vsel %vm2959, %v2954, %v2960
  %vm2962 = vcmp.eq.s32.totalorder %v2957, 2
  %v2963 = vxor.u32 %v2954, 2147483648
  %v2964 = vsel %vm2962, %v2963, %v2955
  %v2965 = vsel %vm2958, %v2961, %v2964
  %v2966 = vsel %vm2956, nan, %v2965
  %v2967 = vmul.f32 %v2863, %v2759
  %v2968 = vsub.f32 %v2967, %v2966
  %v2969 = vmul.f32 %v2968, %v2759
  %v2970 = vmul.f32 %v2759, 3.0
  %v2971 = vmul.f32 %v2970, %v2969
  %v2972 = vsub.f32 %v2971, %v2967
  %v2973 = vmul.f32 %v2972, 22.078962
  %v2974 = vmul.f32 %v440, %v2973
  %s2975 = scalar_lea.vmem %s1, 120
  %2976 = vst [vmem:[%s2975] sm:$0xff] %v2974
  %v2977 = vmul.f32 %v447, %v2973
  %s2978 = scalar_lea.vmem %s1, 264
  %2979 = vst [vmem:[%s2978] sm:$0xff] %v2977
  %v2980 = vmul.f32 %v448, %v2973
  %s2981 = scalar_lea.vmem %s1, 408
  %2982 = vst [vmem:[%s2981] sm:$0xff] %v2980
  %v2983 = vmul.f32 %v9, 18.689035
  %v2984 = vmul.f32 %v17, 0.053507306
  %v2985 = vand.u32 2147483647, %v2983
  %vm2986 = vcmp.le.f32.partialorder %v2985, 0.7853982
  %vm2987 = vcmp.lt.s32.totalorder %v2983, 0
  %v2988 = vand.u32 %v2983, 2139095040
  %v2989 = vshrl.u32 %v2988, 23
  %v2990 = vsub.s32 %v2989, 127
  %v2991 = vand.u32 2147483647, %v2983
  %v2992 = vand.u32 %v2991, 8388607
  %v2993 = vor.u32 %v2992, 8388608
  %v2994 = vsub.s32 0, %v2993
  %v2995 = vadd.s32 %v2990, 1
  %vm2996 = vcmp.gt.s32.totalorder %v2995, 0
  %v2997 = vsel %vm2996, %v2995, 0
  %v2998 = vshrl.u32 %v2997, 5
  %v2999 = vand.u32 %v2997, 31
  %v3000 = vsub.s32 32, %v2999
  %v3001 = vshrl.u32 683565275, %v3000
  %v3002 = vshll.u32 683565275, %v2999
  %v3003 = vshrl.u32 2475754826, %v3000
  %v3004 = vor.u32 %v3002, %v3003
  %v3005 = vshll.u32 2475754826, %v2999
  %v3006 = vshrl.u32 2131351028, %v3000
  %v3007 = vor.u32 %v3005, %v3006
  %v3008 = vshll.u32 2131351028, %v2999
  %v3009 = vshrl.u32 2102212464, %v3000
  %v3010 = vor.u32 %v3008, %v3009
  %v3011 = vshll.u32 2102212464, %v2999
  %v3012 = vshrl.u32 920167782, %v3000
  %v3013 = vor.u32 %v3011, %v3012
  %v3014 = vshll.u32 920167782, %v2999
  %v3015 = vshrl.u32 1326507024, %v3000
  %v3016 = vor.u32 %v3014, %v3015
  %vm3017 = vcmp.lt.s32.totalorder %v2998, 1
  %vm3018 = vcmp.lt.s32.totalorder %v2998, 2
  %vm3019 = vcmp.lt.s32.totalorder %v2998, 3
  %vm3020 = vcmp.lt.s32.totalorder %v2998, 4
  %v3021 = vsel %vm3017, %v3001, %v3004
  %v3022 = vsel %vm3020, %v3010, 2102212464
  %v3023 = vsel %vm3019, %v3007, %v3022
  %v3024 = vsel %vm3018, %v3021, %v3023
  %v3025 = vsel %vm3017, %v3004, %v3007
  %v3026 = vsel %vm3020, %v3013, 920167782
  %v3027 = vsel %vm3019, %v3010, %v3026
  %v3028 = vsel %vm3018, %v3025, %v3027
  %v3029 = vsel %vm3017, %v3007, %v3010
  %v3030 = vsel %vm3020, %v3016, 1326507024
  %v3031 = vsel %vm3019, %v3013, %v3030
  %v3032 = vsel %vm3018, %v3029, %v3031
  %v3033 = vshll.u32 %v2993, 8
  %v3034 = vmul.u32.u64.compose %v3033, %v3032
  %v3035 = vextract.low.u32 %v3034
  %v3036 = vextract.high.u32 %v3034
  %v3037 = vmul.u32.u64.compose %v3033, %v3028
  %v3038 = vextract.low.u32 %v3037
  %v3039 = vextract.high.u32 %v3037
  %v3040 = vmul.u32 %v3033, %v3024
  %v3041 = vadd.s32 %v3036, %v3038
  %vm3042 = vc.u32 %v3036, %v3038
  %v3043 = vadd.s32 %v3039, 1
  %v3044 = vsel %vm3042, %v3043, %v3039
  %v3045 = vadd.s32 %v3040, %v3044
  %v3046 = vadd.s32 %v3045, 536870912
  %v3047 = vshrl.u32 %v3046, 30
  %v3048 = vshll.u32 %v3047, 30
  %v3049 = vsub.s32 %v3045, %v3048
  %vm3050 = vcmp.lt.s32.totalorder %v3049, 0
  %v3051 = vsub.s32 0, %v3049
  %v3052 = vsel %vm3050, %v3051, %v3049
  %v3053 = vclz %v3052
  %v3054 = vsub.s32 %v3053, 2
  %vm3055 = vcmp.gt.s32.totalorder 0, %v3054
  %v3056 = vsel %vm3055, 0, %v3054
  %v3057 = vsub.s32 32, %v3056
  %v3058 = vshll.u32 %v3049, %v3056
  %v3059 = vshrl.u32 %v3041, %v3057
  %v3060 = vor.u32 %v3058, %v3059
  %v3061 = vsub.s32 4294967266, %v3056
  %v3062 = vadd.s32 %v3061, 127
  %v3063 = vshll.u32 %v3062, 23
  %v3064 = vor.u32 4788187, %v3063
  %v3065 = vand.u32 2147483647, %v3064
  %v3067 = vcvt.s32.f32 %v3060
  %v3068 = vmul.f32 %v3067, %v3065
  %v3069 = vxor.u32 %v3068, 2147483648
  %v3070 = vsel %vm2987, %v3069, %v3068
  %v3071 = vsub.s32 4, %v3047
  %v3072 = vsel %vm2987, %v3071, %v3047
  %v3073 = vsel %vm2986, %v2983, %v3070
  %v3074 = vsel %vm2986, 0, %v3072
  %v3075 = vcosq.f32.pop %v3073
  %v3076 = vsinq.f32.pop %v3073
  %vm3077 = vweird.f32 %v2983
  %v3078 = vadd.s32 %v3074, 3
  %v3079 = vand.u32 %v3078, 3
  %vm3080 = vcmp.lt.s32.totalorder %v3079, 2
  %vm3081 = vcmp.eq.s32.totalorder %v3079, 0
  %v3082 = vxor.u32 %v3076, 2147483648
  %v3083 = vsel %vm3081, %v3075, %v3082
  %vm3084 = vcmp.eq.s32.totalorder %v3079, 2
  %v3085 = vxor.u32 %v3075, 2147483648
  %v3086 = vsel %vm3084, %v3085, %v3076
  %v3087 = vsel %vm3080, %v3083, %v3086
  %v3088 = vsel %vm3077, nan, %v3087
  %v3089 = vand.u32 2147483647, %v2983
  %vm3090 = vcmp.le.f32.partialorder %v3089, 0.7853982
  %vm3091 = vcmp.lt.s32.totalorder %v2983, 0
  %v3092 = vand.u32 %v2983, 2139095040
  %v3093 = vshrl.u32 %v3092, 23
  %v3094 = vsub.s32 %v3093, 127
  %v3095 = vand.u32 2147483647, %v2983
  %v3096 = vand.u32 %v3095, 8388607
  %v3097 = vor.u32 %v3096, 8388608
  %v3098 = vsub.s32 0, %v3097
  %v3099 = vadd.s32 %v3094, 1
  %vm3100 = vcmp.gt.s32.totalorder %v3099, 0
  %v3101 = vsel %vm3100, %v3099, 0
  %v3102 = vshrl.u32 %v3101, 5
  %v3103 = vand.u32 %v3101, 31
  %v3104 = vsub.s32 32, %v3103
  %v3105 = vshrl.u32 683565275, %v3104
  %v3106 = vshll.u32 683565275, %v3103
  %v3107 = vshrl.u32 2475754826, %v3104
  %v3108 = vor.u32 %v3106, %v3107
  %v3109 = vshll.u32 2475754826, %v3103
  %v3110 = vshrl.u32 2131351028, %v3104
  %v3111 = vor.u32 %v3109, %v3110
  %v3112 = vshll.u32 2131351028, %v3103
  %v3113 = vshrl.u32 2102212464, %v3104
  %v3114 = vor.u32 %v3112, %v3113
  %v3115 = vshll.u32 2102212464, %v3103
  %v3116 = vshrl.u32 920167782, %v3104
  %v3117 = vor.u32 %v3115, %v3116
  %v3118 = vshll.u32 920167782, %v3103
  %v3119 = vshrl.u32 1326507024, %v3104
  %v3120 = vor.u32 %v3118, %v3119
  %vm3121 = vcmp.lt.s32.totalorder %v3102, 1
  %vm3122 = vcmp.lt.s32.totalorder %v3102, 2
  %vm3123 = vcmp.lt.s32.totalorder %v3102, 3
  %vm3124 = vcmp.lt.s32.totalorder %v3102, 4
  %v3125 = vsel %vm3121, %v3105, %v3108
  %v3126 = vsel %vm3124, %v3114, 2102212464
  %v3127 = vsel %vm3123, %v3111, %v3126
  %v3128 = vsel %vm3122, %v3125, %v3127
  %v3129 = vsel %vm3121, %v3108, %v3111
  %v3130 = vsel %vm3124, %v3117, 920167782
  %v3131 = vsel %vm3123, %v3114, %v3130
  %v3132 = vsel %vm3122, %v3129, %v3131
  %v3133 = vsel %vm3121, %v3111, %v3114
  %v3134 = vsel %vm3124, %v3120, 1326507024
  %v3135 = vsel %vm3123, %v3117, %v3134
  %v3136 = vsel %vm3122, %v3133, %v3135
  %v3137 = vshll.u32 %v3097, 8
  %v3138 = vmul.u32.u64.compose %v3137, %v3136
  %v3139 = vextract.low.u32 %v3138
  %v3140 = vextract.high.u32 %v3138
  %v3141 = vmul.u32.u64.compose %v3137, %v3132
  %v3142 = vextract.low.u32 %v3141
  %v3143 = vextract.high.u32 %v3141
  %v3144 = vmul.u32 %v3137, %v3128
  %v3145 = vadd.s32 %v3140, %v3142
  %vm3146 = vc.u32 %v3140, %v3142
  %v3147 = vadd.s32 %v3143, 1
  %v3148 = vsel %vm3146, %v3147, %v3143
  %v3149 = vadd.s32 %v3144, %v3148
  %v3150 = vadd.s32 %v3149, 536870912
  %v3151 = vshrl.u32 %v3150, 30
  %v3152 = vshll.u32 %v3151, 30
  %v3153 = vsub.s32 %v3149, %v3152
  %vm3154 = vcmp.lt.s32.totalorder %v3153, 0
  %v3155 = vsub.s32 0, %v3153
  %v3156 = vsel %vm3154, %v3155, %v3153
  %v3157 = vclz %v3156
  %v3158 = vsub.s32 %v3157, 2
  %vm3159 = vcmp.gt.s32.totalorder 0, %v3158
  %v3160 = vsel %vm3159, 0, %v3158
  %v3161 = vsub.s32 32, %v3160
  %v3162 = vshll.u32 %v3153, %v3160
  %v3163 = vshrl.u32 %v3145, %v3161
  %v3164 = vor.u32 %v3162, %v3163
  %v3165 = vsub.s32 4294967266, %v3160
  %v3166 = vadd.s32 %v3165, 127
  %v3167 = vshll.u32 %v3166, 23
  %v3168 = vor.u32 4788187, %v3167
  %v3169 = vand.u32 2147483647, %v3168
  %v3171 = vcvt.s32.f32 %v3164
  %v3172 = vmul.f32 %v3171, %v3169
  %v3173 = vxor.u32 %v3172, 2147483648
  %v3174 = vsel %vm3091, %v3173, %v3172
  %v3175 = vsub.s32 4, %v3151
  %v3176 = vsel %vm3091, %v3175, %v3151
  %v3177 = vsel %vm3090, %v2983, %v3174
  %v3178 = vsel %vm3090, 0, %v3176
  %v3179 = vcosq.f32.pop %v3177
  %v3180 = vsinq.f32.pop %v3177
  %vm3181 = vweird.f32 %v2983
  %v3182 = vand.u32 %v3178, 3
  %vm3183 = vcmp.lt.s32.totalorder %v3182, 2
  %vm3184 = vcmp.eq.s32.totalorder %v3182, 0
  %v3185 = vxor.u32 %v3180, 2147483648
  %v3186 = vsel %vm3184, %v3179, %v3185
  %vm3187 = vcmp.eq.s32.totalorder %v3182, 2
  %v3188 = vxor.u32 %v3179, 2147483648
  %v3189 = vsel %vm3187, %v3188, %v3180
  %v3190 = vsel %vm3183, %v3186, %v3189
  %v3191 = vsel %vm3181, nan, %v3190
  %v3192 = vmul.f32 %v3088, %v2984
  %v3193 = vsub.f32 %v3192, %v3191
  %v3194 = vmul.f32 %v3193, %v2984
  %v3195 = vmul.f32 %v2984, 3.0
  %v3196 = vmul.f32 %v3195, %v3194
  %v3197 = vsub.f32 %v3196, %v3192
  %v3198 = vmul.f32 %v3197, 26.544523
  %v3199 = vmul.f32 %v440, %v3198
  %s3200 = scalar_lea.vmem %s1, 128
  %3201 = vst [vmem:[%s3200] sm:$0xff] %v3199
  %v3202 = vmul.f32 %v447, %v3198
  %s3203 = scalar_lea.vmem %s1, 272
  %3204 = vst [vmem:[%s3203] sm:$0xff] %v3202
  %v3205 = vmul.f32 %v448, %v3198
  %s3206 = scalar_lea.vmem %s1, 416
  %3207 = vst [vmem:[%s3206] sm:$0xff] %v3205
  %v3208 = vmul.f32 %v9, 21.853874
  %v3209 = vmul.f32 %v17, 0.04575848
  %v3210 = vand.u32 2147483647, %v3208
  %vm3211 = vcmp.le.f32.partialorder %v3210, 0.7853982
  %vm3212 = vcmp.lt.s32.totalorder %v3208, 0
  %v3213 = vand.u32 %v3208, 2139095040
  %v3214 = vshrl.u32 %v3213, 23
  %v3215 = vsub.s32 %v3214, 127
  %v3216 = vand.u32 2147483647, %v3208
  %v3217 = vand.u32 %v3216, 8388607
  %v3218 = vor.u32 %v3217, 8388608
  %v3219 = vsub.s32 0, %v3218
  %v3220 = vadd.s32 %v3215, 1
  %vm3221 = vcmp.gt.s32.totalorder %v3220, 0
  %v3222 = vsel %vm3221, %v3220, 0
  %v3223 = vshrl.u32 %v3222, 5
  %v3224 = vand.u32 %v3222, 31
  %v3225 = vsub.s32 32, %v3224
  %v3226 = vshrl.u32 683565275, %v3225
  %v3227 = vshll.u32 683565275, %v3224
  %v3228 = vshrl.u32 2475754826, %v3225
  %v3229 = vor.u32 %v3227, %v3228
  %v3230 = vshll.u32 2475754826, %v3224
  %v3231 = vshrl.u32 2131351028, %v3225
  %v3232 = vor.u32 %v3230, %v3231
  %v3233 = vshll.u32 2131351028, %v3224
  %v3234 = vshrl.u32 2102212464, %v3225
  %v3235 = vor.u32 %v3233, %v3234
  %v3236 = vshll.u32 2102212464, %v3224
  %v3237 = vshrl.u32 920167782, %v3225
  %v3238 = vor.u32 %v3236, %v3237
  %v3239 = vshll.u32 920167782, %v3224
  %v3240 = vshrl.u32 1326507024, %v3225
  %v3241 = vor.u32 %v3239, %v3240
  %vm3242 = vcmp.lt.s32.totalorder %v3223, 1
  %vm3243 = vcmp.lt.s32.totalorder %v3223, 2
  %vm3244 = vcmp.lt.s32.totalorder %v3223, 3
  %vm3245 = vcmp.lt.s32.totalorder %v3223, 4
  %v3246 = vsel %vm3242, %v3226, %v3229
  %v3247 = vsel %vm3245, %v3235, 2102212464
  %v3248 = vsel %vm3244, %v3232, %v3247
  %v3249 = vsel %vm3243, %v3246, %v3248
  %v3250 = vsel %vm3242, %v3229, %v3232
  %v3251 = vsel %vm3245, %v3238, 920167782
  %v3252 = vsel %vm3244, %v3235, %v3251
  %v3253 = vsel %vm3243, %v3250, %v3252
  %v3254 = vsel %vm3242, %v3232, %v3235
  %v3255 = vsel %vm3245, %v3241, 1326507024
  %v3256 = vsel %vm3244, %v3238, %v3255
  %v3257 = vsel %vm3243, %v3254, %v3256
  %v3258 = vshll.u32 %v3218, 8
  %v3259 = vmul.u32.u64.compose %v3258, %v3257
  %v3260 = vextract.low.u32 %v3259
  %v3261 = vextract.high.u32 %v3259
  %v3262 = vmul.u32.u64.compose %v3258, %v3253
  %v3263 = vextract.low.u32 %v3262
  %v3264 = vextract.high.u32 %v3262
  %v3265 = vmul.u32 %v3258, %v3249
  %v3266 = vadd.s32 %v3261, %v3263
  %vm3267 = vc.u32 %v3261, %v3263
  %v3268 = vadd.s32 %v3264, 1
  %v3269 = vsel %vm3267, %v3268, %v3264
  %v3270 = vadd.s32 %v3265, %v3269
  %v3271 = vadd.s32 %v3270, 536870912
  %v3272 = vshrl.u32 %v3271, 30
  %v3273 = vshll.u32 %v3272, 30
  %v3274 = vsub.s32 %v3270, %v3273
  %vm3275 = vcmp.lt.s32.totalorder %v3274, 0
  %v3276 = vsub.s32 0, %v3274
  %v3277 = vsel %vm3275, %v3276, %v3274
  %v3278 = vclz %v3277
  %v3279 = vsub.s32 %v3278, 2
  %vm3280 = vcmp.gt.s32.totalorder 0, %v3279
  %v3281 = vsel %vm3280, 0, %v3279
  %v3282 = vsub.s32 32, %v3281
  %v3283 = vshll.u32 %v3274, %v3281
  %v3284 = vshrl.u32 %v3266, %v3282
  %v3285 = vor.u32 %v3283, %v3284
  %v3286 = vsub.s32 4294967266, %v3281
  %v3287 = vadd.s32 %v3286, 127
  %v3288 = vshll.u32 %v3287, 23
  %v3289 = vor.u32 4788187, %v3288
  %v3290 = vand.u32 2147483647, %v3289
  %v3292 = vcvt.s32.f32 %v3285
  %v3293 = vmul.f32 %v3292, %v3290
  %v3294 = vxor.u32 %v3293, 2147483648
  %v3295 = vsel %vm3212, %v3294, %v3293
  %v3296 = vsub.s32 4, %v3272
  %v3297 = vsel %vm3212, %v3296, %v3272
  %v3298 = vsel %vm3211, %v3208, %v3295
  %v3299 = vsel %vm3211, 0, %v3297
  %v3300 = vcosq.f32.pop %v3298
  %v3301 = vsinq.f32.pop %v3298
  %vm3302 = vweird.f32 %v3208
  %v3303 = vadd.s32 %v3299, 3
  %v3304 = vand.u32 %v3303, 3
  %vm3305 = vcmp.lt.s32.totalorder %v3304, 2
  %vm3306 = vcmp.eq.s32.totalorder %v3304, 0
  %v3307 = vxor.u32 %v3301, 2147483648
  %v3308 = vsel %vm3306, %v3300, %v3307
  %vm3309 = vcmp.eq.s32.totalorder %v3304, 2
  %v3310 = vxor.u32 %v3300, 2147483648
  %v3311 = vsel %vm3309, %v3310, %v3301
  %v3312 = vsel %vm3305, %v3308, %v3311
  %v3313 = vsel %vm3302, nan, %v3312
  %v3314 = vand.u32 2147483647, %v3208
  %vm3315 = vcmp.le.f32.partialorder %v3314, 0.7853982
  %vm3316 = vcmp.lt.s32.totalorder %v3208, 0
  %v3317 = vand.u32 %v3208, 2139095040
  %v3318 = vshrl.u32 %v3317, 23
  %v3319 = vsub.s32 %v3318, 127
  %v3320 = vand.u32 2147483647, %v3208
  %v3321 = vand.u32 %v3320, 8388607
  %v3322 = vor.u32 %v3321, 8388608
  %v3323 = vsub.s32 0, %v3322
  %v3324 = vadd.s32 %v3319, 1
  %vm3325 = vcmp.gt.s32.totalorder %v3324, 0
  %v3326 = vsel %vm3325, %v3324, 0
  %v3327 = vshrl.u32 %v3326, 5
  %v3328 = vand.u32 %v3326, 31
  %v3329 = vsub.s32 32, %v3328
  %v3330 = vshrl.u32 683565275, %v3329
  %v3331 = vshll.u32 683565275, %v3328
  %v3332 = vshrl.u32 2475754826, %v3329
  %v3333 = vor.u32 %v3331, %v3332
  %v3334 = vshll.u32 2475754826, %v3328
  %v3335 = vshrl.u32 2131351028, %v3329
  %v3336 = vor.u32 %v3334, %v3335
  %v3337 = vshll.u32 2131351028, %v3328
  %v3338 = vshrl.u32 2102212464, %v3329
  %v3339 = vor.u32 %v3337, %v3338
  %v3340 = vshll.u32 2102212464, %v3328
  %v3341 = vshrl.u32 920167782, %v3329
  %v3342 = vor.u32 %v3340, %v3341
  %v3343 = vshll.u32 920167782, %v3328
  %v3344 = vshrl.u32 1326507024, %v3329
  %v3345 = vor.u32 %v3343, %v3344
  %vm3346 = vcmp.lt.s32.totalorder %v3327, 1
  %vm3347 = vcmp.lt.s32.totalorder %v3327, 2
  %vm3348 = vcmp.lt.s32.totalorder %v3327, 3
  %vm3349 = vcmp.lt.s32.totalorder %v3327, 4
  %v3350 = vsel %vm3346, %v3330, %v3333
  %v3351 = vsel %vm3349, %v3339, 2102212464
  %v3352 = vsel %vm3348, %v3336, %v3351
  %v3353 = vsel %vm3347, %v3350, %v3352
  %v3354 = vsel %vm3346, %v3333, %v3336
  %v3355 = vsel %vm3349, %v3342, 920167782
  %v3356 = vsel %vm3348, %v3339, %v3355
  %v3357 = vsel %vm3347, %v3354, %v3356
  %v3358 = vsel %vm3346, %v3336, %v3339
  %v3359 = vsel %vm3349, %v3345, 1326507024
  %v3360 = vsel %vm3348, %v3342, %v3359
  %v3361 = vsel %vm3347, %v3358, %v3360
  %v3362 = vshll.u32 %v3322, 8
  %v3363 = vmul.u32.u64.compose %v3362, %v3361
  %v3364 = vextract.low.u32 %v3363
  %v3365 = vextract.high.u32 %v3363
  %v3366 = vmul.u32.u64.compose %v3362, %v3357
  %v3367 = vextract.low.u32 %v3366
  %v3368 = vextract.high.u32 %v3366
  %v3369 = vmul.u32 %v3362, %v3353
  %v3370 = vadd.s32 %v3365, %v3367
  %vm3371 = vc.u32 %v3365, %v3367
  %v3372 = vadd.s32 %v3368, 1
  %v3373 = vsel %vm3371, %v3372, %v3368
  %v3374 = vadd.s32 %v3369, %v3373
  %v3375 = vadd.s32 %v3374, 536870912
  %v3376 = vshrl.u32 %v3375, 30
  %v3377 = vshll.u32 %v3376, 30
  %v3378 = vsub.s32 %v3374, %v3377
  %vm3379 = vcmp.lt.s32.totalorder %v3378, 0
  %v3380 = vsub.s32 0, %v3378
  %v3381 = vsel %vm3379, %v3380, %v3378
  %v3382 = vclz %v3381
  %v3383 = vsub.s32 %v3382, 2
  %vm3384 = vcmp.gt.s32.totalorder 0, %v3383
  %v3385 = vsel %vm3384, 0, %v3383
  %v3386 = vsub.s32 32, %v3385
  %v3387 = vshll.u32 %v3378, %v3385
  %v3388 = vshrl.u32 %v3370, %v3386
  %v3389 = vor.u32 %v3387, %v3388
  %v3390 = vsub.s32 4294967266, %v3385
  %v3391 = vadd.s32 %v3390, 127
  %v3392 = vshll.u32 %v3391, 23
  %v3393 = vor.u32 4788187, %v3392
  %v3394 = vand.u32 2147483647, %v3393
  %v3396 = vcvt.s32.f32 %v3389
  %v3397 = vmul.f32 %v3396, %v3394
  %v3398 = vxor.u32 %v3397, 2147483648
  %v3399 = vsel %vm3316, %v3398, %v3397
  %v3400 = vsub.s32 4, %v3376
  %v3401 = vsel %vm3316, %v3400, %v3376
  %v3402 = vsel %vm3315, %v3208, %v3399
  %v3403 = vsel %vm3315, 0, %v3401
  %v3404 = vcosq.f32.pop %v3402
  %v3405 = vsinq.f32.pop %v3402
  %vm3406 = vweird.f32 %v3208
  %v3407 = vand.u32 %v3403, 3
  %vm3408 = vcmp.lt.s32.totalorder %v3407, 2
  %vm3409 = vcmp.eq.s32.totalorder %v3407, 0
  %v3410 = vxor.u32 %v3405, 2147483648
  %v3411 = vsel %vm3409, %v3404, %v3410
  %vm3412 = vcmp.eq.s32.totalorder %v3407, 2
  %v3413 = vxor.u32 %v3404, 2147483648
  %v3414 = vsel %vm3412, %v3413, %v3405
  %v3415 = vsel %vm3408, %v3411, %v3414
  %v3416 = vsel %vm3406, nan, %v3415
  %v3417 = vmul.f32 %v3313, %v3209
  %v3418 = vsub.f32 %v3417, %v3416
  %v3419 = vmul.f32 %v3418, %v3209
  %v3420 = vmul.f32 %v3209, 3.0
  %v3421 = vmul.f32 %v3420, %v3419
  %v3422 = vsub.f32 %v3421, %v3417
  %v3423 = vmul.f32 %v3422, 31.003569
  %v3424 = vmul.f32 %v440, %v3423
  %s3425 = scalar_lea.vmem %s1, 136
  %3426 = vst [vmem:[%s3425] sm:$0xff] %v3424
  %v3427 = vmul.f32 %v447, %v3423
  %s3428 = scalar_lea.vmem %s1, 280
  %3429 = vst [vmem:[%s3428] sm:$0xff] %v3427
  %v3430 = vmul.f32 %v448, %v3423
  %s3431 = scalar_lea.vmem %s1, 424
  %3432 = vst [vmem:[%s3431] sm:$0xff] %v3430
  // Predicated region
  $region6: #{a_call__.1} parent=0 // pred_check
    _
  $region7: #{a_call__.1} parent=0 // pred_check_branch
    %3434 = sbr.rel (0) target = $region9
  $region8: #{a_call__.1} parent=0 // pred_region
    _
  $region9: #{a_call__.1} parent=0 // pred_fallthru
    _
  // Predicated region
  $region10: #{a_call__.1} parent=0 // pred_check
    _
  $region11: #{a_call__.1} parent=0 // pred_check_branch
    %3436 = sbr.rel (0) target = $region13
  $region12: #{a_call__.1} parent=0 // pred_region
    _
  $region13: #{a_call__.1} parent=0 // pred_fallthru
    _

</llo_original>
